<compile_context>
chip_gen: v5e
topology: v5e:2x2
jax: 0.10.0
libtpu: 0.0.40
codegen_flags: <defaults>
</compile_context>

<pallas_src>
import functools

import jax
import jax.numpy as jnp
import numpy as np
from jax.experimental import pallas as pl
from jax.experimental.pallas import tpu as pltpu

_BN_EPS = 1e-5


def _mxu(a, b):
    """bf16 x bf16 matmul with f32 accumulation on the MXU."""
    return jnp.dot(a, b, preferred_element_type=jnp.float32)


# ----------------------------------------------------------------------------
# The single fused kernel: whole forward pass, VMEM-resident intermediates.
# ----------------------------------------------------------------------------
def _cnn_fused_kernel(x_ref, w1_ref, b1_ref, w2_ref, b2_ref, w3_ref, b3_ref,
                      fc1w_ref, fc1b_ref, fc2w_ref, fc2b_ref, out_ref):
    # conv1 + bn1 + relu  (im2col folded into w1): (tn,256) x (256,1568)
    a1 = jnp.maximum(_mxu(x_ref[...], w1_ref[...]) + b1_ref[...], 0.0)
    # TODO(synk): dropout1 / dropout2 are inference-mode identity (no masking).

    # conv2 + bn2 + relu  (im2col folded into w2): (tn,1568) x (1568,576)
    a2 = jnp.maximum(_mxu(a1.astype(jnp.bfloat16), w2_ref[...]) + b2_ref[...], 0.0)

    # conv3 + bn3 + relu: (tn,576) x (576,128)
    a3 = jnp.maximum(_mxu(a2.astype(jnp.bfloat16), w3_ref[...]) + b3_ref[...], 0.0)

    # flatten is a no-op (a3 is already (tn, 128)); tanh(fc1); fc2 (padded->128)
    h = jnp.tanh(_mxu(a3.astype(jnp.bfloat16), fc1w_ref[...]) + fc1b_ref[...])
    logits = _mxu(h.astype(jnp.bfloat16), fc2w_ref[...]) + fc2b_ref[...]
    out_ref[...] = logits.astype(out_ref.dtype)


def _fused_forward_call(x2d, w1, b1, w2, b2, w3, b3,
                        fc1w, fc1b, fc2w, fc2b, *, tile_n):
    n_pad = x2d.shape[0]
    grid = (n_pad // tile_n,)

    row_map = lambda i: (i, 0)        # batch-tiled operands
    const_map = lambda i: (0, 0)      # VMEM-resident weights / shifts

    def w_spec(a):
        return pl.BlockSpec(a.shape, const_map)

    args = (x2d, w1, b1, w2, b2, w3, b3, fc1w, fc1b, fc2w, fc2b)

    # Real (O(N)) executed FLOPs: 5 matmuls per row.
    flops_per_row = 2 * (256 * 1568 + 1568 * 576 + 576 * 128 + 128 * 64 + 64 * 128)
    bytes_accessed = sum(int(a.size) * a.dtype.itemsize for a in args) + n_pad * 128 * 4

    return pl.pallas_call(
        _cnn_fused_kernel,
        out_shape=jax.ShapeDtypeStruct((n_pad, 128), jnp.float32),
        grid=grid,
        in_specs=[pl.BlockSpec((tile_n, 256), row_map),
                  w_spec(w1), w_spec(b1),
                  w_spec(w2), w_spec(b2),
                  w_spec(w3), w_spec(b3),
                  w_spec(fc1w), w_spec(fc1b),
                  w_spec(fc2w), w_spec(fc2b)],
        out_specs=pl.BlockSpec((tile_n, 128), row_map),
        compiler_params=pltpu.CompilerParams(
            dimension_semantics=("parallel",)),
        cost_estimate=pl.CostEstimate(
            flops=int(flops_per_row * n_pad),
            transcendentals=int(64 * n_pad),
            bytes_accessed=int(bytes_accessed)),
    )(*args)


# ----------------------------------------------------------------------------
# Constant (batch-independent) tap-placement tensors, built once in numpy.
# ----------------------------------------------------------------------------
@functools.lru_cache(maxsize=None)
def _conv1_placement():
    """g[di,dj,pix,pos] = 1 iff pixel pix feeds conv1 output pos via tap (di,dj)."""
    g = np.zeros((3, 3, 256, 49), np.float32)
    for di in range(3):
        for dj in range(3):
            for ho in range(7):
                for wo in range(7):
                    pix = (2 * ho + di) * 16 + (2 * wo + dj)
                    g[di, dj, pix, ho * 7 + wo] = 1.0
    return g


@functools.lru_cache(maxsize=None)
def _conv2_placement():
    """g[di,dj,q,p] = 1 iff conv1-output pos q feeds conv2 output pos p via tap (di,dj)."""
    g = np.zeros((3, 3, 49, 9), np.float32)
    for di in range(3):
        for dj in range(3):
            for ho in range(3):
                for wo in range(3):
                    q = (2 * ho + di) * 7 + (2 * wo + dj)
                    g[di, dj, q, ho * 3 + wo] = 1.0
    return g


def _fold_bn(w_hwio, conv_b, gamma, beta, mean, var):
    """Fold conv bias + BatchNorm (inference) into weight scale + shift."""
    inv_std = 1.0 / jnp.sqrt(var + _BN_EPS)
    scale = gamma * inv_std                            # (Cout,)
    shift = beta + scale * (conv_b - mean)             # (Cout,)
    return w_hwio * scale, shift                       # broadcast over Cout


# ----------------------------------------------------------------------------
# Parameter init (deterministic, synthetic).  Linear weights are stored in
# PyTorch (out, in) layout and transposed in the wrapper.
# ----------------------------------------------------------------------------
def init_params(key):
    ks = jax.random.split(key, 10)

    def w_init(k, shape, fan_in):
        return jax.random.normal(k, shape, jnp.float32) / jnp.sqrt(fan_in)

    params = {
        # conv weights stored HWIO: (kh, kw, Cin, Cout)
        "conv1_w": w_init(ks[0], (3, 3, 1, 32), 3 * 3 * 1),
        "conv1_b": jax.random.normal(ks[1], (32,), jnp.float32) * 0.01,
        "conv2_w": w_init(ks[2], (3, 3, 32, 64), 3 * 3 * 32),
        "conv2_b": jax.random.normal(ks[3], (64,), jnp.float32) * 0.01,
        "conv3_w": w_init(ks[4], (3, 3, 64, 128), 3 * 3 * 64),
        "conv3_b": jax.random.normal(ks[5], (128,), jnp.float32) * 0.01,
        # Linear weights in PyTorch (out, in) layout.
        "fc1_w": w_init(ks[6], (64, 128), 128),
        "fc1_b": jax.random.normal(ks[7], (64,), jnp.float32) * 0.01,
        "fc2_w": w_init(ks[8], (10, 64), 64),
        "fc2_b": jax.random.normal(ks[9], (10,), jnp.float32) * 0.01,
    }
    # BatchNorm2d default params / running stats (inference mode).
    for i, c in zip((1, 2, 3), (32, 64, 128)):
        params[f"bn{i}_gamma"] = jnp.ones((c,), jnp.float32)
        params[f"bn{i}_beta"] = jnp.zeros((c,), jnp.float32)
        params[f"bn{i}_mean"] = jnp.zeros((c,), jnp.float32)
        params[f"bn{i}_var"] = jnp.ones((c,), jnp.float32)
    return params


# ----------------------------------------------------------------------------
# Full forward pass: one fused, batch-tiled Pallas kernel.
# ----------------------------------------------------------------------------
@jax.jit
def cnn_model_forward(params, x_nchw):
    """x_nchw: (N, 1, 16, 16) float32 -> logits (N, 10)."""
    n = x_nchw.shape[0]
    x2d = x_nchw.reshape(n, 16 * 16)                   # Cin=1: row-major (h, w)

    w1f, sh1 = _fold_bn(params["conv1_w"], params["conv1_b"],
                        params["bn1_gamma"], params["bn1_beta"],
                        params["bn1_mean"], params["bn1_var"])
    w2f, sh2 = _fold_bn(params["conv2_w"], params["conv2_b"],
                        params["bn2_gamma"], params["bn2_beta"],
                        params["bn2_mean"], params["bn2_var"])
    w3f, sh3 = _fold_bn(params["conv3_w"], params["conv3_b"],
                        params["bn3_gamma"], params["bn3_beta"],
                        params["bn3_mean"], params["bn3_var"])

    # Fold im2col into batch-independent big-K weight matrices (constant folded
    # by XLA; sizes depend only on static layer shapes, never on N).
    g1 = jnp.asarray(_conv1_placement())                       # (3,3,256,49)
    W1 = jnp.einsum("ijpq,ijc->pqc", g1, w1f[:, :, 0, :]).reshape(256, 49 * 32)
    B1 = jnp.tile(sh1, 49).reshape(1, 49 * 32)
    g2 = jnp.asarray(_conv2_placement())                       # (3,3,49,9)
    W2 = jnp.einsum("ijqp,ijcd->qcpd", g2, w2f).reshape(49 * 32, 9 * 64)
    B2 = jnp.tile(sh2, 9).reshape(1, 9 * 64)
    W3 = w3f.reshape(9 * 64, 128)                              # tap order matches a2 lanes
    B3 = sh3.reshape(1, 128)

    FC1W = params["fc1_w"].T                                   # (in=128, out=64)
    FC1B = params["fc1_b"].reshape(1, 64)
    # Lane-dense output: zero-pad fc2 from 10 to 128 output columns.
    FC2W = jnp.zeros((64, 128), jnp.float32).at[:, :10].set(params["fc2_w"].T)
    FC2B = jnp.zeros((1, 128), jnp.float32).at[0, :10].set(params["fc2_b"])

    # Batch tiling: large tiles (256 rows) for big-M matmuls + DMA pipelining,
    # sized well under v7x's 64 MiB VMEM; small batches round up to 8 rows.
    tile_n = 256 if n >= 256 else ((n + 7) // 8) * 8
    n_pad = ((n + tile_n - 1) // tile_n) * tile_n
    if n_pad != n:
        x2d = jnp.pad(x2d, ((0, n_pad - n), (0, 0)))

    bf = jnp.bfloat16
    out = _fused_forward_call(
        x2d.astype(bf),
        W1.astype(bf), B1,
        W2.astype(bf), B2,
        W3.astype(bf), B3,
        FC1W.astype(bf), FC1B,
        FC2W.astype(bf), FC2B,
        tile_n=tile_n)
    return out[:n, :10]


if __name__ == "__main__":
    key = jax.random.PRNGKey(0)
    k_params, k_x = jax.random.split(key)

    params = init_params(k_params)
    # Input consistent with fc1 = Linear(128*1*1, 64): 1 channel, 16x16 images.
    x = jax.random.normal(k_x, (2, 1, 16, 16), jnp.float32)

    logits = cnn_model_forward(params, x)
    jax.block_until_ready(logits)
    assert logits.shape == (2, 10), logits.shape
    assert logits.dtype == jnp.float32
    print("KERNEL_OK")
</pallas_src>

<mosaic_0001>
module attributes {stable_mosaic.version = 11 : i64} {
  func.func @_cnn_fused_kernel(%arg0: i32, %arg1: memref<8x256xbf16, #tpu.memory_space<vmem>>, %arg2: memref<256x1568xbf16, #tpu.memory_space<vmem>>, %arg3: memref<1x1568xf32, #tpu.memory_space<vmem>>, %arg4: memref<1568x576xbf16, #tpu.memory_space<vmem>>, %arg5: memref<1x576xf32, #tpu.memory_space<vmem>>, %arg6: memref<576x128xbf16, #tpu.memory_space<vmem>>, %arg7: memref<1x128xf32, #tpu.memory_space<vmem>>, %arg8: memref<128x64xbf16, #tpu.memory_space<vmem>>, %arg9: memref<1x64xf32, #tpu.memory_space<vmem>>, %arg10: memref<64x128xbf16, #tpu.memory_space<vmem>>, %arg11: memref<1x128xf32, #tpu.memory_space<vmem>>, %arg12: memref<8x128xf32, #tpu.memory_space<vmem>>) attributes {dimension_semantics = [#tpu.dimension_semantics<parallel>], iteration_bounds = array<i64: 1>, scalar_prefetch = 0 : i64, scratch_operands = 0 : i64, tpu.core_type = #tpu.core_type<tc>, window_params = [{transform_indices = @transform_0, window_bounds = array<i64: 8, 256>}, {pipeline_mode = #tpu.pipeline_mode<synchronous>, transform_indices = @transform_1, window_bounds = array<i64: 256, 1568>}, {pipeline_mode = #tpu.pipeline_mode<synchronous>, transform_indices = @transform_2, window_bounds = array<i64: 1, 1568>}, {pipeline_mode = #tpu.pipeline_mode<synchronous>, transform_indices = @transform_3, window_bounds = array<i64: 1568, 576>}, {pipeline_mode = #tpu.pipeline_mode<synchronous>, transform_indices = @transform_4, window_bounds = array<i64: 1, 576>}, {pipeline_mode = #tpu.pipeline_mode<synchronous>, transform_indices = @transform_5, window_bounds = array<i64: 576, 128>}, {pipeline_mode = #tpu.pipeline_mode<synchronous>, transform_indices = @transform_6, window_bounds = array<i64: 1, 128>}, {pipeline_mode = #tpu.pipeline_mode<synchronous>, transform_indices = @transform_7, window_bounds = array<i64: 128, 64>}, {pipeline_mode = #tpu.pipeline_mode<synchronous>, transform_indices = @transform_8, window_bounds = array<i64: 1, 64>}, {pipeline_mode = #tpu.pipeline_mode<synchronous>, transform_indices = @transform_9, window_bounds = array<i64: 64, 128>}, {pipeline_mode = #tpu.pipeline_mode<synchronous>, transform_indices = @transform_10, window_bounds = array<i64: 1, 128>}, {transform_indices = @transform_11, window_bounds = array<i64: 8, 128>}]} {
    %c0 = arith.constant 0 : index
    %c0_0 = arith.constant 0 : index
    %0 = vector.load %arg1[%c0, %c0_0] : memref<8x256xbf16, #tpu.memory_space<vmem>>, vector<8x256xbf16>
    %c0_1 = arith.constant 0 : index
    %c0_2 = arith.constant 0 : index
    %1 = vector.load %arg2[%c0_1, %c0_2] : memref<256x1568xbf16, #tpu.memory_space<vmem>>, vector<256x1568xbf16>
    %cst = arith.constant dense<0.000000e+00> : vector<8x1568xf32>
    %2 = tpu.matmul %0, %1, %cst {dimension_numbers = #tpu.dot_dimension_numbers<[1], [0], [0], [1], [0, 0, 1, 1], [], []>} : vector<8x256xbf16>, vector<256x1568xbf16>, vector<8x1568xf32> -> vector<8x1568xf32>
    %c0_3 = arith.constant 0 : index
    %c0_4 = arith.constant 0 : index
    %3 = vector.load %arg3[%c0_3, %c0_4] : memref<1x1568xf32, #tpu.memory_space<vmem>>, vector<1x1568xf32>
    %4 = vector.broadcast %3 : vector<1x1568xf32> to vector<8x1568xf32>
    %5 = arith.addf %2, %4 : vector<8x1568xf32>
    %cst_5 = arith.constant 0.000000e+00 : f32
    %6 = vector.broadcast %cst_5 : f32 to vector<8x1568xf32>
    %7 = arith.maximumf %5, %6 : vector<8x1568xf32>
    %8 = arith.truncf %7 : vector<8x1568xf32> to vector<8x1568xbf16>
    %c0_6 = arith.constant 0 : index
    %c0_7 = arith.constant 0 : index
    %9 = vector.load %arg4[%c0_6, %c0_7] : memref<1568x576xbf16, #tpu.memory_space<vmem>>, vector<1568x576xbf16>
    %cst_8 = arith.constant dense<0.000000e+00> : vector<8x576xf32>
    %10 = tpu.matmul %8, %9, %cst_8 {dimension_numbers = #tpu.dot_dimension_numbers<[1], [0], [0], [1], [0, 0, 1, 1], [], []>} : vector<8x1568xbf16>, vector<1568x576xbf16>, vector<8x576xf32> -> vector<8x576xf32>
    %c0_9 = arith.constant 0 : index
    %c0_10 = arith.constant 0 : index
    %11 = vector.load %arg5[%c0_9, %c0_10] : memref<1x576xf32, #tpu.memory_space<vmem>>, vector<1x576xf32>
    %12 = vector.broadcast %11 : vector<1x576xf32> to vector<8x576xf32>
    %13 = arith.addf %10, %12 : vector<8x576xf32>
    %cst_11 = arith.constant 0.000000e+00 : f32
    %14 = vector.broadcast %cst_11 : f32 to vector<8x576xf32>
    %15 = arith.maximumf %13, %14 : vector<8x576xf32>
    %16 = arith.truncf %15 : vector<8x576xf32> to vector<8x576xbf16>
    %c0_12 = arith.constant 0 : index
    %c0_13 = arith.constant 0 : index
    %17 = vector.load %arg6[%c0_12, %c0_13] : memref<576x128xbf16, #tpu.memory_space<vmem>>, vector<576x128xbf16>
    %cst_14 = arith.constant dense<0.000000e+00> : vector<8x128xf32>
    %18 = tpu.matmul %16, %17, %cst_14 {dimension_numbers = #tpu.dot_dimension_numbers<[1], [0], [0], [1], [0, 0, 1, 1], [], []>} : vector<8x576xbf16>, vector<576x128xbf16>, vector<8x128xf32> -> vector<8x128xf32>
    %c0_15 = arith.constant 0 : index
    %c0_16 = arith.constant 0 : index
    %19 = vector.load %arg7[%c0_15, %c0_16] : memref<1x128xf32, #tpu.memory_space<vmem>>, vector<1x128xf32>
    %20 = vector.broadcast %19 : vector<1x128xf32> to vector<8x128xf32>
    %21 = arith.addf %18, %20 : vector<8x128xf32>
    %cst_17 = arith.constant 0.000000e+00 : f32
    %22 = vector.broadcast %cst_17 : f32 to vector<8x128xf32>
    %23 = arith.maximumf %21, %22 : vector<8x128xf32>
    %24 = arith.truncf %23 : vector<8x128xf32> to vector<8x128xbf16>
    %c0_18 = arith.constant 0 : index
    %c0_19 = arith.constant 0 : index
    %25 = vector.load %arg8[%c0_18, %c0_19] : memref<128x64xbf16, #tpu.memory_space<vmem>>, vector<128x64xbf16>
    %cst_20 = arith.constant dense<0.000000e+00> : vector<8x64xf32>
    %26 = tpu.matmul %24, %25, %cst_20 {dimension_numbers = #tpu.dot_dimension_numbers<[1], [0], [0], [1], [0, 0, 1, 1], [], []>} : vector<8x128xbf16>, vector<128x64xbf16>, vector<8x64xf32> -> vector<8x64xf32>
    %c0_21 = arith.constant 0 : index
    %c0_22 = arith.constant 0 : index
    %27 = vector.load %arg9[%c0_21, %c0_22] : memref<1x64xf32, #tpu.memory_space<vmem>>, vector<1x64xf32>
    %28 = vector.broadcast %27 : vector<1x64xf32> to vector<8x64xf32>
    %29 = arith.addf %26, %28 : vector<8x64xf32>
    %30 = math.tanh %29 : vector<8x64xf32>
    %31 = arith.truncf %30 : vector<8x64xf32> to vector<8x64xbf16>
    %c0_23 = arith.constant 0 : index
    %c0_24 = arith.constant 0 : index
    %32 = vector.load %arg10[%c0_23, %c0_24] : memref<64x128xbf16, #tpu.memory_space<vmem>>, vector<64x128xbf16>
    %cst_25 = arith.constant dense<0.000000e+00> : vector<8x128xf32>
    %33 = tpu.matmul %31, %32, %cst_25 {dimension_numbers = #tpu.dot_dimension_numbers<[1], [0], [0], [1], [0, 0, 1, 1], [], []>} : vector<8x64xbf16>, vector<64x128xbf16>, vector<8x128xf32> -> vector<8x128xf32>
    %c0_26 = arith.constant 0 : index
    %c0_27 = arith.constant 0 : index
    %34 = vector.load %arg11[%c0_26, %c0_27] : memref<1x128xf32, #tpu.memory_space<vmem>>, vector<1x128xf32>
    %35 = vector.broadcast %34 : vector<1x128xf32> to vector<8x128xf32>
    %36 = arith.addf %33, %35 : vector<8x128xf32>
    %c0_28 = arith.constant 0 : index
    %c0_29 = arith.constant 0 : index
    %37 = vector.load %arg12[%c0_28, %c0_29] : memref<8x128xf32, #tpu.memory_space<vmem>>, vector<8x128xf32>
    tpu.vector_store %arg12[%c0_28, %c0_29], %36 {strides = array<i32>} : memref<8x128xf32, #tpu.memory_space<vmem>>, vector<8x128xf32>,
    return
  }
  func.func @transform_0(%arg0: i32) -> (i32, i32) {
    %c0_i32 = arith.constant 0 : i32
    %c0_i32_0 = arith.constant 0 : i32
    return %arg0, %c0_i32 : i32, i32
  }
  func.func @transform_1(%arg0: i32) -> (i32, i32) {
    %c0_i32 = arith.constant 0 : i32
    %c0_i32_0 = arith.constant 0 : i32
    %c0_i32_1 = arith.constant 0 : i32
    return %c0_i32, %c0_i32_0 : i32, i32
  }
  func.func @transform_2(%arg0: i32) -> (i32, i32) {
    %c0_i32 = arith.constant 0 : i32
    %c0_i32_0 = arith.constant 0 : i32
    %c0_i32_1 = arith.constant 0 : i32
    return %c0_i32, %c0_i32_0 : i32, i32
  }
  func.func @transform_3(%arg0: i32) -> (i32, i32) {
    %c0_i32 = arith.constant 0 : i32
    %c0_i32_0 = arith.constant 0 : i32
    %c0_i32_1 = arith.constant 0 : i32
    return %c0_i32, %c0_i32_0 : i32, i32
  }
  func.func @transform_4(%arg0: i32) -> (i32, i32) {
    %c0_i32 = arith.constant 0 : i32
    %c0_i32_0 = arith.constant 0 : i32
    %c0_i32_1 = arith.constant 0 : i32
    return %c0_i32, %c0_i32_0 : i32, i32
  }
  func.func @transform_5(%arg0: i32) -> (i32, i32) {
    %c0_i32 = arith.constant 0 : i32
    %c0_i32_0 = arith.constant 0 : i32
    %c0_i32_1 = arith.constant 0 : i32
    return %c0_i32, %c0_i32_0 : i32, i32
  }
  func.func @transform_6(%arg0: i32) -> (i32, i32) {
    %c0_i32 = arith.constant 0 : i32
    %c0_i32_0 = arith.constant 0 : i32
    %c0_i32_1 = arith.constant 0 : i32
    return %c0_i32, %c0_i32_0 : i32, i32
  }
  func.func @transform_7(%arg0: i32) -> (i32, i32) {
    %c0_i32 = arith.constant 0 : i32
    %c0_i32_0 = arith.constant 0 : i32
    %c0_i32_1 = arith.constant 0 : i32
    return %c0_i32, %c0_i32_0 : i32, i32
  }
  func.func @transform_8(%arg0: i32) -> (i32, i32) {
    %c0_i32 = arith.constant 0 : i32
    %c0_i32_0 = arith.constant 0 : i32
    %c0_i32_1 = arith.constant 0 : i32
    return %c0_i32, %c0_i32_0 : i32, i32
  }
  func.func @transform_9(%arg0: i32) -> (i32, i32) {
    %c0_i32 = arith.constant 0 : i32
    %c0_i32_0 = arith.constant 0 : i32
    %c0_i32_1 = arith.constant 0 : i32
    return %c0_i32, %c0_i32_0 : i32, i32
  }
  func.func @transform_10(%arg0: i32) -> (i32, i32) {
    %c0_i32 = arith.constant 0 : i32
    %c0_i32_0 = arith.constant 0 : i32
    %c0_i32_1 = arith.constant 0 : i32
    return %c0_i32, %c0_i32_0 : i32, i32
  }
  func.func @transform_11(%arg0: i32) -> (i32, i32) {
    %c0_i32 = arith.constant 0 : i32
    %c0_i32_0 = arith.constant 0 : i32
    return %arg0, %c0_i32 : i32, i32
  }
}

</mosaic_0001>

<llo_original>
// kernel: tile.13
$region0: #{tile.13}
  #allocation0 [shape = 's32[1]{0}', space=sflag, size = 0x4, scoped, tag = 'scoped memory for tile.13']
  %s0 = inlined_call_operand.vmem [shape: f32[32], index: 0, kind: input, shape index: {}]
  %s1 = inlined_call_operand.vmem [shape: f32[49,32], index: 1, kind: output, shape index: {}]
  // Predicated region
  $region2: #{tile.13} parent=0 // pred_check
    _
  $region3: #{tile.13} parent=0 // pred_check_branch
    %3 = sbr.rel (0) target = $region5
  $region4: #{tile.13} parent=0 // pred_region
    _
  $region5: #{tile.13} parent=0 // pred_fallthru
    _
  %v4 = vld [vmem:[%s0] ss:$0 sm:$0xff]
  %5 = vst [vmem:[%s1] sm:$0xff] %v4
  %s6 = scalar_lea.vmem %s1, 8
  %7 = vst [vmem:[%s6] sm:$0xff] %v4
  %s8 = scalar_lea.vmem %s1, 16
  %9 = vst [vmem:[%s8] sm:$0xff] %v4
  %s10 = scalar_lea.vmem %s1, 24
  %11 = vst [vmem:[%s10] sm:$0xff] %v4
  %s12 = scalar_lea.vmem %s1, 32
  %13 = vst [vmem:[%s12] sm:$0xff] %v4
  %s14 = scalar_lea.vmem %s1, 40
  %15 = vst [vmem:[%s14] sm:$0xff] %v4
  %s16 = scalar_lea.vmem %s1, 48
  %17 = vst [vmem:[%s16] sm:$0xff] %v4

// kernel: tile.14
$region0: #{tile.14}
  %s0 = inlined_call_operand.vmem [shape: f32[49,32], index: 0, kind: input, shape index: {}]
  %s1 = inlined_call_operand.vmem [shape: f32[1,1568], index: 1, kind: output, shape index: {}]
  $region1: #{tile.14} parent=0
    #allocation0 [shape = 'u8[53248]{0}', space=vmem, size = 0xd000, scoped, tag = 'scoped mem for output reshape']
    %v2 = vld [vmem:[%s0] ss:$4 sm:$0xff]
    %vm3 = vcmask 261120
    %4 = vst.msk [vmem:[#allocation0] ss:$8 sm:$0xf] %vm3, %v2
    %5 = vst.msk [vmem:[#allocation0] ss:$8 sm:$0xf0] %vm3, %v2
    %s6 = scalar_lea.vmem %s0, 32
    %v7 = vld [vmem:[%s6] ss:$4 sm:$0x1f]
    %vm8 = vcmask 261120
    %s9 = scalar_lea.vmem [#allocation0], 64
    %10 = vst.msk [vmem:[%s9] ss:$8 sm:$0xf] %vm8, %v7
    %s11 = scalar_lea.vmem [#allocation0], 92
    %12 = vst.msk [vmem:[%s11] sm:$0x10] %vm8, %v7
    %s13 = scalar_lea.vmem %s0, 3
    %v14 = vld [vmem:[%s13] ss:$4 sm:$0xff]
    %15 = vrot.lane.b32.xlu0 %v14, 96
    %v16 = vpop.permute.xlu0 %15
    %vm17 = vcmask 1048320
    %18 = vst.msk [vmem:[#allocation0] ss:$8 sm:$0xf] %vm17, %v16
    %19 = vst.msk [vmem:[#allocation0] ss:$8 sm:$0xf0] %vm17, %v16
    %s20 = scalar_lea.vmem %s0, 35
    %v21 = vld [vmem:[%s20] ss:$4 sm:$0xf]
    %22 = vrot.lane.b32.xlu0 %v21, 96
    %v23 = vpop.permute.xlu0 %22
    %vm24 = vcmask 1048320
    %s25 = scalar_lea.vmem [#allocation0], 64
    %26 = vst.msk [vmem:[%s25] ss:$8 sm:$0xf] %vm24, %v23
    %s27 = scalar_lea.vmem %s0, 2
    %v28 = vld [vmem:[%s27] ss:$4 sm:$0xff]
    %29 = vrot.lane.b32.xlu0 %v28, 64
    %v30 = vpop.permute.xlu0 %29
    %vm31 = vcmask 785920
    %32 = vst.msk [vmem:[#allocation0] ss:$8 sm:$0xf] %vm31, %v30
    %33 = vst.msk [vmem:[#allocation0] ss:$8 sm:$0xf0] %vm31, %v30
    %s34 = scalar_lea.vmem %s0, 34
    %v35 = vld [vmem:[%s34] ss:$4 sm:$0xf]
    %36 = vrot.lane.b32.xlu0 %v35, 64
    %v37 = vpop.permute.xlu0 %36
    %vm38 = vcmask 785920
    %s39 = scalar_lea.vmem [#allocation0], 64
    %40 = vst.msk [vmem:[%s39] ss:$8 sm:$0xf] %vm38, %v37
    %s41 = scalar_lea.vmem %s0, 1
    %v42 = vld [vmem:[%s41] ss:$4 sm:$0xff]
    %43 = vrot.lane.b32.xlu0 %v42, 32
    %v44 = vpop.permute.xlu0 %43
    %vm45 = vcmask 523520
    %46 = vst.msk [vmem:[#allocation0] ss:$8 sm:$0xf] %vm45, %v44
    %47 = vst.msk [vmem:[#allocation0] ss:$8 sm:$0xf0] %vm45, %v44
    %s48 = scalar_lea.vmem %s0, 33
    %v49 = vld [vmem:[%s48] ss:$4 sm:$0xf]
    %50 = vrot.lane.b32.xlu0 %v49, 32
    %v51 = vpop.permute.xlu0 %50
    %vm52 = vcmask 523520
    %s53 = scalar_lea.vmem [#allocation0], 64
    %54 = vst.msk [vmem:[%s53] ss:$8 sm:$0xf] %vm52, %v51
    %s56 = ssub.s32 2, 1
    %v57 = vld [vmem:[#allocation0] sm:%s56]
    %s59 = ssub.s32 2, 1
    %60 = vst [vmem:[%s1] sm:%s59] %v57
    %s61 = scalar_lea.vmem [#allocation0], 8
    %v62 = vld [vmem:[%s61] sm:%s56]
    %s64 = ssub.s32 2, 1
    %s65 = scalar_lea.vmem %s1, 1
    %66 = vst [vmem:[%s65] sm:%s64] %v62
    %s67 = scalar_lea.vmem [#allocation0], 16
    %v68 = vld [vmem:[%s67] sm:%s56]
    %s70 = ssub.s32 2, 1
    %s71 = scalar_lea.vmem %s1, 2
    %72 = vst [vmem:[%s71] sm:%s70] %v68
    %s73 = scalar_lea.vmem [#allocation0], 24
    %v74 = vld [vmem:[%s73] sm:%s56]
    %s76 = ssub.s32 2, 1
    %s77 = scalar_lea.vmem %s1, 3
    %78 = vst [vmem:[%s77] sm:%s76] %v74
    %s79 = scalar_lea.vmem [#allocation0], 32
    %v80 = vld [vmem:[%s79] sm:%s56]
    %s82 = ssub.s32 2, 1
    %s83 = scalar_lea.vmem %s1, 4
    %84 = vst [vmem:[%s83] sm:%s82] %v80
    %s85 = scalar_lea.vmem [#allocation0], 40
    %v86 = vld [vmem:[%s85] sm:%s56]
    %s88 = ssub.s32 2, 1
    %s89 = scalar_lea.vmem %s1, 5
    %90 = vst [vmem:[%s89] sm:%s88] %v86
    %s91 = scalar_lea.vmem [#allocation0], 48
    %v92 = vld [vmem:[%s91] sm:%s56]
    %s94 = ssub.s32 2, 1
    %s95 = scalar_lea.vmem %s1, 6
    %96 = vst [vmem:[%s95] sm:%s94] %v92
    %s97 = scalar_lea.vmem [#allocation0], 56
    %v98 = vld [vmem:[%s97] sm:%s56]
    %s100 = ssub.s32 2, 1
    %s101 = scalar_lea.vmem %s1, 7
    %102 = vst [vmem:[%s101] sm:%s100] %v98
    %s103 = scalar_lea.vmem [#allocation0], 64
    %v104 = vld [vmem:[%s103] sm:%s56]
    %s106 = ssub.s32 2, 1
    %s107 = scalar_lea.vmem %s1, 8
    %108 = vst [vmem:[%s107] sm:%s106] %v104
    %s109 = scalar_lea.vmem [#allocation0], 72
    %v110 = vld [vmem:[%s109] sm:%s56]
    %s112 = ssub.s32 2, 1
    %s113 = scalar_lea.vmem %s1, 9
    %114 = vst [vmem:[%s113] sm:%s112] %v110
    %s115 = scalar_lea.vmem [#allocation0], 80
    %v116 = vld [vmem:[%s115] sm:%s56]
    %s118 = ssub.s32 2, 1
    %s119 = scalar_lea.vmem %s1, 10
    %120 = vst [vmem:[%s119] sm:%s118] %v116
    %s121 = scalar_lea.vmem [#allocation0], 88
    %v122 = vld [vmem:[%s121] sm:%s56]
    %s124 = ssub.s32 2, 1
    %s125 = scalar_lea.vmem %s1, 11
    %126 = vst [vmem:[%s125] sm:%s124] %v122
    %s127 = scalar_lea.vmem [#allocation0], 96
    %v128 = vld [vmem:[%s127] sm:%s56]
    %s130 = ssub.s32 2, 1
    %s131 = scalar_lea.vmem %s1, 12
    %132 = vst [vmem:[%s131] sm:%s130] %v128

// kernel: tile.18
$region0: #{tile.18}
  #allocation0 [shape = 's32[1]{0}', space=sflag, size = 0x4, scoped, tag = 'scoped memory for tile.18']
  %s0 = inlined_call_operand.vmem [shape: f32[64], index: 0, kind: input, shape index: {}]
  %s1 = inlined_call_operand.vmem [shape: f32[9,64], index: 1, kind: output, shape index: {}]
  // Predicated region
  $region2: #{tile.18} parent=0 // pred_check
    _
  $region3: #{tile.18} parent=0 // pred_check_branch
    %3 = sbr.rel (0) target = $region5
  $region4: #{tile.18} parent=0 // pred_region
    _
  $region5: #{tile.18} parent=0 // pred_fallthru
    _
  %v4 = vld [vmem:[%s0] ss:$0 sm:$0xff]
  %5 = vst [vmem:[%s1] sm:$0xff] %v4
  %s6 = scalar_lea.vmem %s1, 8
  %7 = vst [vmem:[%s6] sm:$0xff] %v4

// kernel: tile.19
$region0: #{tile.19}
  %s0 = inlined_call_operand.vmem [shape: f32[9,64], index: 0, kind: input, shape index: {}]
  %s1 = inlined_call_operand.vmem [shape: f32[1,576], index: 1, kind: output, shape index: {}]
  $region1: #{tile.19} parent=0
    #allocation0 [shape = 'u8[20480]{0}', space=vmem, size = 0x5000, scoped, tag = 'scoped mem for output reshape']
    %v2 = vld [vmem:[%s0] ss:$2 sm:$0x1f]
    %vm3 = vcmask 523264
    %4 = vst.msk [vmem:[#allocation0] ss:$8 sm:$0xf] %vm3, %v2
    %s5 = scalar_lea.vmem [#allocation0], 28
    %6 = vst.msk [vmem:[%s5] sm:$0x10] %vm3, %v2
    %s7 = scalar_lea.vmem %s0, 1
    %v8 = vld [vmem:[%s7] ss:$2 sm:$0xf]
    %9 = vrot.lane.b32.xlu0 %v8, 64
    %v10 = vpop.permute.xlu0 %9
    %vm11 = vcmask 1048064
    %12 = vst.msk [vmem:[#allocation0] ss:$8 sm:$0xf] %vm11, %v10
    %s14 = ssub.s32 2, 1
    %v15 = vld [vmem:[#allocation0] sm:%s14]
    %s17 = ssub.s32 2, 1
    %18 = vst [vmem:[%s1] sm:%s17] %v15
    %s19 = scalar_lea.vmem [#allocation0], 8
    %v20 = vld [vmem:[%s19] sm:%s14]
    %s22 = ssub.s32 2, 1
    %s23 = scalar_lea.vmem %s1, 1
    %24 = vst [vmem:[%s23] sm:%s22] %v20
    %s25 = scalar_lea.vmem [#allocation0], 16
    %v26 = vld [vmem:[%s25] sm:%s14]
    %s28 = ssub.s32 2, 1
    %s29 = scalar_lea.vmem %s1, 2
    %30 = vst [vmem:[%s29] sm:%s28] %v26
    %s31 = scalar_lea.vmem [#allocation0], 24
    %v32 = vld [vmem:[%s31] sm:%s14]
    %s34 = ssub.s32 2, 1
    %s35 = scalar_lea.vmem %s1, 3
    %36 = vst [vmem:[%s35] sm:%s34] %v32
    %s37 = scalar_lea.vmem [#allocation0], 32
    %v38 = vld [vmem:[%s37] sm:%s14]
    %s40 = ssub.s32 2, 1
    %s41 = scalar_lea.vmem %s1, 4
    %42 = vst [vmem:[%s41] sm:%s40] %v38

// kernel: cnn_model_forward.1
$region0: #{cnn_model_forward.1}
  #allocation0 [shape = 'u32[]', space=smem, size = 0x4, offset = 0x4, fixed_abs, tag = 'smem constant byte address 0x4 - core index']
  #allocation1 [shape = 'u32[72,128]{1,0:T(1,128)}', space=vmem, size = 0x9000, scoped, tag = 'internal scratch']
  %s0 = inlined_call_operand.vmem [shape: bf16[8,256], index: 0, kind: input, shape index: {}]
  %s1 = inlined_call_operand.vmem [shape: bf16[256,1568], index: 1, kind: input, shape index: {}]
  %s2 = inlined_call_operand.vmem [shape: f32[1,1568], index: 2, kind: input, shape index: {}]
  %s3 = inlined_call_operand.vmem [shape: bf16[1568,576], index: 3, kind: input, shape index: {}]
  %s4 = inlined_call_operand.vmem [shape: f32[1,576], index: 4, kind: input, shape index: {}]
  %s5 = inlined_call_operand.vmem [shape: bf16[576,128], index: 5, kind: input, shape index: {}]
  %s6 = inlined_call_operand.vmem [shape: f32[1,128], index: 6, kind: input, shape index: {}]
  %s7 = inlined_call_operand.vmem [shape: bf16[128,64], index: 7, kind: input, shape index: {}]
  %s8 = inlined_call_operand.vmem [shape: f32[1,64], index: 8, kind: input, shape index: {}]
  %s9 = inlined_call_operand.vmem [shape: bf16[64,128], index: 9, kind: input, shape index: {}]
  %s10 = inlined_call_operand.vmem [shape: f32[1,128], index: 10, kind: input, shape index: {}]
  %s11 = inlined_call_operand.vmem [shape: f32[8,128], index: 11, kind: output, shape index: {}]
  %s12 = sld [smem:[#allocation0]]
  $region54: #{cnn_model_forward.1} parent=0
    _
  %s14 = ssub.s32 1, %s12
  %s15 = scalar_select 0, %s14, %s12
  // Predicated region
  $region2: #{cnn_model_forward.1} parent=0 // pred_check
    _
  $region3: #{cnn_model_forward.1} parent=0 // pred_check_branch
    %17 = sbr.rel (0) target = $region5
  $region4: #{cnn_model_forward.1} parent=0 // pred_region
    _
  $region5: #{cnn_model_forward.1} parent=0 // pred_fallthru
    _
  // Predicated region
  $region6: #{cnn_model_forward.1} parent=0 // pred_check
    _
  $region7: #{cnn_model_forward.1} parent=0 // pred_check_branch
    %19 = sbr.rel (0) target = $region9
  $region8: #{cnn_model_forward.1} parent=0 // pred_region
    _
  $region9: #{cnn_model_forward.1} parent=0 // pred_fallthru
    _
  // Predicated region
  $region10: #{cnn_model_forward.1} parent=0 // pred_check
    _
  $region11: #{cnn_model_forward.1} parent=0 // pred_check_branch
    %21 = sbr.rel (0) target = $region13
  $region12: #{cnn_model_forward.1} parent=0 // pred_region
    _
  $region13: #{cnn_model_forward.1} parent=0 // pred_fallthru
    _
  // Predicated region
  $region14: #{cnn_model_forward.1} parent=0 // pred_check
    _
  $region15: #{cnn_model_forward.1} parent=0 // pred_check_branch
    %23 = sbr.rel (0) target = $region17
  $region16: #{cnn_model_forward.1} parent=0 // pred_region
    _
  $region17: #{cnn_model_forward.1} parent=0 // pred_fallthru
    _
  // Predicated region
  $region18: #{cnn_model_forward.1} parent=0 // pred_check
    _
  $region19: #{cnn_model_forward.1} parent=0 // pred_check_branch
    %25 = sbr.rel (0) target = $region21
  $region20: #{cnn_model_forward.1} parent=0 // pred_region
    _
  $region21: #{cnn_model_forward.1} parent=0 // pred_fallthru
    _
  // Predicated region
  $region22: #{cnn_model_forward.1} parent=0 // pred_check
    _
  $region23: #{cnn_model_forward.1} parent=0 // pred_check_branch
    %27 = sbr.rel (0) target = $region25
  $region24: #{cnn_model_forward.1} parent=0 // pred_region
    _
  $region25: #{cnn_model_forward.1} parent=0 // pred_fallthru
    _
  // Predicated region
  $region26: #{cnn_model_forward.1} parent=0 // pred_check
    _
  $region27: #{cnn_model_forward.1} parent=0 // pred_check_branch
    %29 = sbr.rel (0) target = $region29
  $region28: #{cnn_model_forward.1} parent=0 // pred_region
    _
  $region29: #{cnn_model_forward.1} parent=0 // pred_fallthru
    _
  // Predicated region
  $region30: #{cnn_model_forward.1} parent=0 // pred_check
    _
  $region31: #{cnn_model_forward.1} parent=0 // pred_check_branch
    %31 = sbr.rel (0) target = $region33
  $region32: #{cnn_model_forward.1} parent=0 // pred_region
    _
  $region33: #{cnn_model_forward.1} parent=0 // pred_fallthru
    _
  // Predicated region
  $region34: #{cnn_model_forward.1} parent=0 // pred_check
    _
  $region35: #{cnn_model_forward.1} parent=0 // pred_check_branch
    %33 = sbr.rel (0) target = $region37
  $region36: #{cnn_model_forward.1} parent=0 // pred_region
    _
  $region37: #{cnn_model_forward.1} parent=0 // pred_fallthru
    _
  // Predicated region
  $region38: #{cnn_model_forward.1} parent=0 // pred_check
    _
  $region39: #{cnn_model_forward.1} parent=0 // pred_check_branch
    %35 = sbr.rel (0) target = $region41
  $region40: #{cnn_model_forward.1} parent=0 // pred_region
    _
  $region41: #{cnn_model_forward.1} parent=0 // pred_fallthru
    _
  // Predicated region
  $region42: #{cnn_model_forward.1} parent=0 // pred_check
    _
  $region43: #{cnn_model_forward.1} parent=0 // pred_check_branch
    %37 = sbr.rel (0) target = $region45
  $region44: #{cnn_model_forward.1} parent=0 // pred_region
    _
  $region45: #{cnn_model_forward.1} parent=0 // pred_fallthru
    _
  %v39 = vld [vmem:[%s0] sm:$0xff]
  %v40 = vld [vmem:[%s1] sm:$0xff]
  %v41 = vld [vmem:[%s1 + $0x8] sm:$0xff]
  %v42 = vld [vmem:[%s1 + $0x10] sm:$0xff]
  %v43 = vld [vmem:[%s1 + $0x18] sm:$0xff]
  %v44 = vld [vmem:[%s1 + $0x20] sm:$0xff]
  %v45 = vld [vmem:[%s1 + $0x28] sm:$0xff]
  %v46 = vld [vmem:[%s1 + $0x30] sm:$0xf]
  %v47 = vld [vmem:[%s1 + $0x34] sm:$0xff]
  %v48 = vld [vmem:[%s1 + $0x3c] sm:$0xff]
  %v49 = vld [vmem:[%s1 + $0x44] sm:$0xff]
  %v50 = vld [vmem:[%s1 + $0x4c] sm:$0xff]
  %v51 = vld [vmem:[%s1 + $0x54] sm:$0xff]
  %v52 = vld [vmem:[%s1 + $0x5c] sm:$0xff]
  %v53 = vld [vmem:[%s1 + $0x64] sm:$0xf]
  %v54 = vld [vmem:[%s1 + $0x68] sm:$0xff]
  %v55 = vld [vmem:[%s1 + $0x70] sm:$0xff]
  %v56 = vld [vmem:[%s1 + $0x78] sm:$0xff]
  %v57 = vld [vmem:[%s1 + $0x80] sm:$0xff]
  %v58 = vld [vmem:[%s1 + $0x88] sm:$0xff]
  %v59 = vld [vmem:[%s1 + $0x90] sm:$0xff]
  %v60 = vld [vmem:[%s1 + $0x98] sm:$0xf]
  %v61 = vld [vmem:[%s1 + $0x9c] sm:$0xff]
  %v62 = vld [vmem:[%s1 + $0xa4] sm:$0xff]
  %v63 = vld [vmem:[%s1 + $0xac] sm:$0xff]
  %v64 = vld [vmem:[%s1 + $0xb4] sm:$0xff]
  %v65 = vld [vmem:[%s1 + $0xbc] sm:$0xff]
  %v66 = vld [vmem:[%s1 + $0xc4] sm:$0xff]
  %v67 = vld [vmem:[%s1 + $0xcc] sm:$0xf]
  %v68 = vld [vmem:[%s1 + $0xd0] sm:$0xff]
  %v69 = vld [vmem:[%s1 + $0xd8] sm:$0xff]
  %v70 = vld [vmem:[%s1 + $0xe0] sm:$0xff]
  %v71 = vld [vmem:[%s1 + $0xe8] sm:$0xff]
  %v72 = vld [vmem:[%s1 + $0xf0] sm:$0xff]
  %v73 = vld [vmem:[%s1 + $0xf8] sm:$0xff]
  %v74 = vld [vmem:[%s1 + $0x100] sm:$0xf]
  %v75 = vld [vmem:[%s1 + $0x104] sm:$0xff]
  %v76 = vld [vmem:[%s1 + $0x10c] sm:$0xff]
  %v77 = vld [vmem:[%s1 + $0x114] sm:$0xff]
  %v78 = vld [vmem:[%s1 + $0x11c] sm:$0xff]
  %v79 = vld [vmem:[%s1 + $0x124] sm:$0xff]
  %v80 = vld [vmem:[%s1 + $0x12c] sm:$0xff]
  %v81 = vld [vmem:[%s1 + $0x134] sm:$0xf]
  %v82 = vld [vmem:[%s1 + $0x138] sm:$0xff]
  %v83 = vld [vmem:[%s1 + $0x140] sm:$0xff]
  %v84 = vld [vmem:[%s1 + $0x148] sm:$0xff]
  %v85 = vld [vmem:[%s1 + $0x150] sm:$0xff]
  %v86 = vld [vmem:[%s1 + $0x158] sm:$0xff]
  %v87 = vld [vmem:[%s1 + $0x160] sm:$0xff]
  %v88 = vld [vmem:[%s1 + $0x168] sm:$0xf]
  %v89 = vld [vmem:[%s1 + $0x16c] sm:$0xff]
  %v90 = vld [vmem:[%s1 + $0x174] sm:$0xff]
  %v91 = vld [vmem:[%s1 + $0x17c] sm:$0xff]
  %v92 = vld [vmem:[%s1 + $0x184] sm:$0xff]
  %v93 = vld [vmem:[%s1 + $0x18c] sm:$0xff]
  %v94 = vld [vmem:[%s1 + $0x194] sm:$0xff]
  %v95 = vld [vmem:[%s1 + $0x19c] sm:$0xf]
  %v96 = vld [vmem:[%s1 + $0x1a0] sm:$0xff]
  %v97 = vld [vmem:[%s1 + $0x1a8] sm:$0xff]
  %v98 = vld [vmem:[%s1 + $0x1b0] sm:$0xff]
  %v99 = vld [vmem:[%s1 + $0x1b8] sm:$0xff]
  %v100 = vld [vmem:[%s1 + $0x1c0] sm:$0xff]
  %v101 = vld [vmem:[%s1 + $0x1c8] sm:$0xff]
  %v102 = vld [vmem:[%s1 + $0x1d0] sm:$0xf]
  %v103 = vld [vmem:[%s1 + $0x1d4] sm:$0xff]
  %v104 = vld [vmem:[%s1 + $0x1dc] sm:$0xff]
  %v105 = vld [vmem:[%s1 + $0x1e4] sm:$0xff]
  %v106 = vld [vmem:[%s1 + $0x1ec] sm:$0xff]
  %v107 = vld [vmem:[%s1 + $0x1f4] sm:$0xff]
  %v108 = vld [vmem:[%s1 + $0x1fc] sm:$0xff]
  %v109 = vld [vmem:[%s1 + $0x204] sm:$0xf]
  %v110 = vld [vmem:[%s1 + $0x208] sm:$0xff]
  %v111 = vld [vmem:[%s1 + $0x210] sm:$0xff]
  %v112 = vld [vmem:[%s1 + $0x218] sm:$0xff]
  %v113 = vld [vmem:[%s1 + $0x220] sm:$0xff]
  %v114 = vld [vmem:[%s1 + $0x228] sm:$0xff]
  %v115 = vld [vmem:[%s1 + $0x230] sm:$0xff]
  %v116 = vld [vmem:[%s1 + $0x238] sm:$0xf]
  %v117 = vld [vmem:[%s1 + $0x23c] sm:$0xff]
  %v118 = vld [vmem:[%s1 + $0x244] sm:$0xff]
  %v119 = vld [vmem:[%s1 + $0x24c] sm:$0xff]
  %v120 = vld [vmem:[%s1 + $0x254] sm:$0xff]
  %v121 = vld [vmem:[%s1 + $0x25c] sm:$0xff]
  %v122 = vld [vmem:[%s1 + $0x264] sm:$0xff]
  %v123 = vld [vmem:[%s1 + $0x26c] sm:$0xf]
  %v124 = vld [vmem:[%s1 + $0x270] sm:$0xff]
  %v125 = vld [vmem:[%s1 + $0x278] sm:$0xff]
  %v126 = vld [vmem:[%s1 + $0x280] sm:$0xff]
  %v127 = vld [vmem:[%s1 + $0x288] sm:$0xff]
  %v128 = vld [vmem:[%s1 + $0x290] sm:$0xff]
  %v129 = vld [vmem:[%s1 + $0x298] sm:$0xff]
  %v130 = vld [vmem:[%s1 + $0x2a0] sm:$0xf]
  %v131 = vld [vmem:[%s1 + $0x2a4] sm:$0xff]
  %v132 = vld [vmem:[%s1 + $0x2ac] sm:$0xff]
  %v133 = vld [vmem:[%s1 + $0x2b4] sm:$0xff]
  %v134 = vld [vmem:[%s1 + $0x2bc] sm:$0xff]
  %v135 = vld [vmem:[%s1 + $0x2c4] sm:$0xff]
  %v136 = vld [vmem:[%s1 + $0x2cc] sm:$0xff]
  %v137 = vld [vmem:[%s1 + $0x2d4] sm:$0xf]
  %v138 = vld [vmem:[%s1 + $0x2d8] sm:$0xff]
  %v139 = vld [vmem:[%s1 + $0x2e0] sm:$0xff]
  %v140 = vld [vmem:[%s1 + $0x2e8] sm:$0xff]
  %v141 = vld [vmem:[%s1 + $0x2f0] sm:$0xff]
  %v142 = vld [vmem:[%s1 + $0x2f8] sm:$0xff]
  %v143 = vld [vmem:[%s1 + $0x300] sm:$0xff]
  %v144 = vld [vmem:[%s1 + $0x308] sm:$0xf]
  %v145 = vld [vmem:[%s1 + $0x30c] sm:$0xff]
  %v146 = vld [vmem:[%s1 + $0x314] sm:$0xff]
  %v147 = vld [vmem:[%s1 + $0x31c] sm:$0xff]
  %v148 = vld [vmem:[%s1 + $0x324] sm:$0xff]
  %v149 = vld [vmem:[%s1 + $0x32c] sm:$0xff]
  %v150 = vld [vmem:[%s1 + $0x334] sm:$0xff]
  %v151 = vld [vmem:[%s1 + $0x33c] sm:$0xf]
  %v152 = vld [vmem:[%s1 + $0x340] sm:$0xff]
  %v153 = vld [vmem:[%s1 + $0x348] sm:$0xff]
  %v154 = vld [vmem:[%s1 + $0x350] sm:$0xff]
  %v155 = vld [vmem:[%s1 + $0x358] sm:$0xff]
  %v156 = vld [vmem:[%s1 + $0x360] sm:$0xff]
  %v157 = vld [vmem:[%s1 + $0x368] sm:$0xff]
  %v158 = vld [vmem:[%s1 + $0x370] sm:$0xf]
  %v159 = vld [vmem:[%s1 + $0x374] sm:$0xff]
  %v160 = vld [vmem:[%s1 + $0x37c] sm:$0xff]
  %v161 = vld [vmem:[%s1 + $0x384] sm:$0xff]
  %v162 = vld [vmem:[%s1 + $0x38c] sm:$0xff]
  %v163 = vld [vmem:[%s1 + $0x394] sm:$0xff]
  %v164 = vld [vmem:[%s1 + $0x39c] sm:$0xff]
  %v165 = vld [vmem:[%s1 + $0x3a4] sm:$0xf]
  %v166 = vld [vmem:[%s1 + $0x3a8] sm:$0xff]
  %v167 = vld [vmem:[%s1 + $0x3b0] sm:$0xff]
  %v168 = vld [vmem:[%s1 + $0x3b8] sm:$0xff]
  %v169 = vld [vmem:[%s1 + $0x3c0] sm:$0xff]
  %v170 = vld [vmem:[%s1 + $0x3c8] sm:$0xff]
  %v171 = vld [vmem:[%s1 + $0x3d0] sm:$0xff]
  %v172 = vld [vmem:[%s1 + $0x3d8] sm:$0xf]
  %v173 = vld [vmem:[%s1 + $0x3dc] sm:$0xff]
  %v174 = vld [vmem:[%s1 + $0x3e4] sm:$0xff]
  %v175 = vld [vmem:[%s1 + $0x3ec] sm:$0xff]
  %v176 = vld [vmem:[%s1 + $0x3f4] sm:$0xff]
  %v177 = vld [vmem:[%s1 + $0x3fc] sm:$0xff]
  %v178 = vld [vmem:[%s1 + $0x404] sm:$0xff]
  %v179 = vld [vmem:[%s1 + $0x40c] sm:$0xf]
  %v180 = vld [vmem:[%s1 + $0x410] sm:$0xff]
  %v181 = vld [vmem:[%s1 + $0x418] sm:$0xff]
  %v182 = vld [vmem:[%s1 + $0x420] sm:$0xff]
  %v183 = vld [vmem:[%s1 + $0x428] sm:$0xff]
  %v184 = vld [vmem:[%s1 + $0x430] sm:$0xff]
  %v185 = vld [vmem:[%s1 + $0x438] sm:$0xff]
  %v186 = vld [vmem:[%s1 + $0x440] sm:$0xf]
  %v187 = vld [vmem:[%s1 + $0x444] sm:$0xff]
  %v188 = vld [vmem:[%s1 + $0x44c] sm:$0xff]
  %v189 = vld [vmem:[%s1 + $0x454] sm:$0xff]
  %v190 = vld [vmem:[%s1 + $0x45c] sm:$0xff]
  %v191 = vld [vmem:[%s1 + $0x464] sm:$0xff]
  %v192 = vld [vmem:[%s1 + $0x46c] sm:$0xff]
  %v193 = vld [vmem:[%s1 + $0x474] sm:$0xf]
  %v194 = vld [vmem:[%s1 + $0x478] sm:$0xff]
  %v195 = vld [vmem:[%s1 + $0x480] sm:$0xff]
  %v196 = vld [vmem:[%s1 + $0x488] sm:$0xff]
  %v197 = vld [vmem:[%s1 + $0x490] sm:$0xff]
  %v198 = vld [vmem:[%s1 + $0x498] sm:$0xff]
  %v199 = vld [vmem:[%s1 + $0x4a0] sm:$0xff]
  %v200 = vld [vmem:[%s1 + $0x4a8] sm:$0xf]
  %v201 = vld [vmem:[%s1 + $0x4ac] sm:$0xff]
  %v202 = vld [vmem:[%s1 + $0x4b4] sm:$0xff]
  %v203 = vld [vmem:[%s1 + $0x4bc] sm:$0xff]
  %v204 = vld [vmem:[%s1 + $0x4c4] sm:$0xff]
  %v205 = vld [vmem:[%s1 + $0x4cc] sm:$0xff]
  %v206 = vld [vmem:[%s1 + $0x4d4] sm:$0xff]
  %v207 = vld [vmem:[%s1 + $0x4dc] sm:$0xf]
  %v208 = vld [vmem:[%s1 + $0x4e0] sm:$0xff]
  %v209 = vld [vmem:[%s1 + $0x4e8] sm:$0xff]
  %v210 = vld [vmem:[%s1 + $0x4f0] sm:$0xff]
  %v211 = vld [vmem:[%s1 + $0x4f8] sm:$0xff]
  %v212 = vld [vmem:[%s1 + $0x500] sm:$0xff]
  %v213 = vld [vmem:[%s1 + $0x508] sm:$0xff]
  %v214 = vld [vmem:[%s1 + $0x510] sm:$0xf]
  %v215 = vld [vmem:[%s1 + $0x514] sm:$0xff]
  %v216 = vld [vmem:[%s1 + $0x51c] sm:$0xff]
  %v217 = vld [vmem:[%s1 + $0x524] sm:$0xff]
  %v218 = vld [vmem:[%s1 + $0x52c] sm:$0xff]
  %v219 = vld [vmem:[%s1 + $0x534] sm:$0xff]
  %v220 = vld [vmem:[%s1 + $0x53c] sm:$0xff]
  %v221 = vld [vmem:[%s1 + $0x544] sm:$0xf]
  %v222 = vld [vmem:[%s1 + $0x548] sm:$0xff]
  %v223 = vld [vmem:[%s1 + $0x550] sm:$0xff]
  %v224 = vld [vmem:[%s1 + $0x558] sm:$0xff]
  %v225 = vld [vmem:[%s1 + $0x560] sm:$0xff]
  %v226 = vld [vmem:[%s1 + $0x568] sm:$0xff]
  %v227 = vld [vmem:[%s1 + $0x570] sm:$0xff]
  %v228 = vld [vmem:[%s1 + $0x578] sm:$0xf]
  %v229 = vld [vmem:[%s1 + $0x57c] sm:$0xff]
  %v230 = vld [vmem:[%s1 + $0x584] sm:$0xff]
  %v231 = vld [vmem:[%s1 + $0x58c] sm:$0xff]
  %v232 = vld [vmem:[%s1 + $0x594] sm:$0xff]
  %v233 = vld [vmem:[%s1 + $0x59c] sm:$0xff]
  %v234 = vld [vmem:[%s1 + $0x5a4] sm:$0xff]
  %v235 = vld [vmem:[%s1 + $0x5ac] sm:$0xf]
  %v236 = vld [vmem:[%s1 + $0x5b0] sm:$0xff]
  %v237 = vld [vmem:[%s1 + $0x5b8] sm:$0xff]
  %v238 = vld [vmem:[%s1 + $0x5c0] sm:$0xff]
  %v239 = vld [vmem:[%s1 + $0x5c8] sm:$0xff]
  %v240 = vld [vmem:[%s1 + $0x5d0] sm:$0xff]
  %v241 = vld [vmem:[%s1 + $0x5d8] sm:$0xff]
  %v242 = vld [vmem:[%s1 + $0x5e0] sm:$0xf]
  %v243 = vld [vmem:[%s1 + $0x5e4] sm:$0xff]
  %v244 = vld [vmem:[%s1 + $0x5ec] sm:$0xff]
  %v245 = vld [vmem:[%s1 + $0x5f4] sm:$0xff]
  %v246 = vld [vmem:[%s1 + $0x5fc] sm:$0xff]
  %v247 = vld [vmem:[%s1 + $0x604] sm:$0xff]
  %v248 = vld [vmem:[%s1 + $0x60c] sm:$0xff]
  %v249 = vld [vmem:[%s1 + $0x614] sm:$0xf]
  %v250 = vld [vmem:[%s1 + $0x618] sm:$0xff]
  %v251 = vld [vmem:[%s1 + $0x620] sm:$0xff]
  %v252 = vld [vmem:[%s1 + $0x628] sm:$0xff]
  %v253 = vld [vmem:[%s1 + $0x630] sm:$0xff]
  %v254 = vld [vmem:[%s1 + $0x638] sm:$0xff]
  %v255 = vld [vmem:[%s1 + $0x640] sm:$0xff]
  %v256 = vld [vmem:[%s1 + $0x648] sm:$0xf]
  %v257 = vld [vmem:[%s1 + $0x64c] sm:$0xff]
  %v258 = vld [vmem:[%s1 + $0x654] sm:$0xff]
  %v259 = vld [vmem:[%s1 + $0x65c] sm:$0xff]
  %v260 = vld [vmem:[%s1 + $0x664] sm:$0xff]
  %v261 = vld [vmem:[%s1 + $0x66c] sm:$0xff]
  %v262 = vld [vmem:[%s1 + $0x674] sm:$0xff]
  %v263 = vld [vmem:[%s1 + $0x67c] sm:$0xf]
  %v264 = vld [vmem:[%s2] sm:$0xff]
  %v265 = vld [vmem:[%s2 + $0x8] sm:$0x1f]
  %v268 = vperm.slane %v264, 0
  %v269 = vperm.slane %v264, 1
  %v270 = vperm.slane %v264, 2
  %v271 = vperm.slane %v264, 3
  %v272 = vperm.slane %v264, 4
  %v273 = vperm.slane %v264, 5
  %v274 = vperm.slane %v264, 6
  %v275 = vperm.slane %v264, 7
  %v276 = vperm.slane %v265, 0
  %v277 = vperm.slane %v265, 1
  %v278 = vperm.slane %v265, 2
  %v279 = vperm.slane %v265, 3
  %v280 = vperm.slane %v265, 4
  %v295 = vunpack.c.l.b16 %v39
  %v296 = vunpack.c.h.b16 %v39
  %v297 = vpack.c.b16 %v295, %v295
  %v298 = vpack.c.b16 %v296, %v296
  %v525 = vunpack.c.l.b16 %v40
  %v526 = vunpack.c.h.b16 %v40
  %v527 = vunpack.c.l.b16 %v41
  %v528 = vunpack.c.h.b16 %v41
  %v529 = vunpack.c.l.b16 %v42
  %v530 = vunpack.c.h.b16 %v42
  %v531 = vunpack.c.l.b16 %v43
  %v532 = vunpack.c.h.b16 %v43
  %v533 = vunpack.c.l.b16 %v44
  %v534 = vunpack.c.h.b16 %v44
  %v535 = vunpack.c.l.b16 %v45
  %v536 = vunpack.c.h.b16 %v45
  %v537 = vunpack.c.l.b16 %v46
  %v538 = vunpack.c.l.b16 %v47
  %v539 = vunpack.c.h.b16 %v47
  %v540 = vunpack.c.l.b16 %v48
  %v541 = vunpack.c.h.b16 %v48
  %v542 = vunpack.c.l.b16 %v49
  %v543 = vunpack.c.h.b16 %v49
  %v544 = vunpack.c.l.b16 %v50
  %v545 = vunpack.c.h.b16 %v50
  %v546 = vunpack.c.l.b16 %v51
  %v547 = vunpack.c.h.b16 %v51
  %v548 = vunpack.c.l.b16 %v52
  %v549 = vunpack.c.h.b16 %v52
  %v550 = vunpack.c.l.b16 %v53
  %v551 = vunpack.c.l.b16 %v54
  %v552 = vunpack.c.h.b16 %v54
  %v553 = vunpack.c.l.b16 %v55
  %v554 = vunpack.c.h.b16 %v55
  %v555 = vunpack.c.l.b16 %v56
  %v556 = vunpack.c.h.b16 %v56
  %v557 = vunpack.c.l.b16 %v57
  %v558 = vunpack.c.h.b16 %v57
  %v559 = vunpack.c.l.b16 %v58
  %v560 = vunpack.c.h.b16 %v58
  %v561 = vunpack.c.l.b16 %v59
  %v562 = vunpack.c.h.b16 %v59
  %v563 = vunpack.c.l.b16 %v60
  %v564 = vunpack.c.l.b16 %v61
  %v565 = vunpack.c.h.b16 %v61
  %v566 = vunpack.c.l.b16 %v62
  %v567 = vunpack.c.h.b16 %v62
  %v568 = vunpack.c.l.b16 %v63
  %v569 = vunpack.c.h.b16 %v63
  %v570 = vunpack.c.l.b16 %v64
  %v571 = vunpack.c.h.b16 %v64
  %v572 = vunpack.c.l.b16 %v65
  %v573 = vunpack.c.h.b16 %v65
  %v574 = vunpack.c.l.b16 %v66
  %v575 = vunpack.c.h.b16 %v66
  %v576 = vunpack.c.l.b16 %v67
  %v577 = vunpack.c.l.b16 %v68
  %v578 = vunpack.c.h.b16 %v68
  %v579 = vunpack.c.l.b16 %v69
  %v580 = vunpack.c.h.b16 %v69
  %v581 = vunpack.c.l.b16 %v70
  %v582 = vunpack.c.h.b16 %v70
  %v583 = vunpack.c.l.b16 %v71
  %v584 = vunpack.c.h.b16 %v71
  %v585 = vunpack.c.l.b16 %v72
  %v586 = vunpack.c.h.b16 %v72
  %v587 = vunpack.c.l.b16 %v73
  %v588 = vunpack.c.h.b16 %v73
  %v589 = vunpack.c.l.b16 %v74
  %v590 = vunpack.c.l.b16 %v75
  %v591 = vunpack.c.h.b16 %v75
  %v592 = vunpack.c.l.b16 %v76
  %v593 = vunpack.c.h.b16 %v76
  %v594 = vunpack.c.l.b16 %v77
  %v595 = vunpack.c.h.b16 %v77
  %v596 = vunpack.c.l.b16 %v78
  %v597 = vunpack.c.h.b16 %v78
  %v598 = vunpack.c.l.b16 %v79
  %v599 = vunpack.c.h.b16 %v79
  %v600 = vunpack.c.l.b16 %v80
  %v601 = vunpack.c.h.b16 %v80
  %v602 = vunpack.c.l.b16 %v81
  %v603 = vunpack.c.l.b16 %v82
  %v604 = vunpack.c.h.b16 %v82
  %v605 = vunpack.c.l.b16 %v83
  %v606 = vunpack.c.h.b16 %v83
  %v607 = vunpack.c.l.b16 %v84
  %v608 = vunpack.c.h.b16 %v84
  %v609 = vunpack.c.l.b16 %v85
  %v610 = vunpack.c.h.b16 %v85
  %v611 = vunpack.c.l.b16 %v86
  %v612 = vunpack.c.h.b16 %v86
  %v613 = vunpack.c.l.b16 %v87
  %v614 = vunpack.c.h.b16 %v87
  %v615 = vunpack.c.l.b16 %v88
  %v616 = vunpack.c.l.b16 %v89
  %v617 = vunpack.c.h.b16 %v89
  %v618 = vunpack.c.l.b16 %v90
  %v619 = vunpack.c.h.b16 %v90
  %v620 = vunpack.c.l.b16 %v91
  %v621 = vunpack.c.h.b16 %v91
  %v622 = vunpack.c.l.b16 %v92
  %v623 = vunpack.c.h.b16 %v92
  %v624 = vunpack.c.l.b16 %v93
  %v625 = vunpack.c.h.b16 %v93
  %v626 = vunpack.c.l.b16 %v94
  %v627 = vunpack.c.h.b16 %v94
  %v628 = vunpack.c.l.b16 %v95
  %v629 = vunpack.c.l.b16 %v96
  %v630 = vunpack.c.h.b16 %v96
  %v631 = vunpack.c.l.b16 %v97
  %v632 = vunpack.c.h.b16 %v97
  %v633 = vunpack.c.l.b16 %v98
  %v634 = vunpack.c.h.b16 %v98
  %v635 = vunpack.c.l.b16 %v99
  %v636 = vunpack.c.h.b16 %v99
  %v637 = vunpack.c.l.b16 %v100
  %v638 = vunpack.c.h.b16 %v100
  %v639 = vunpack.c.l.b16 %v101
  %v640 = vunpack.c.h.b16 %v101
  %v641 = vunpack.c.l.b16 %v102
  %v642 = vunpack.c.l.b16 %v103
  %v643 = vunpack.c.h.b16 %v103
  %v644 = vunpack.c.l.b16 %v104
  %v645 = vunpack.c.h.b16 %v104
  %v646 = vunpack.c.l.b16 %v105
  %v647 = vunpack.c.h.b16 %v105
  %v648 = vunpack.c.l.b16 %v106
  %v649 = vunpack.c.h.b16 %v106
  %v650 = vunpack.c.l.b16 %v107
  %v651 = vunpack.c.h.b16 %v107
  %v652 = vunpack.c.l.b16 %v108
  %v653 = vunpack.c.h.b16 %v108
  %v654 = vunpack.c.l.b16 %v109
  %v655 = vunpack.c.l.b16 %v110
  %v656 = vunpack.c.h.b16 %v110
  %v657 = vunpack.c.l.b16 %v111
  %v658 = vunpack.c.h.b16 %v111
  %v659 = vunpack.c.l.b16 %v112
  %v660 = vunpack.c.h.b16 %v112
  %v661 = vunpack.c.l.b16 %v113
  %v662 = vunpack.c.h.b16 %v113
  %v663 = vunpack.c.l.b16 %v114
  %v664 = vunpack.c.h.b16 %v114
  %v665 = vunpack.c.l.b16 %v115
  %v666 = vunpack.c.h.b16 %v115
  %v667 = vunpack.c.l.b16 %v116
  %v668 = vunpack.c.l.b16 %v117
  %v669 = vunpack.c.h.b16 %v117
  %v670 = vunpack.c.l.b16 %v118
  %v671 = vunpack.c.h.b16 %v118
  %v672 = vunpack.c.l.b16 %v119
  %v673 = vunpack.c.h.b16 %v119
  %v674 = vunpack.c.l.b16 %v120
  %v675 = vunpack.c.h.b16 %v120
  %v676 = vunpack.c.l.b16 %v121
  %v677 = vunpack.c.h.b16 %v121
  %v678 = vunpack.c.l.b16 %v122
  %v679 = vunpack.c.h.b16 %v122
  %v680 = vunpack.c.l.b16 %v123
  %v681 = vunpack.c.l.b16 %v124
  %v682 = vunpack.c.h.b16 %v124
  %v683 = vunpack.c.l.b16 %v125
  %v684 = vunpack.c.h.b16 %v125
  %v685 = vunpack.c.l.b16 %v126
  %v686 = vunpack.c.h.b16 %v126
  %v687 = vunpack.c.l.b16 %v127
  %v688 = vunpack.c.h.b16 %v127
  %v689 = vunpack.c.l.b16 %v128
  %v690 = vunpack.c.h.b16 %v128
  %v691 = vunpack.c.l.b16 %v129
  %v692 = vunpack.c.h.b16 %v129
  %v693 = vunpack.c.l.b16 %v130
  %v694 = vunpack.c.l.b16 %v131
  %v695 = vunpack.c.h.b16 %v131
  %v696 = vunpack.c.l.b16 %v132
  %v697 = vunpack.c.h.b16 %v132
  %v698 = vunpack.c.l.b16 %v133
  %v699 = vunpack.c.h.b16 %v133
  %v700 = vunpack.c.l.b16 %v134
  %v701 = vunpack.c.h.b16 %v134
  %v702 = vunpack.c.l.b16 %v135
  %v703 = vunpack.c.h.b16 %v135
  %v704 = vunpack.c.l.b16 %v136
  %v705 = vunpack.c.h.b16 %v136
  %v706 = vunpack.c.l.b16 %v137
  %v707 = vunpack.c.l.b16 %v138
  %v708 = vunpack.c.h.b16 %v138
  %v709 = vunpack.c.l.b16 %v139
  %v710 = vunpack.c.h.b16 %v139
  %v711 = vunpack.c.l.b16 %v140
  %v712 = vunpack.c.h.b16 %v140
  %v713 = vunpack.c.l.b16 %v141
  %v714 = vunpack.c.h.b16 %v141
  %v715 = vunpack.c.l.b16 %v142
  %v716 = vunpack.c.h.b16 %v142
  %v717 = vunpack.c.l.b16 %v143
  %v718 = vunpack.c.h.b16 %v143
  %v719 = vunpack.c.l.b16 %v144
  %v720 = vunpack.c.l.b16 %v145
  %v721 = vunpack.c.h.b16 %v145
  %v722 = vunpack.c.l.b16 %v146
  %v723 = vunpack.c.h.b16 %v146
  %v724 = vunpack.c.l.b16 %v147
  %v725 = vunpack.c.h.b16 %v147
  %v726 = vunpack.c.l.b16 %v148
  %v727 = vunpack.c.h.b16 %v148
  %v728 = vunpack.c.l.b16 %v149
  %v729 = vunpack.c.h.b16 %v149
  %v730 = vunpack.c.l.b16 %v150
  %v731 = vunpack.c.h.b16 %v150
  %v732 = vunpack.c.l.b16 %v151
  %v733 = vunpack.c.l.b16 %v152
  %v734 = vunpack.c.h.b16 %v152
  %v735 = vunpack.c.l.b16 %v153
  %v736 = vunpack.c.h.b16 %v153
  %v737 = vunpack.c.l.b16 %v154
  %v738 = vunpack.c.h.b16 %v154
  %v739 = vunpack.c.l.b16 %v155
  %v740 = vunpack.c.h.b16 %v155
  %v741 = vunpack.c.l.b16 %v156
  %v742 = vunpack.c.h.b16 %v156
  %v743 = vunpack.c.l.b16 %v157
  %v744 = vunpack.c.h.b16 %v157
  %v745 = vunpack.c.l.b16 %v158
  %v746 = vunpack.c.l.b16 %v159
  %v747 = vunpack.c.h.b16 %v159
  %v748 = vunpack.c.l.b16 %v160
  %v749 = vunpack.c.h.b16 %v160
  %v750 = vunpack.c.l.b16 %v161
  %v751 = vunpack.c.h.b16 %v161
  %v752 = vunpack.c.l.b16 %v162
  %v753 = vunpack.c.h.b16 %v162
  %v754 = vunpack.c.l.b16 %v163
  %v755 = vunpack.c.h.b16 %v163
  %v756 = vunpack.c.l.b16 %v164
  %v757 = vunpack.c.h.b16 %v164
  %v758 = vunpack.c.l.b16 %v165
  %v759 = vunpack.c.l.b16 %v166
  %v760 = vunpack.c.h.b16 %v166
  %v761 = vunpack.c.l.b16 %v167
  %v762 = vunpack.c.h.b16 %v167
  %v763 = vunpack.c.l.b16 %v168
  %v764 = vunpack.c.h.b16 %v168
  %v765 = vunpack.c.l.b16 %v169
  %v766 = vunpack.c.h.b16 %v169
  %v767 = vunpack.c.l.b16 %v170
  %v768 = vunpack.c.h.b16 %v170
  %v769 = vunpack.c.l.b16 %v171
  %v770 = vunpack.c.h.b16 %v171
  %v771 = vunpack.c.l.b16 %v172
  %v772 = vunpack.c.l.b16 %v173
  %v773 = vunpack.c.h.b16 %v173
  %v774 = vunpack.c.l.b16 %v174
  %v775 = vunpack.c.h.b16 %v174
  %v776 = vunpack.c.l.b16 %v175
  %v777 = vunpack.c.h.b16 %v175
  %v778 = vunpack.c.l.b16 %v176
  %v779 = vunpack.c.h.b16 %v176
  %v780 = vunpack.c.l.b16 %v177
  %v781 = vunpack.c.h.b16 %v177
  %v782 = vunpack.c.l.b16 %v178
  %v783 = vunpack.c.h.b16 %v178
  %v784 = vunpack.c.l.b16 %v179
  %v785 = vunpack.c.l.b16 %v180
  %v786 = vunpack.c.h.b16 %v180
  %v787 = vunpack.c.l.b16 %v181
  %v788 = vunpack.c.h.b16 %v181
  %v789 = vunpack.c.l.b16 %v182
  %v790 = vunpack.c.h.b16 %v182
  %v791 = vunpack.c.l.b16 %v183
  %v792 = vunpack.c.h.b16 %v183
  %v793 = vunpack.c.l.b16 %v184
  %v794 = vunpack.c.h.b16 %v184
  %v795 = vunpack.c.l.b16 %v185
  %v796 = vunpack.c.h.b16 %v185
  %v797 = vunpack.c.l.b16 %v186
  %v798 = vunpack.c.l.b16 %v187
  %v799 = vunpack.c.h.b16 %v187
  %v800 = vunpack.c.l.b16 %v188
  %v801 = vunpack.c.h.b16 %v188
  %v802 = vunpack.c.l.b16 %v189
  %v803 = vunpack.c.h.b16 %v189
  %v804 = vunpack.c.l.b16 %v190
  %v805 = vunpack.c.h.b16 %v190
  %v806 = vunpack.c.l.b16 %v191
  %v807 = vunpack.c.h.b16 %v191
  %v808 = vunpack.c.l.b16 %v192
  %v809 = vunpack.c.h.b16 %v192
  %v810 = vunpack.c.l.b16 %v193
  %v811 = vunpack.c.l.b16 %v194
  %v812 = vunpack.c.h.b16 %v194
  %v813 = vunpack.c.l.b16 %v195
  %v814 = vunpack.c.h.b16 %v195
  %v815 = vunpack.c.l.b16 %v196
  %v816 = vunpack.c.h.b16 %v196
  %v817 = vunpack.c.l.b16 %v197
  %v818 = vunpack.c.h.b16 %v197
  %v819 = vunpack.c.l.b16 %v198
  %v820 = vunpack.c.h.b16 %v198
  %v821 = vunpack.c.l.b16 %v199
  %v822 = vunpack.c.h.b16 %v199
  %v823 = vunpack.c.l.b16 %v200
  %v824 = vunpack.c.l.b16 %v201
  %v825 = vunpack.c.h.b16 %v201
  %v826 = vunpack.c.l.b16 %v202
  %v827 = vunpack.c.h.b16 %v202
  %v828 = vunpack.c.l.b16 %v203
  %v829 = vunpack.c.h.b16 %v203
  %v830 = vunpack.c.l.b16 %v204
  %v831 = vunpack.c.h.b16 %v204
  %v832 = vunpack.c.l.b16 %v205
  %v833 = vunpack.c.h.b16 %v205
  %v834 = vunpack.c.l.b16 %v206
  %v835 = vunpack.c.h.b16 %v206
  %v836 = vunpack.c.l.b16 %v207
  %v837 = vunpack.c.l.b16 %v208
  %v838 = vunpack.c.h.b16 %v208
  %v839 = vunpack.c.l.b16 %v209
  %v840 = vunpack.c.h.b16 %v209
  %v841 = vunpack.c.l.b16 %v210
  %v842 = vunpack.c.h.b16 %v210
  %v843 = vunpack.c.l.b16 %v211
  %v844 = vunpack.c.h.b16 %v211
  %v845 = vunpack.c.l.b16 %v212
  %v846 = vunpack.c.h.b16 %v212
  %v847 = vunpack.c.l.b16 %v213
  %v848 = vunpack.c.h.b16 %v213
  %v849 = vunpack.c.l.b16 %v214
  %v850 = vunpack.c.l.b16 %v215
  %v851 = vunpack.c.h.b16 %v215
  %v852 = vunpack.c.l.b16 %v216
  %v853 = vunpack.c.h.b16 %v216
  %v854 = vunpack.c.l.b16 %v217
  %v855 = vunpack.c.h.b16 %v217
  %v856 = vunpack.c.l.b16 %v218
  %v857 = vunpack.c.h.b16 %v218
  %v858 = vunpack.c.l.b16 %v219
  %v859 = vunpack.c.h.b16 %v219
  %v860 = vunpack.c.l.b16 %v220
  %v861 = vunpack.c.h.b16 %v220
  %v862 = vunpack.c.l.b16 %v221
  %v863 = vunpack.c.l.b16 %v222
  %v864 = vunpack.c.h.b16 %v222
  %v865 = vunpack.c.l.b16 %v223
  %v866 = vunpack.c.h.b16 %v223
  %v867 = vunpack.c.l.b16 %v224
  %v868 = vunpack.c.h.b16 %v224
  %v869 = vunpack.c.l.b16 %v225
  %v870 = vunpack.c.h.b16 %v225
  %v871 = vunpack.c.l.b16 %v226
  %v872 = vunpack.c.h.b16 %v226
  %v873 = vunpack.c.l.b16 %v227
  %v874 = vunpack.c.h.b16 %v227
  %v875 = vunpack.c.l.b16 %v228
  %v876 = vunpack.c.l.b16 %v229
  %v877 = vunpack.c.h.b16 %v229
  %v878 = vunpack.c.l.b16 %v230
  %v879 = vunpack.c.h.b16 %v230
  %v880 = vunpack.c.l.b16 %v231
  %v881 = vunpack.c.h.b16 %v231
  %v882 = vunpack.c.l.b16 %v232
  %v883 = vunpack.c.h.b16 %v232
  %v884 = vunpack.c.l.b16 %v233
  %v885 = vunpack.c.h.b16 %v233
  %v886 = vunpack.c.l.b16 %v234
  %v887 = vunpack.c.h.b16 %v234
  %v888 = vunpack.c.l.b16 %v235
  %v889 = vunpack.c.l.b16 %v236
  %v890 = vunpack.c.h.b16 %v236
  %v891 = vunpack.c.l.b16 %v237
  %v892 = vunpack.c.h.b16 %v237
  %v893 = vunpack.c.l.b16 %v238
  %v894 = vunpack.c.h.b16 %v238
  %v895 = vunpack.c.l.b16 %v239
  %v896 = vunpack.c.h.b16 %v239
  %v897 = vunpack.c.l.b16 %v240
  %v898 = vunpack.c.h.b16 %v240
  %v899 = vunpack.c.l.b16 %v241
  %v900 = vunpack.c.h.b16 %v241
  %v901 = vunpack.c.l.b16 %v242
  %v902 = vunpack.c.l.b16 %v243
  %v903 = vunpack.c.h.b16 %v243
  %v904 = vunpack.c.l.b16 %v244
  %v905 = vunpack.c.h.b16 %v244
  %v906 = vunpack.c.l.b16 %v245
  %v907 = vunpack.c.h.b16 %v245
  %v908 = vunpack.c.l.b16 %v246
  %v909 = vunpack.c.h.b16 %v246
  %v910 = vunpack.c.l.b16 %v247
  %v911 = vunpack.c.h.b16 %v247
  %v912 = vunpack.c.l.b16 %v248
  %v913 = vunpack.c.h.b16 %v248
  %v914 = vunpack.c.l.b16 %v249
  %v915 = vunpack.c.l.b16 %v250
  %v916 = vunpack.c.h.b16 %v250
  %v917 = vunpack.c.l.b16 %v251
  %v918 = vunpack.c.h.b16 %v251
  %v919 = vunpack.c.l.b16 %v252
  %v920 = vunpack.c.h.b16 %v252
  %v921 = vunpack.c.l.b16 %v253
  %v922 = vunpack.c.h.b16 %v253
  %v923 = vunpack.c.l.b16 %v254
  %v924 = vunpack.c.h.b16 %v254
  %v925 = vunpack.c.l.b16 %v255
  %v926 = vunpack.c.h.b16 %v255
  %v927 = vunpack.c.l.b16 %v256
  %v928 = vunpack.c.l.b16 %v257
  %v929 = vunpack.c.h.b16 %v257
  %v930 = vunpack.c.l.b16 %v258
  %v931 = vunpack.c.h.b16 %v258
  %v932 = vunpack.c.l.b16 %v259
  %v933 = vunpack.c.h.b16 %v259
  %v934 = vunpack.c.l.b16 %v260
  %v935 = vunpack.c.h.b16 %v260
  %v936 = vunpack.c.l.b16 %v261
  %v937 = vunpack.c.h.b16 %v261
  %v938 = vunpack.c.l.b16 %v262
  %v939 = vunpack.c.h.b16 %v262
  %v940 = vunpack.c.l.b16 %v263
  %v941 = vpack.c.b16 %v538, %v525
  %v942 = vpack.c.b16 %v539, %v526
  %v943 = vpack.c.b16 %v540, %v527
  %v944 = vpack.c.b16 %v541, %v528
  %v945 = vpack.c.b16 %v542, %v529
  %v946 = vpack.c.b16 %v543, %v530
  %v947 = vpack.c.b16 %v544, %v531
  %v948 = vpack.c.b16 %v545, %v532
  %v949 = vpack.c.b16 %v546, %v533
  %v950 = vpack.c.b16 %v547, %v534
  %v951 = vpack.c.b16 %v548, %v535
  %v952 = vpack.c.b16 %v549, %v536
  %v953 = vpack.c.b16 %v550, %v537
  %v954 = vpack.c.b16 %v564, %v551
  %v955 = vpack.c.b16 %v565, %v552
  %v956 = vpack.c.b16 %v566, %v553
  %v957 = vpack.c.b16 %v567, %v554
  %v958 = vpack.c.b16 %v568, %v555
  %v959 = vpack.c.b16 %v569, %v556
  %v960 = vpack.c.b16 %v570, %v557
  %v961 = vpack.c.b16 %v571, %v558
  %v962 = vpack.c.b16 %v572, %v559
  %v963 = vpack.c.b16 %v573, %v560
  %v964 = vpack.c.b16 %v574, %v561
  %v965 = vpack.c.b16 %v575, %v562
  %v966 = vpack.c.b16 %v576, %v563
  %v967 = vpack.c.b16 %v590, %v577
  %v968 = vpack.c.b16 %v591, %v578
  %v969 = vpack.c.b16 %v592, %v579
  %v970 = vpack.c.b16 %v593, %v580
  %v971 = vpack.c.b16 %v594, %v581
  %v972 = vpack.c.b16 %v595, %v582
  %v973 = vpack.c.b16 %v596, %v583
  %v974 = vpack.c.b16 %v597, %v584
  %v975 = vpack.c.b16 %v598, %v585
  %v976 = vpack.c.b16 %v599, %v586
  %v977 = vpack.c.b16 %v600, %v587
  %v978 = vpack.c.b16 %v601, %v588
  %v979 = vpack.c.b16 %v602, %v589
  %v980 = vpack.c.b16 %v616, %v603
  %v981 = vpack.c.b16 %v617, %v604
  %v982 = vpack.c.b16 %v618, %v605
  %v983 = vpack.c.b16 %v619, %v606
  %v984 = vpack.c.b16 %v620, %v607
  %v985 = vpack.c.b16 %v621, %v608
  %v986 = vpack.c.b16 %v622, %v609
  %v987 = vpack.c.b16 %v623, %v610
  %v988 = vpack.c.b16 %v624, %v611
  %v989 = vpack.c.b16 %v625, %v612
  %v990 = vpack.c.b16 %v626, %v613
  %v991 = vpack.c.b16 %v627, %v614
  %v992 = vpack.c.b16 %v628, %v615
  %v993 = vpack.c.b16 %v642, %v629
  %v994 = vpack.c.b16 %v643, %v630
  %v995 = vpack.c.b16 %v644, %v631
  %v996 = vpack.c.b16 %v645, %v632
  %v997 = vpack.c.b16 %v646, %v633
  %v998 = vpack.c.b16 %v647, %v634
  %v999 = vpack.c.b16 %v648, %v635
  %v1000 = vpack.c.b16 %v649, %v636
  %v1001 = vpack.c.b16 %v650, %v637
  %v1002 = vpack.c.b16 %v651, %v638
  %v1003 = vpack.c.b16 %v652, %v639
  %v1004 = vpack.c.b16 %v653, %v640
  %v1005 = vpack.c.b16 %v654, %v641
  %v1006 = vpack.c.b16 %v668, %v655
  %v1007 = vpack.c.b16 %v669, %v656
  %v1008 = vpack.c.b16 %v670, %v657
  %v1009 = vpack.c.b16 %v671, %v658
  %v1010 = vpack.c.b16 %v672, %v659
  %v1011 = vpack.c.b16 %v673, %v660
  %v1012 = vpack.c.b16 %v674, %v661
  %v1013 = vpack.c.b16 %v675, %v662
  %v1014 = vpack.c.b16 %v676, %v663
  %v1015 = vpack.c.b16 %v677, %v664
  %v1016 = vpack.c.b16 %v678, %v665
  %v1017 = vpack.c.b16 %v679, %v666
  %v1018 = vpack.c.b16 %v680, %v667
  %v1019 = vpack.c.b16 %v694, %v681
  %v1020 = vpack.c.b16 %v695, %v682
  %v1021 = vpack.c.b16 %v696, %v683
  %v1022 = vpack.c.b16 %v697, %v684
  %v1023 = vpack.c.b16 %v698, %v685
  %v1024 = vpack.c.b16 %v699, %v686
  %v1025 = vpack.c.b16 %v700, %v687
  %v1026 = vpack.c.b16 %v701, %v688
  %v1027 = vpack.c.b16 %v702, %v689
  %v1028 = vpack.c.b16 %v703, %v690
  %v1029 = vpack.c.b16 %v704, %v691
  %v1030 = vpack.c.b16 %v705, %v692
  %v1031 = vpack.c.b16 %v706, %v693
  %v1032 = vpack.c.b16 %v720, %v707
  %v1033 = vpack.c.b16 %v721, %v708
  %v1034 = vpack.c.b16 %v722, %v709
  %v1035 = vpack.c.b16 %v723, %v710
  %v1036 = vpack.c.b16 %v724, %v711
  %v1037 = vpack.c.b16 %v725, %v712
  %v1038 = vpack.c.b16 %v726, %v713
  %v1039 = vpack.c.b16 %v727, %v714
  %v1040 = vpack.c.b16 %v728, %v715
  %v1041 = vpack.c.b16 %v729, %v716
  %v1042 = vpack.c.b16 %v730, %v717
  %v1043 = vpack.c.b16 %v731, %v718
  %v1044 = vpack.c.b16 %v732, %v719
  %v1045 = vpack.c.b16 %v746, %v733
  %v1046 = vpack.c.b16 %v747, %v734
  %v1047 = vpack.c.b16 %v748, %v735
  %v1048 = vpack.c.b16 %v749, %v736
  %v1049 = vpack.c.b16 %v750, %v737
  %v1050 = vpack.c.b16 %v751, %v738
  %v1051 = vpack.c.b16 %v752, %v739
  %v1052 = vpack.c.b16 %v753, %v740
  %v1053 = vpack.c.b16 %v754, %v741
  %v1054 = vpack.c.b16 %v755, %v742
  %v1055 = vpack.c.b16 %v756, %v743
  %v1056 = vpack.c.b16 %v757, %v744
  %v1057 = vpack.c.b16 %v758, %v745
  %v1058 = vpack.c.b16 %v772, %v759
  %v1059 = vpack.c.b16 %v773, %v760
  %v1060 = vpack.c.b16 %v774, %v761
  %v1061 = vpack.c.b16 %v775, %v762
  %v1062 = vpack.c.b16 %v776, %v763
  %v1063 = vpack.c.b16 %v777, %v764
  %v1064 = vpack.c.b16 %v778, %v765
  %v1065 = vpack.c.b16 %v779, %v766
  %v1066 = vpack.c.b16 %v780, %v767
  %v1067 = vpack.c.b16 %v781, %v768
  %v1068 = vpack.c.b16 %v782, %v769
  %v1069 = vpack.c.b16 %v783, %v770
  %v1070 = vpack.c.b16 %v784, %v771
  %v1071 = vpack.c.b16 %v798, %v785
  %v1072 = vpack.c.b16 %v799, %v786
  %v1073 = vpack.c.b16 %v800, %v787
  %v1074 = vpack.c.b16 %v801, %v788
  %v1075 = vpack.c.b16 %v802, %v789
  %v1076 = vpack.c.b16 %v803, %v790
  %v1077 = vpack.c.b16 %v804, %v791
  %v1078 = vpack.c.b16 %v805, %v792
  %v1079 = vpack.c.b16 %v806, %v793
  %v1080 = vpack.c.b16 %v807, %v794
  %v1081 = vpack.c.b16 %v808, %v795
  %v1082 = vpack.c.b16 %v809, %v796
  %v1083 = vpack.c.b16 %v810, %v797
  %v1084 = vpack.c.b16 %v824, %v811
  %v1085 = vpack.c.b16 %v825, %v812
  %v1086 = vpack.c.b16 %v826, %v813
  %v1087 = vpack.c.b16 %v827, %v814
  %v1088 = vpack.c.b16 %v828, %v815
  %v1089 = vpack.c.b16 %v829, %v816
  %v1090 = vpack.c.b16 %v830, %v817
  %v1091 = vpack.c.b16 %v831, %v818
  %v1092 = vpack.c.b16 %v832, %v819
  %v1093 = vpack.c.b16 %v833, %v820
  %v1094 = vpack.c.b16 %v834, %v821
  %v1095 = vpack.c.b16 %v835, %v822
  %v1096 = vpack.c.b16 %v836, %v823
  %v1097 = vpack.c.b16 %v850, %v837
  %v1098 = vpack.c.b16 %v851, %v838
  %v1099 = vpack.c.b16 %v852, %v839
  %v1100 = vpack.c.b16 %v853, %v840
  %v1101 = vpack.c.b16 %v854, %v841
  %v1102 = vpack.c.b16 %v855, %v842
  %v1103 = vpack.c.b16 %v856, %v843
  %v1104 = vpack.c.b16 %v857, %v844
  %v1105 = vpack.c.b16 %v858, %v845
  %v1106 = vpack.c.b16 %v859, %v846
  %v1107 = vpack.c.b16 %v860, %v847
  %v1108 = vpack.c.b16 %v861, %v848
  %v1109 = vpack.c.b16 %v862, %v849
  %v1110 = vpack.c.b16 %v876, %v863
  %v1111 = vpack.c.b16 %v877, %v864
  %v1112 = vpack.c.b16 %v878, %v865
  %v1113 = vpack.c.b16 %v879, %v866
  %v1114 = vpack.c.b16 %v880, %v867
  %v1115 = vpack.c.b16 %v881, %v868
  %v1116 = vpack.c.b16 %v882, %v869
  %v1117 = vpack.c.b16 %v883, %v870
  %v1118 = vpack.c.b16 %v884, %v871
  %v1119 = vpack.c.b16 %v885, %v872
  %v1120 = vpack.c.b16 %v886, %v873
  %v1121 = vpack.c.b16 %v887, %v874
  %v1122 = vpack.c.b16 %v888, %v875
  %v1123 = vpack.c.b16 %v902, %v889
  %v1124 = vpack.c.b16 %v903, %v890
  %v1125 = vpack.c.b16 %v904, %v891
  %v1126 = vpack.c.b16 %v905, %v892
  %v1127 = vpack.c.b16 %v906, %v893
  %v1128 = vpack.c.b16 %v907, %v894
  %v1129 = vpack.c.b16 %v908, %v895
  %v1130 = vpack.c.b16 %v909, %v896
  %v1131 = vpack.c.b16 %v910, %v897
  %v1132 = vpack.c.b16 %v911, %v898
  %v1133 = vpack.c.b16 %v912, %v899
  %v1134 = vpack.c.b16 %v913, %v900
  %v1135 = vpack.c.b16 %v914, %v901
  %v1136 = vpack.c.b16 %v928, %v915
  %v1137 = vpack.c.b16 %v929, %v916
  %v1138 = vpack.c.b16 %v930, %v917
  %v1139 = vpack.c.b16 %v931, %v918
  %v1140 = vpack.c.b16 %v932, %v919
  %v1141 = vpack.c.b16 %v933, %v920
  %v1142 = vpack.c.b16 %v934, %v921
  %v1143 = vpack.c.b16 %v935, %v922
  %v1144 = vpack.c.b16 %v936, %v923
  %v1145 = vpack.c.b16 %v937, %v924
  %v1146 = vpack.c.b16 %v938, %v925
  %v1147 = vpack.c.b16 %v939, %v926
  %v1148 = vpack.c.b16 %v940, %v927
  %1357 = vmatpush.bf16.msra.mxu0 %v1032
  %1358 = vmatpush.bf16.msra.mxu0 %v1019
  %1359 = vmatpush.bf16.msra.mxu0 %v1006
  %1360 = vmatpush.bf16.msra.mxu0 %v993
  %1361 = vmatpush.bf16.msra.mxu0 %v980
  %1362 = vmatpush.bf16.msra.mxu0 %v967
  %1363 = vmatpush.bf16.msra.mxu0 %v954
  %1364 = vmatpush.bf16.msra.mxu0 %v941
  %1365 = vmatmul.bf16.gmra.mxu0 %v297
  %v1366 = vpop.f32.mrf.mxu0
  %v1367 = vadd.f32 %v268, %v1366
  %v1368 = vpop.f32.mrf.mxu0
  %1369 = vdwg.mxu0
  %1370 = vmatpush.bf16.msra.mxu0 %v1136
  %1371 = vmatpush.bf16.msra.mxu0 %v1123
  %1372 = vmatpush.bf16.msra.mxu0 %v1110
  %1373 = vmatpush.bf16.msra.mxu0 %v1097
  %1374 = vmatpush.bf16.msra.mxu0 %v1084
  %1375 = vmatpush.bf16.msra.mxu0 %v1071
  %1376 = vmatpush.bf16.msra.mxu0 %v1058
  %1377 = vmatpush.bf16.msra.mxu0 %v1045
  %1378 = vmatmul.bf16.gmra.mxu0 %v298
  %v1379 = vpop.f32.mrf.mxu0
  %v1380 = vadd.f32 %v1367, %v1379
  %v1381 = vpop.f32.mrf.mxu0
  %1382 = vdwg.mxu0
  %1383 = vmatpush.bf16.msra.mxu0 %v1033
  %1384 = vmatpush.bf16.msra.mxu0 %v1020
  %1385 = vmatpush.bf16.msra.mxu0 %v1007
  %1386 = vmatpush.bf16.msra.mxu0 %v994
  %1387 = vmatpush.bf16.msra.mxu0 %v981
  %1388 = vmatpush.bf16.msra.mxu0 %v968
  %1389 = vmatpush.bf16.msra.mxu0 %v955
  %1390 = vmatpush.bf16.msra.mxu0 %v942
  %1391 = vmatmul.bf16.gmra.mxu0 %v297
  %v1392 = vpop.f32.mrf.mxu0
  %v1393 = vadd.f32 %v269, %v1392
  %v1394 = vpop.f32.mrf.mxu0
  %1395 = vdwg.mxu0
  %1396 = vmatpush.bf16.msra.mxu0 %v1137
  %1397 = vmatpush.bf16.msra.mxu0 %v1124
  %1398 = vmatpush.bf16.msra.mxu0 %v1111
  %1399 = vmatpush.bf16.msra.mxu0 %v1098
  %1400 = vmatpush.bf16.msra.mxu0 %v1085
  %1401 = vmatpush.bf16.msra.mxu0 %v1072
  %1402 = vmatpush.bf16.msra.mxu0 %v1059
  %1403 = vmatpush.bf16.msra.mxu0 %v1046
  %1404 = vmatmul.bf16.gmra.mxu0 %v298
  %v1405 = vpop.f32.mrf.mxu0
  %v1406 = vadd.f32 %v1393, %v1405
  %v1407 = vpop.f32.mrf.mxu0
  %1408 = vdwg.mxu0
  %1409 = vmatpush.bf16.msra.mxu0 %v1034
  %1410 = vmatpush.bf16.msra.mxu0 %v1021
  %1411 = vmatpush.bf16.msra.mxu0 %v1008
  %1412 = vmatpush.bf16.msra.mxu0 %v995
  %1413 = vmatpush.bf16.msra.mxu0 %v982
  %1414 = vmatpush.bf16.msra.mxu0 %v969
  %1415 = vmatpush.bf16.msra.mxu0 %v956
  %1416 = vmatpush.bf16.msra.mxu0 %v943
  %1417 = vmatmul.bf16.gmra.mxu0 %v297
  %v1418 = vpop.f32.mrf.mxu0
  %v1419 = vadd.f32 %v270, %v1418
  %v1420 = vpop.f32.mrf.mxu0
  %1421 = vdwg.mxu0
  %1422 = vmatpush.bf16.msra.mxu0 %v1138
  %1423 = vmatpush.bf16.msra.mxu0 %v1125
  %1424 = vmatpush.bf16.msra.mxu0 %v1112
  %1425 = vmatpush.bf16.msra.mxu0 %v1099
  %1426 = vmatpush.bf16.msra.mxu0 %v1086
  %1427 = vmatpush.bf16.msra.mxu0 %v1073
  %1428 = vmatpush.bf16.msra.mxu0 %v1060
  %1429 = vmatpush.bf16.msra.mxu0 %v1047
  %1430 = vmatmul.bf16.gmra.mxu0 %v298
  %v1431 = vpop.f32.mrf.mxu0
  %v1432 = vadd.f32 %v1419, %v1431
  %v1433 = vpop.f32.mrf.mxu0
  %1434 = vdwg.mxu0
  %1435 = vmatpush.bf16.msra.mxu0 %v1035
  %1436 = vmatpush.bf16.msra.mxu0 %v1022
  %1437 = vmatpush.bf16.msra.mxu0 %v1009
  %1438 = vmatpush.bf16.msra.mxu0 %v996
  %1439 = vmatpush.bf16.msra.mxu0 %v983
  %1440 = vmatpush.bf16.msra.mxu0 %v970
  %1441 = vmatpush.bf16.msra.mxu0 %v957
  %1442 = vmatpush.bf16.msra.mxu0 %v944
  %1443 = vmatmul.bf16.gmra.mxu0 %v297
  %v1444 = vpop.f32.mrf.mxu0
  %v1445 = vadd.f32 %v271, %v1444
  %v1446 = vpop.f32.mrf.mxu0
  %1447 = vdwg.mxu0
  %1448 = vmatpush.bf16.msra.mxu0 %v1139
  %1449 = vmatpush.bf16.msra.mxu0 %v1126
  %1450 = vmatpush.bf16.msra.mxu0 %v1113
  %1451 = vmatpush.bf16.msra.mxu0 %v1100
  %1452 = vmatpush.bf16.msra.mxu0 %v1087
  %1453 = vmatpush.bf16.msra.mxu0 %v1074
  %1454 = vmatpush.bf16.msra.mxu0 %v1061
  %1455 = vmatpush.bf16.msra.mxu0 %v1048
  %1456 = vmatmul.bf16.gmra.mxu0 %v298
  %v1457 = vpop.f32.mrf.mxu0
  %v1458 = vadd.f32 %v1445, %v1457
  %v1459 = vpop.f32.mrf.mxu0
  %1460 = vdwg.mxu0
  %1461 = vmatpush.bf16.msra.mxu0 %v1036
  %1462 = vmatpush.bf16.msra.mxu0 %v1023
  %1463 = vmatpush.bf16.msra.mxu0 %v1010
  %1464 = vmatpush.bf16.msra.mxu0 %v997
  %1465 = vmatpush.bf16.msra.mxu0 %v984
  %1466 = vmatpush.bf16.msra.mxu0 %v971
  %1467 = vmatpush.bf16.msra.mxu0 %v958
  %1468 = vmatpush.bf16.msra.mxu0 %v945
  %1469 = vmatmul.bf16.gmra.mxu0 %v297
  %v1470 = vpop.f32.mrf.mxu0
  %v1471 = vadd.f32 %v272, %v1470
  %v1472 = vpop.f32.mrf.mxu0
  %1473 = vdwg.mxu0
  %1474 = vmatpush.bf16.msra.mxu0 %v1140
  %1475 = vmatpush.bf16.msra.mxu0 %v1127
  %1476 = vmatpush.bf16.msra.mxu0 %v1114
  %1477 = vmatpush.bf16.msra.mxu0 %v1101
  %1478 = vmatpush.bf16.msra.mxu0 %v1088
  %1479 = vmatpush.bf16.msra.mxu0 %v1075
  %1480 = vmatpush.bf16.msra.mxu0 %v1062
  %1481 = vmatpush.bf16.msra.mxu0 %v1049
  %1482 = vmatmul.bf16.gmra.mxu0 %v298
  %v1483 = vpop.f32.mrf.mxu0
  %v1484 = vadd.f32 %v1471, %v1483
  %v1485 = vpop.f32.mrf.mxu0
  %1486 = vdwg.mxu0
  %1487 = vmatpush.bf16.msra.mxu0 %v1037
  %1488 = vmatpush.bf16.msra.mxu0 %v1024
  %1489 = vmatpush.bf16.msra.mxu0 %v1011
  %1490 = vmatpush.bf16.msra.mxu0 %v998
  %1491 = vmatpush.bf16.msra.mxu0 %v985
  %1492 = vmatpush.bf16.msra.mxu0 %v972
  %1493 = vmatpush.bf16.msra.mxu0 %v959
  %1494 = vmatpush.bf16.msra.mxu0 %v946
  %1495 = vmatmul.bf16.gmra.mxu0 %v297
  %v1496 = vpop.f32.mrf.mxu0
  %v1497 = vadd.f32 %v273, %v1496
  %v1498 = vpop.f32.mrf.mxu0
  %1499 = vdwg.mxu0
  %1500 = vmatpush.bf16.msra.mxu0 %v1141
  %1501 = vmatpush.bf16.msra.mxu0 %v1128
  %1502 = vmatpush.bf16.msra.mxu0 %v1115
  %1503 = vmatpush.bf16.msra.mxu0 %v1102
  %1504 = vmatpush.bf16.msra.mxu0 %v1089
  %1505 = vmatpush.bf16.msra.mxu0 %v1076
  %1506 = vmatpush.bf16.msra.mxu0 %v1063
  %1507 = vmatpush.bf16.msra.mxu0 %v1050
  %1508 = vmatmul.bf16.gmra.mxu0 %v298
  %v1509 = vpop.f32.mrf.mxu0
  %v1510 = vadd.f32 %v1497, %v1509
  %v1511 = vpop.f32.mrf.mxu0
  %1512 = vdwg.mxu0
  %1513 = vmatpush.bf16.msra.mxu0 %v1038
  %1514 = vmatpush.bf16.msra.mxu0 %v1025
  %1515 = vmatpush.bf16.msra.mxu0 %v1012
  %1516 = vmatpush.bf16.msra.mxu0 %v999
  %1517 = vmatpush.bf16.msra.mxu0 %v986
  %1518 = vmatpush.bf16.msra.mxu0 %v973
  %1519 = vmatpush.bf16.msra.mxu0 %v960
  %1520 = vmatpush.bf16.msra.mxu0 %v947
  %1521 = vmatmul.bf16.gmra.mxu0 %v297
  %v1522 = vpop.f32.mrf.mxu0
  %v1523 = vadd.f32 %v274, %v1522
  %v1524 = vpop.f32.mrf.mxu0
  %1525 = vdwg.mxu0
  %1526 = vmatpush.bf16.msra.mxu0 %v1142
  %1527 = vmatpush.bf16.msra.mxu0 %v1129
  %1528 = vmatpush.bf16.msra.mxu0 %v1116
  %1529 = vmatpush.bf16.msra.mxu0 %v1103
  %1530 = vmatpush.bf16.msra.mxu0 %v1090
  %1531 = vmatpush.bf16.msra.mxu0 %v1077
  %1532 = vmatpush.bf16.msra.mxu0 %v1064
  %1533 = vmatpush.bf16.msra.mxu0 %v1051
  %1534 = vmatmul.bf16.gmra.mxu0 %v298
  %v1535 = vpop.f32.mrf.mxu0
  %v1536 = vadd.f32 %v1523, %v1535
  %v1537 = vpop.f32.mrf.mxu0
  %1538 = vdwg.mxu0
  %1539 = vmatpush.bf16.msra.mxu0 %v1039
  %1540 = vmatpush.bf16.msra.mxu0 %v1026
  %1541 = vmatpush.bf16.msra.mxu0 %v1013
  %1542 = vmatpush.bf16.msra.mxu0 %v1000
  %1543 = vmatpush.bf16.msra.mxu0 %v987
  %1544 = vmatpush.bf16.msra.mxu0 %v974
  %1545 = vmatpush.bf16.msra.mxu0 %v961
  %1546 = vmatpush.bf16.msra.mxu0 %v948
  %1547 = vmatmul.bf16.gmra.mxu0 %v297
  %v1548 = vpop.f32.mrf.mxu0
  %v1549 = vadd.f32 %v275, %v1548
  %v1550 = vpop.f32.mrf.mxu0
  %1551 = vdwg.mxu0
  %1552 = vmatpush.bf16.msra.mxu0 %v1143
  %1553 = vmatpush.bf16.msra.mxu0 %v1130
  %1554 = vmatpush.bf16.msra.mxu0 %v1117
  %1555 = vmatpush.bf16.msra.mxu0 %v1104
  %1556 = vmatpush.bf16.msra.mxu0 %v1091
  %1557 = vmatpush.bf16.msra.mxu0 %v1078
  %1558 = vmatpush.bf16.msra.mxu0 %v1065
  %1559 = vmatpush.bf16.msra.mxu0 %v1052
  %1560 = vmatmul.bf16.gmra.mxu0 %v298
  %v1561 = vpop.f32.mrf.mxu0
  %v1562 = vadd.f32 %v1549, %v1561
  %v1563 = vpop.f32.mrf.mxu0
  %1564 = vdwg.mxu0
  %1565 = vmatpush.bf16.msra.mxu0 %v1040
  %1566 = vmatpush.bf16.msra.mxu0 %v1027
  %1567 = vmatpush.bf16.msra.mxu0 %v1014
  %1568 = vmatpush.bf16.msra.mxu0 %v1001
  %1569 = vmatpush.bf16.msra.mxu0 %v988
  %1570 = vmatpush.bf16.msra.mxu0 %v975
  %1571 = vmatpush.bf16.msra.mxu0 %v962
  %1572 = vmatpush.bf16.msra.mxu0 %v949
  %1573 = vmatmul.bf16.gmra.mxu0 %v297
  %v1574 = vpop.f32.mrf.mxu0
  %v1575 = vadd.f32 %v276, %v1574
  %v1576 = vpop.f32.mrf.mxu0
  %1577 = vdwg.mxu0
  %1578 = vmatpush.bf16.msra.mxu0 %v1144
  %1579 = vmatpush.bf16.msra.mxu0 %v1131
  %1580 = vmatpush.bf16.msra.mxu0 %v1118
  %1581 = vmatpush.bf16.msra.mxu0 %v1105
  %1582 = vmatpush.bf16.msra.mxu0 %v1092
  %1583 = vmatpush.bf16.msra.mxu0 %v1079
  %1584 = vmatpush.bf16.msra.mxu0 %v1066
  %1585 = vmatpush.bf16.msra.mxu0 %v1053
  %1586 = vmatmul.bf16.gmra.mxu0 %v298
  %v1587 = vpop.f32.mrf.mxu0
  %v1588 = vadd.f32 %v1575, %v1587
  %v1589 = vpop.f32.mrf.mxu0
  %1590 = vdwg.mxu0
  %1591 = vmatpush.bf16.msra.mxu0 %v1041
  %1592 = vmatpush.bf16.msra.mxu0 %v1028
  %1593 = vmatpush.bf16.msra.mxu0 %v1015
  %1594 = vmatpush.bf16.msra.mxu0 %v1002
  %1595 = vmatpush.bf16.msra.mxu0 %v989
  %1596 = vmatpush.bf16.msra.mxu0 %v976
  %1597 = vmatpush.bf16.msra.mxu0 %v963
  %1598 = vmatpush.bf16.msra.mxu0 %v950
  %1599 = vmatmul.bf16.gmra.mxu0 %v297
  %v1600 = vpop.f32.mrf.mxu0
  %v1601 = vadd.f32 %v277, %v1600
  %v1602 = vpop.f32.mrf.mxu0
  %1603 = vdwg.mxu0
  %1604 = vmatpush.bf16.msra.mxu0 %v1145
  %1605 = vmatpush.bf16.msra.mxu0 %v1132
  %1606 = vmatpush.bf16.msra.mxu0 %v1119
  %1607 = vmatpush.bf16.msra.mxu0 %v1106
  %1608 = vmatpush.bf16.msra.mxu0 %v1093
  %1609 = vmatpush.bf16.msra.mxu0 %v1080
  %1610 = vmatpush.bf16.msra.mxu0 %v1067
  %1611 = vmatpush.bf16.msra.mxu0 %v1054
  %1612 = vmatmul.bf16.gmra.mxu0 %v298
  %v1613 = vpop.f32.mrf.mxu0
  %v1614 = vadd.f32 %v1601, %v1613
  %v1615 = vpop.f32.mrf.mxu0
  %1616 = vdwg.mxu0
  %1617 = vmatpush.bf16.msra.mxu0 %v1042
  %1618 = vmatpush.bf16.msra.mxu0 %v1029
  %1619 = vmatpush.bf16.msra.mxu0 %v1016
  %1620 = vmatpush.bf16.msra.mxu0 %v1003
  %1621 = vmatpush.bf16.msra.mxu0 %v990
  %1622 = vmatpush.bf16.msra.mxu0 %v977
  %1623 = vmatpush.bf16.msra.mxu0 %v964
  %1624 = vmatpush.bf16.msra.mxu0 %v951
  %1625 = vmatmul.bf16.gmra.mxu0 %v297
  %v1626 = vpop.f32.mrf.mxu0
  %v1627 = vadd.f32 %v278, %v1626
  %v1628 = vpop.f32.mrf.mxu0
  %1629 = vdwg.mxu0
  %1630 = vmatpush.bf16.msra.mxu0 %v1146
  %1631 = vmatpush.bf16.msra.mxu0 %v1133
  %1632 = vmatpush.bf16.msra.mxu0 %v1120
  %1633 = vmatpush.bf16.msra.mxu0 %v1107
  %1634 = vmatpush.bf16.msra.mxu0 %v1094
  %1635 = vmatpush.bf16.msra.mxu0 %v1081
  %1636 = vmatpush.bf16.msra.mxu0 %v1068
  %1637 = vmatpush.bf16.msra.mxu0 %v1055
  %1638 = vmatmul.bf16.gmra.mxu0 %v298
  %v1639 = vpop.f32.mrf.mxu0
  %v1640 = vadd.f32 %v1627, %v1639
  %v1641 = vpop.f32.mrf.mxu0
  %1642 = vdwg.mxu0
  %1643 = vmatpush.bf16.msra.mxu0 %v1043
  %1644 = vmatpush.bf16.msra.mxu0 %v1030
  %1645 = vmatpush.bf16.msra.mxu0 %v1017
  %1646 = vmatpush.bf16.msra.mxu0 %v1004
  %1647 = vmatpush.bf16.msra.mxu0 %v991
  %1648 = vmatpush.bf16.msra.mxu0 %v978
  %1649 = vmatpush.bf16.msra.mxu0 %v965
  %1650 = vmatpush.bf16.msra.mxu0 %v952
  %1651 = vmatmul.bf16.gmra.mxu0 %v297
  %v1652 = vpop.f32.mrf.mxu0
  %v1653 = vadd.f32 %v279, %v1652
  %v1654 = vpop.f32.mrf.mxu0
  %1655 = vdwg.mxu0
  %1656 = vmatpush.bf16.msra.mxu0 %v1147
  %1657 = vmatpush.bf16.msra.mxu0 %v1134
  %1658 = vmatpush.bf16.msra.mxu0 %v1121
  %1659 = vmatpush.bf16.msra.mxu0 %v1108
  %1660 = vmatpush.bf16.msra.mxu0 %v1095
  %1661 = vmatpush.bf16.msra.mxu0 %v1082
  %1662 = vmatpush.bf16.msra.mxu0 %v1069
  %1663 = vmatpush.bf16.msra.mxu0 %v1056
  %1664 = vmatmul.bf16.gmra.mxu0 %v298
  %v1665 = vpop.f32.mrf.mxu0
  %v1666 = vadd.f32 %v1653, %v1665
  %v1667 = vpop.f32.mrf.mxu0
  %1668 = vdwg.mxu0
  %1669 = vmatpush.bf16.msra.mxu0 %v1044
  %1670 = vmatpush.bf16.msra.mxu0 %v1031
  %1671 = vmatpush.bf16.msra.mxu0 %v1018
  %1672 = vmatpush.bf16.msra.mxu0 %v1005
  %1673 = vmatpush.bf16.msra.mxu0 %v992
  %1674 = vmatpush.bf16.msra.mxu0 %v979
  %1675 = vmatpush.bf16.msra.mxu0 %v966
  %1676 = vmatpush.bf16.msra.mxu0 %v953
  %1677 = vmatmul.bf16.gmra.mxu0 %v297
  %v1678 = vpop.f32.mrf.mxu0
  %v1679 = vadd.f32 %v280, %v1678
  %v1680 = vpop.f32.mrf.mxu0
  %1681 = vdwg.mxu0
  %1682 = vmatpush.bf16.msra.mxu0 %v1148
  %1683 = vmatpush.bf16.msra.mxu0 %v1135
  %1684 = vmatpush.bf16.msra.mxu0 %v1122
  %1685 = vmatpush.bf16.msra.mxu0 %v1109
  %1686 = vmatpush.bf16.msra.mxu0 %v1096
  %1687 = vmatpush.bf16.msra.mxu0 %v1083
  %1688 = vmatpush.bf16.msra.mxu0 %v1070
  %1689 = vmatpush.bf16.msra.mxu0 %v1057
  %1690 = vmatmul.bf16.gmra.mxu0 %v298
  %v1691 = vpop.f32.mrf.mxu0
  %v1692 = vadd.f32 %v1679, %v1691
  %v1693 = vpop.f32.mrf.mxu0
  %1694 = vdwg.mxu0
  %v1695 = vmax.f32 %v1380, 0.0
  %v1696 = vmax.f32 %v1406, 0.0
  %v1697 = vmax.f32 %v1432, 0.0
  %v1698 = vmax.f32 %v1458, 0.0
  %v1699 = vmax.f32 %v1484, 0.0
  %v1700 = vmax.f32 %v1510, 0.0
  %v1701 = vmax.f32 %v1536, 0.0
  %v1702 = vmax.f32 %v1562, 0.0
  %v1703 = vmax.f32 %v1588, 0.0
  %v1704 = vmax.f32 %v1614, 0.0
  %v1705 = vmax.f32 %v1640, 0.0
  %v1706 = vmax.f32 %v1666, 0.0
  %v1707 = vmax.f32 %v1692, 0.0
  %v1708 = vpack.c.bf16 %v1695, %v1695
  %v1709 = vpack.c.bf16 %v1696, %v1696
  %v1710 = vpack.c.bf16 %v1697, %v1697
  %v1711 = vpack.c.bf16 %v1698, %v1698
  %v1712 = vpack.c.bf16 %v1699, %v1699
  %v1713 = vpack.c.bf16 %v1700, %v1700
  %v1714 = vpack.c.bf16 %v1701, %v1701
  %v1715 = vpack.c.bf16 %v1702, %v1702
  %v1716 = vpack.c.bf16 %v1703, %v1703
  %v1717 = vpack.c.bf16 %v1704, %v1704
  %v1718 = vpack.c.bf16 %v1705, %v1705
  %v1719 = vpack.c.bf16 %v1706, %v1706
  %v1720 = vpack.c.bf16 %v1707, %v1707
  %v1721 = vld [vmem:[%s3] sm:$0xff]
  %v1722 = vld [vmem:[%s3 + $0x8] sm:$0xff]
  %v1723 = vld [vmem:[%s3 + $0x10] sm:$0xf]
  %v1724 = vld [vmem:[%s3 + $0x14] sm:$0xff]
  %v1725 = vld [vmem:[%s3 + $0x1c] sm:$0xff]
  %v1726 = vld [vmem:[%s3 + $0x24] sm:$0xf]
  %v1727 = vld [vmem:[%s3 + $0x28] sm:$0xff]
  %v1728 = vld [vmem:[%s3 + $0x30] sm:$0xff]
  %v1729 = vld [vmem:[%s3 + $0x38] sm:$0xf]
  %v1730 = vld [vmem:[%s3 + $0x3c] sm:$0xff]
  %v1731 = vld [vmem:[%s3 + $0x44] sm:$0xff]
  %v1732 = vld [vmem:[%s3 + $0x4c] sm:$0xf]
  %v1733 = vld [vmem:[%s3 + $0x50] sm:$0xff]
  %v1734 = vld [vmem:[%s3 + $0x58] sm:$0xff]
  %v1735 = vld [vmem:[%s3 + $0x60] sm:$0xf]
  %v1736 = vld [vmem:[%s3 + $0x64] sm:$0xff]
  %v1737 = vld [vmem:[%s3 + $0x6c] sm:$0xff]
  %v1738 = vld [vmem:[%s3 + $0x74] sm:$0xf]
  %v1739 = vld [vmem:[%s3 + $0x78] sm:$0xff]
  %v1740 = vld [vmem:[%s3 + $0x80] sm:$0xff]
  %v1741 = vld [vmem:[%s3 + $0x88] sm:$0xf]
  %v1742 = vld [vmem:[%s3 + $0x8c] sm:$0xff]
  %v1743 = vld [vmem:[%s3 + $0x94] sm:$0xff]
  %v1744 = vld [vmem:[%s3 + $0x9c] sm:$0xf]
  %v1745 = vld [vmem:[%s3 + $0xa0] sm:$0xff]
  %v1746 = vld [vmem:[%s3 + $0xa8] sm:$0xff]
  %v1747 = vld [vmem:[%s3 + $0xb0] sm:$0xf]
  %v1748 = vld [vmem:[%s3 + $0xb4] sm:$0xff]
  %v1749 = vld [vmem:[%s3 + $0xbc] sm:$0xff]
  %v1750 = vld [vmem:[%s3 + $0xc4] sm:$0xf]
  %v1751 = vld [vmem:[%s3 + $0xc8] sm:$0xff]
  %v1752 = vld [vmem:[%s3 + $0xd0] sm:$0xff]
  %v1753 = vld [vmem:[%s3 + $0xd8] sm:$0xf]
  %v1754 = vld [vmem:[%s3 + $0xdc] sm:$0xff]
  %v1755 = vld [vmem:[%s3 + $0xe4] sm:$0xff]
  %v1756 = vld [vmem:[%s3 + $0xec] sm:$0xf]
  %v1757 = vld [vmem:[%s3 + $0xf0] sm:$0xff]
  %v1758 = vld [vmem:[%s3 + $0xf8] sm:$0xff]
  %v1759 = vld [vmem:[%s3 + $0x100] sm:$0xf]
  %v1760 = vld [vmem:[%s3 + $0x104] sm:$0xff]
  %v1761 = vld [vmem:[%s3 + $0x10c] sm:$0xff]
  %v1762 = vld [vmem:[%s3 + $0x114] sm:$0xf]
  %v1763 = vld [vmem:[%s3 + $0x118] sm:$0xff]
  %v1764 = vld [vmem:[%s3 + $0x120] sm:$0xff]
  %v1765 = vld [vmem:[%s3 + $0x128] sm:$0xf]
  %v1766 = vld [vmem:[%s3 + $0x12c] sm:$0xff]
  %v1767 = vld [vmem:[%s3 + $0x134] sm:$0xff]
  %v1768 = vld [vmem:[%s3 + $0x13c] sm:$0xf]
  %v1769 = vld [vmem:[%s3 + $0x140] sm:$0xff]
  %v1770 = vld [vmem:[%s3 + $0x148] sm:$0xff]
  %v1771 = vld [vmem:[%s3 + $0x150] sm:$0xf]
  %v1772 = vld [vmem:[%s3 + $0x154] sm:$0xff]
  %v1773 = vld [vmem:[%s3 + $0x15c] sm:$0xff]
  %v1774 = vld [vmem:[%s3 + $0x164] sm:$0xf]
  %v1775 = vld [vmem:[%s3 + $0x168] sm:$0xff]
  %v1776 = vld [vmem:[%s3 + $0x170] sm:$0xff]
  %v1777 = vld [vmem:[%s3 + $0x178] sm:$0xf]
  %v1778 = vld [vmem:[%s3 + $0x17c] sm:$0xff]
  %v1779 = vld [vmem:[%s3 + $0x184] sm:$0xff]
  %v1780 = vld [vmem:[%s3 + $0x18c] sm:$0xf]
  %v1781 = vld [vmem:[%s3 + $0x190] sm:$0xff]
  %v1782 = vld [vmem:[%s3 + $0x198] sm:$0xff]
  %v1783 = vld [vmem:[%s3 + $0x1a0] sm:$0xf]
  %v1784 = vld [vmem:[%s3 + $0x1a4] sm:$0xff]
  %v1785 = vld [vmem:[%s3 + $0x1ac] sm:$0xff]
  %v1786 = vld [vmem:[%s3 + $0x1b4] sm:$0xf]
  %v1787 = vld [vmem:[%s3 + $0x1b8] sm:$0xff]
  %v1788 = vld [vmem:[%s3 + $0x1c0] sm:$0xff]
  %v1789 = vld [vmem:[%s3 + $0x1c8] sm:$0xf]
  %v1790 = vld [vmem:[%s3 + $0x1cc] sm:$0xff]
  %v1791 = vld [vmem:[%s3 + $0x1d4] sm:$0xff]
  %v1792 = vld [vmem:[%s3 + $0x1dc] sm:$0xf]
  %v1793 = vld [vmem:[%s3 + $0x1e0] sm:$0xff]
  %v1794 = vld [vmem:[%s3 + $0x1e8] sm:$0xff]
  %v1795 = vld [vmem:[%s3 + $0x1f0] sm:$0xf]
  %v1796 = vld [vmem:[%s3 + $0x1f4] sm:$0xff]
  %v1797 = vld [vmem:[%s3 + $0x1fc] sm:$0xff]
  %v1798 = vld [vmem:[%s3 + $0x204] sm:$0xf]
  %v1799 = vld [vmem:[%s3 + $0x208] sm:$0xff]
  %v1800 = vld [vmem:[%s3 + $0x210] sm:$0xff]
  %v1801 = vld [vmem:[%s3 + $0x218] sm:$0xf]
  %v1802 = vld [vmem:[%s3 + $0x21c] sm:$0xff]
  %v1803 = vld [vmem:[%s3 + $0x224] sm:$0xff]
  %v1804 = vld [vmem:[%s3 + $0x22c] sm:$0xf]
  %v1805 = vld [vmem:[%s3 + $0x230] sm:$0xff]
  %v1806 = vld [vmem:[%s3 + $0x238] sm:$0xff]
  %v1807 = vld [vmem:[%s3 + $0x240] sm:$0xf]
  %v1808 = vld [vmem:[%s3 + $0x244] sm:$0xff]
  %v1809 = vld [vmem:[%s3 + $0x24c] sm:$0xff]
  %v1810 = vld [vmem:[%s3 + $0x254] sm:$0xf]
  %v1811 = vld [vmem:[%s3 + $0x258] sm:$0xff]
  %v1812 = vld [vmem:[%s3 + $0x260] sm:$0xff]
  %v1813 = vld [vmem:[%s3 + $0x268] sm:$0xf]
  %v1814 = vld [vmem:[%s3 + $0x26c] sm:$0xff]
  %v1815 = vld [vmem:[%s3 + $0x274] sm:$0xff]
  %v1816 = vld [vmem:[%s3 + $0x27c] sm:$0xf]
  %v1817 = vld [vmem:[%s3 + $0x280] sm:$0xff]
  %v1818 = vld [vmem:[%s3 + $0x288] sm:$0xff]
  %v1819 = vld [vmem:[%s3 + $0x290] sm:$0xf]
  %v1820 = vld [vmem:[%s3 + $0x294] sm:$0xff]
  %v1821 = vld [vmem:[%s3 + $0x29c] sm:$0xff]
  %v1822 = vld [vmem:[%s3 + $0x2a4] sm:$0xf]
  %v1823 = vld [vmem:[%s3 + $0x2a8] sm:$0xff]
  %v1824 = vld [vmem:[%s3 + $0x2b0] sm:$0xff]
  %v1825 = vld [vmem:[%s3 + $0x2b8] sm:$0xf]
  %v1826 = vld [vmem:[%s3 + $0x2bc] sm:$0xff]
  %v1827 = vld [vmem:[%s3 + $0x2c4] sm:$0xff]
  %v1828 = vld [vmem:[%s3 + $0x2cc] sm:$0xf]
  %v1829 = vld [vmem:[%s3 + $0x2d0] sm:$0xff]
  %v1830 = vld [vmem:[%s3 + $0x2d8] sm:$0xff]
  %v1831 = vld [vmem:[%s3 + $0x2e0] sm:$0xf]
  %v1832 = vld [vmem:[%s3 + $0x2e4] sm:$0xff]
  %v1833 = vld [vmem:[%s3 + $0x2ec] sm:$0xff]
  %v1834 = vld [vmem:[%s3 + $0x2f4] sm:$0xf]
  %v1835 = vld [vmem:[%s3 + $0x2f8] sm:$0xff]
  %v1836 = vld [vmem:[%s3 + $0x300] sm:$0xff]
  %v1837 = vld [vmem:[%s3 + $0x308] sm:$0xf]
  %v1838 = vld [vmem:[%s3 + $0x30c] sm:$0xff]
  %v1839 = vld [vmem:[%s3 + $0x314] sm:$0xff]
  %v1840 = vld [vmem:[%s3 + $0x31c] sm:$0xf]
  %v1841 = vld [vmem:[%s3 + $0x320] sm:$0xff]
  %v1842 = vld [vmem:[%s3 + $0x328] sm:$0xff]
  %v1843 = vld [vmem:[%s3 + $0x330] sm:$0xf]
  %v1844 = vld [vmem:[%s3 + $0x334] sm:$0xff]
  %v1845 = vld [vmem:[%s3 + $0x33c] sm:$0xff]
  %v1846 = vld [vmem:[%s3 + $0x344] sm:$0xf]
  %v1847 = vld [vmem:[%s3 + $0x348] sm:$0xff]
  %v1848 = vld [vmem:[%s3 + $0x350] sm:$0xff]
  %v1849 = vld [vmem:[%s3 + $0x358] sm:$0xf]
  %v1850 = vld [vmem:[%s3 + $0x35c] sm:$0xff]
  %v1851 = vld [vmem:[%s3 + $0x364] sm:$0xff]
  %v1852 = vld [vmem:[%s3 + $0x36c] sm:$0xf]
  %v1853 = vld [vmem:[%s3 + $0x370] sm:$0xff]
  %v1854 = vld [vmem:[%s3 + $0x378] sm:$0xff]
  %v1855 = vld [vmem:[%s3 + $0x380] sm:$0xf]
  %v1856 = vld [vmem:[%s3 + $0x384] sm:$0xff]
  %v1857 = vld [vmem:[%s3 + $0x38c] sm:$0xff]
  %v1858 = vld [vmem:[%s3 + $0x394] sm:$0xf]
  %v1859 = vld [vmem:[%s3 + $0x398] sm:$0xff]
  %v1860 = vld [vmem:[%s3 + $0x3a0] sm:$0xff]
  %v1861 = vld [vmem:[%s3 + $0x3a8] sm:$0xf]
  %v1862 = vld [vmem:[%s3 + $0x3ac] sm:$0xff]
  %v1863 = vld [vmem:[%s3 + $0x3b4] sm:$0xff]
  %v1864 = vld [vmem:[%s3 + $0x3bc] sm:$0xf]
  %v1865 = vld [vmem:[%s3 + $0x3c0] sm:$0xff]
  %v1866 = vld [vmem:[%s3 + $0x3c8] sm:$0xff]
  %v1867 = vld [vmem:[%s3 + $0x3d0] sm:$0xf]
  %v1868 = vld [vmem:[%s3 + $0x3d4] sm:$0xff]
  %v1869 = vld [vmem:[%s3 + $0x3dc] sm:$0xff]
  %v1870 = vld [vmem:[%s3 + $0x3e4] sm:$0xf]
  %v1871 = vld [vmem:[%s3 + $0x3e8] sm:$0xff]
  %v1872 = vld [vmem:[%s3 + $0x3f0] sm:$0xff]
  %v1873 = vld [vmem:[%s3 + $0x3f8] sm:$0xf]
  %v1874 = vld [vmem:[%s3 + $0x3fc] sm:$0xff]
  %v1875 = vld [vmem:[%s3 + $0x404] sm:$0xff]
  %v1876 = vld [vmem:[%s3 + $0x40c] sm:$0xf]
  %v1877 = vld [vmem:[%s3 + $0x410] sm:$0xff]
  %v1878 = vld [vmem:[%s3 + $0x418] sm:$0xff]
  %v1879 = vld [vmem:[%s3 + $0x420] sm:$0xf]
  %v1880 = vld [vmem:[%s3 + $0x424] sm:$0xff]
  %v1881 = vld [vmem:[%s3 + $0x42c] sm:$0xff]
  %v1882 = vld [vmem:[%s3 + $0x434] sm:$0xf]
  %v1883 = vld [vmem:[%s3 + $0x438] sm:$0xff]
  %v1884 = vld [vmem:[%s3 + $0x440] sm:$0xff]
  %v1885 = vld [vmem:[%s3 + $0x448] sm:$0xf]
  %v1886 = vld [vmem:[%s3 + $0x44c] sm:$0xff]
  %v1887 = vld [vmem:[%s3 + $0x454] sm:$0xff]
  %v1888 = vld [vmem:[%s3 + $0x45c] sm:$0xf]
  %v1889 = vld [vmem:[%s3 + $0x460] sm:$0xff]
  %v1890 = vld [vmem:[%s3 + $0x468] sm:$0xff]
  %v1891 = vld [vmem:[%s3 + $0x470] sm:$0xf]
  %v1892 = vld [vmem:[%s3 + $0x474] sm:$0xff]
  %v1893 = vld [vmem:[%s3 + $0x47c] sm:$0xff]
  %v1894 = vld [vmem:[%s3 + $0x484] sm:$0xf]
  %v1895 = vld [vmem:[%s3 + $0x488] sm:$0xff]
  %v1896 = vld [vmem:[%s3 + $0x490] sm:$0xff]
  %v1897 = vld [vmem:[%s3 + $0x498] sm:$0xf]
  %v1898 = vld [vmem:[%s3 + $0x49c] sm:$0xff]
  %v1899 = vld [vmem:[%s3 + $0x4a4] sm:$0xff]
  %v1900 = vld [vmem:[%s3 + $0x4ac] sm:$0xf]
  %v1901 = vld [vmem:[%s3 + $0x4b0] sm:$0xff]
  %v1902 = vld [vmem:[%s3 + $0x4b8] sm:$0xff]
  %v1903 = vld [vmem:[%s3 + $0x4c0] sm:$0xf]
  %v1904 = vld [vmem:[%s3 + $0x4c4] sm:$0xff]
  %v1905 = vld [vmem:[%s3 + $0x4cc] sm:$0xff]
  %v1906 = vld [vmem:[%s3 + $0x4d4] sm:$0xf]
  %v1907 = vld [vmem:[%s3 + $0x4d8] sm:$0xff]
  %v1908 = vld [vmem:[%s3 + $0x4e0] sm:$0xff]
  %v1909 = vld [vmem:[%s3 + $0x4e8] sm:$0xf]
  %v1910 = vld [vmem:[%s3 + $0x4ec] sm:$0xff]
  %v1911 = vld [vmem:[%s3 + $0x4f4] sm:$0xff]
  %v1912 = vld [vmem:[%s3 + $0x4fc] sm:$0xf]
  %v1913 = vld [vmem:[%s3 + $0x500] sm:$0xff]
  %v1914 = vld [vmem:[%s3 + $0x508] sm:$0xff]
  %v1915 = vld [vmem:[%s3 + $0x510] sm:$0xf]
  %v1916 = vld [vmem:[%s3 + $0x514] sm:$0xff]
  %v1917 = vld [vmem:[%s3 + $0x51c] sm:$0xff]
  %v1918 = vld [vmem:[%s3 + $0x524] sm:$0xf]
  %v1919 = vld [vmem:[%s3 + $0x528] sm:$0xff]
  %v1920 = vld [vmem:[%s3 + $0x530] sm:$0xff]
  %v1921 = vld [vmem:[%s3 + $0x538] sm:$0xf]
  %v1922 = vld [vmem:[%s3 + $0x53c] sm:$0xff]
  %v1923 = vld [vmem:[%s3 + $0x544] sm:$0xff]
  %v1924 = vld [vmem:[%s3 + $0x54c] sm:$0xf]
  %v1925 = vld [vmem:[%s3 + $0x550] sm:$0xff]
  %v1926 = vld [vmem:[%s3 + $0x558] sm:$0xff]
  %v1927 = vld [vmem:[%s3 + $0x560] sm:$0xf]
  %v1928 = vld [vmem:[%s3 + $0x564] sm:$0xff]
  %v1929 = vld [vmem:[%s3 + $0x56c] sm:$0xff]
  %v1930 = vld [vmem:[%s3 + $0x574] sm:$0xf]
  %v1931 = vld [vmem:[%s3 + $0x578] sm:$0xff]
  %v1932 = vld [vmem:[%s3 + $0x580] sm:$0xff]
  %v1933 = vld [vmem:[%s3 + $0x588] sm:$0xf]
  %v1934 = vld [vmem:[%s3 + $0x58c] sm:$0xff]
  %v1935 = vld [vmem:[%s3 + $0x594] sm:$0xff]
  %v1936 = vld [vmem:[%s3 + $0x59c] sm:$0xf]
  %v1937 = vld [vmem:[%s3 + $0x5a0] sm:$0xff]
  %v1938 = vld [vmem:[%s3 + $0x5a8] sm:$0xff]
  %v1939 = vld [vmem:[%s3 + $0x5b0] sm:$0xf]
  %v1940 = vld [vmem:[%s3 + $0x5b4] sm:$0xff]
  %v1941 = vld [vmem:[%s3 + $0x5bc] sm:$0xff]
  %v1942 = vld [vmem:[%s3 + $0x5c4] sm:$0xf]
  %v1943 = vld [vmem:[%s3 + $0x5c8] sm:$0xff]
  %v1944 = vld [vmem:[%s3 + $0x5d0] sm:$0xff]
  %v1945 = vld [vmem:[%s3 + $0x5d8] sm:$0xf]
  %v1946 = vld [vmem:[%s3 + $0x5dc] sm:$0xff]
  %v1947 = vld [vmem:[%s3 + $0x5e4] sm:$0xff]
  %v1948 = vld [vmem:[%s3 + $0x5ec] sm:$0xf]
  %v1949 = vld [vmem:[%s3 + $0x5f0] sm:$0xff]
  %v1950 = vld [vmem:[%s3 + $0x5f8] sm:$0xff]
  %v1951 = vld [vmem:[%s3 + $0x600] sm:$0xf]
  %v1952 = vld [vmem:[%s3 + $0x604] sm:$0xff]
  %v1953 = vld [vmem:[%s3 + $0x60c] sm:$0xff]
  %v1954 = vld [vmem:[%s3 + $0x614] sm:$0xf]
  %v1955 = vld [vmem:[%s3 + $0x618] sm:$0xff]
  %v1956 = vld [vmem:[%s3 + $0x620] sm:$0xff]
  %v1957 = vld [vmem:[%s3 + $0x628] sm:$0xf]
  %v1958 = vld [vmem:[%s3 + $0x62c] sm:$0xff]
  %v1959 = vld [vmem:[%s3 + $0x634] sm:$0xff]
  %v1960 = vld [vmem:[%s3 + $0x63c] sm:$0xf]
  %v1961 = vld [vmem:[%s3 + $0x640] sm:$0xff]
  %v1962 = vld [vmem:[%s3 + $0x648] sm:$0xff]
  %v1963 = vld [vmem:[%s3 + $0x650] sm:$0xf]
  %v1964 = vld [vmem:[%s3 + $0x654] sm:$0xff]
  %v1965 = vld [vmem:[%s3 + $0x65c] sm:$0xff]
  %v1966 = vld [vmem:[%s3 + $0x664] sm:$0xf]
  %v1967 = vld [vmem:[%s3 + $0x668] sm:$0xff]
  %v1968 = vld [vmem:[%s3 + $0x670] sm:$0xff]
  %v1969 = vld [vmem:[%s3 + $0x678] sm:$0xf]
  %v1970 = vld [vmem:[%s3 + $0x67c] sm:$0xff]
  %v1971 = vld [vmem:[%s3 + $0x684] sm:$0xff]
  %v1972 = vld [vmem:[%s3 + $0x68c] sm:$0xf]
  %v1973 = vld [vmem:[%s3 + $0x690] sm:$0xff]
  %v1974 = vld [vmem:[%s3 + $0x698] sm:$0xff]
  %v1975 = vld [vmem:[%s3 + $0x6a0] sm:$0xf]
  %v1976 = vld [vmem:[%s3 + $0x6a4] sm:$0xff]
  %v1977 = vld [vmem:[%s3 + $0x6ac] sm:$0xff]
  %v1978 = vld [vmem:[%s3 + $0x6b4] sm:$0xf]
  %v1979 = vld [vmem:[%s3 + $0x6b8] sm:$0xff]
  %v1980 = vld [vmem:[%s3 + $0x6c0] sm:$0xff]
  %v1981 = vld [vmem:[%s3 + $0x6c8] sm:$0xf]
  %v1982 = vld [vmem:[%s3 + $0x6cc] sm:$0xff]
  %v1983 = vld [vmem:[%s3 + $0x6d4] sm:$0xff]
  %v1984 = vld [vmem:[%s3 + $0x6dc] sm:$0xf]
  %v1985 = vld [vmem:[%s3 + $0x6e0] sm:$0xff]
  %v1986 = vld [vmem:[%s3 + $0x6e8] sm:$0xff]
  %v1987 = vld [vmem:[%s3 + $0x6f0] sm:$0xf]
  %v1988 = vld [vmem:[%s3 + $0x6f4] sm:$0xff]
  %v1989 = vld [vmem:[%s3 + $0x6fc] sm:$0xff]
  %v1990 = vld [vmem:[%s3 + $0x704] sm:$0xf]
  %v1991 = vld [vmem:[%s3 + $0x708] sm:$0xff]
  %v1992 = vld [vmem:[%s3 + $0x710] sm:$0xff]
  %v1993 = vld [vmem:[%s3 + $0x718] sm:$0xf]
  %v1994 = vld [vmem:[%s3 + $0x71c] sm:$0xff]
  %v1995 = vld [vmem:[%s3 + $0x724] sm:$0xff]
  %v1996 = vld [vmem:[%s3 + $0x72c] sm:$0xf]
  %v1997 = vld [vmem:[%s3 + $0x730] sm:$0xff]
  %v1998 = vld [vmem:[%s3 + $0x738] sm:$0xff]
  %v1999 = vld [vmem:[%s3 + $0x740] sm:$0xf]
  %v2000 = vld [vmem:[%s3 + $0x744] sm:$0xff]
  %v2001 = vld [vmem:[%s3 + $0x74c] sm:$0xff]
  %v2002 = vld [vmem:[%s3 + $0x754] sm:$0xf]
  %v2003 = vld [vmem:[%s3 + $0x758] sm:$0xff]
  %v2004 = vld [vmem:[%s3 + $0x760] sm:$0xff]
  %v2005 = vld [vmem:[%s3 + $0x768] sm:$0xf]
  %v2006 = vld [vmem:[%s3 + $0x76c] sm:$0xff]
  %v2007 = vld [vmem:[%s3 + $0x774] sm:$0xff]
  %v2008 = vld [vmem:[%s3 + $0x77c] sm:$0xf]
  %v2009 = vld [vmem:[%s3 + $0x780] sm:$0xff]
  %v2010 = vld [vmem:[%s3 + $0x788] sm:$0xff]
  %v2011 = vld [vmem:[%s3 + $0x790] sm:$0xf]
  %v2012 = vld [vmem:[%s3 + $0x794] sm:$0xff]
  %v2013 = vld [vmem:[%s3 + $0x79c] sm:$0xff]
  %v2014 = vld [vmem:[%s3 + $0x7a4] sm:$0xf]
  %v2015 = vld [vmem:[%s3 + $0x7a8] sm:$0xff]
  %v2016 = vld [vmem:[%s3 + $0x7b0] sm:$0xff]
  %v2017 = vld [vmem:[%s3 + $0x7b8] sm:$0xf]
  %v2018 = vld [vmem:[%s3 + $0x7bc] sm:$0xff]
  %v2019 = vld [vmem:[%s3 + $0x7c4] sm:$0xff]
  %v2020 = vld [vmem:[%s3 + $0x7cc] sm:$0xf]
  %v2021 = vld [vmem:[%s3 + $0x7d0] sm:$0xff]
  %v2022 = vld [vmem:[%s3 + $0x7d8] sm:$0xff]
  %v2023 = vld [vmem:[%s3 + $0x7e0] sm:$0xf]
  %v2024 = vld [vmem:[%s3 + $0x7e4] sm:$0xff]
  %v2025 = vld [vmem:[%s3 + $0x7ec] sm:$0xff]
  %v2026 = vld [vmem:[%s3 + $0x7f4] sm:$0xf]
  %v2027 = vld [vmem:[%s3 + $0x7f8] sm:$0xff]
  %v2028 = vld [vmem:[%s3 + $0x800] sm:$0xff]
  %v2029 = vld [vmem:[%s3 + $0x808] sm:$0xf]
  %v2030 = vld [vmem:[%s3 + $0x80c] sm:$0xff]
  %v2031 = vld [vmem:[%s3 + $0x814] sm:$0xff]
  %v2032 = vld [vmem:[%s3 + $0x81c] sm:$0xf]
  %v2033 = vld [vmem:[%s3 + $0x820] sm:$0xff]
  %v2034 = vld [vmem:[%s3 + $0x828] sm:$0xff]
  %v2035 = vld [vmem:[%s3 + $0x830] sm:$0xf]
  %v2036 = vld [vmem:[%s3 + $0x834] sm:$0xff]
  %v2037 = vld [vmem:[%s3 + $0x83c] sm:$0xff]
  %v2038 = vld [vmem:[%s3 + $0x844] sm:$0xf]
  %v2039 = vld [vmem:[%s3 + $0x848] sm:$0xff]
  %v2040 = vld [vmem:[%s3 + $0x850] sm:$0xff]
  %v2041 = vld [vmem:[%s3 + $0x858] sm:$0xf]
  %v2042 = vld [vmem:[%s3 + $0x85c] sm:$0xff]
  %v2043 = vld [vmem:[%s3 + $0x864] sm:$0xff]
  %v2044 = vld [vmem:[%s3 + $0x86c] sm:$0xf]
  %v2045 = vld [vmem:[%s3 + $0x870] sm:$0xff]
  %v2046 = vld [vmem:[%s3 + $0x878] sm:$0xff]
  %v2047 = vld [vmem:[%s3 + $0x880] sm:$0xf]
  %v2048 = vld [vmem:[%s3 + $0x884] sm:$0xff]
  %v2049 = vld [vmem:[%s3 + $0x88c] sm:$0xff]
  %v2050 = vld [vmem:[%s3 + $0x894] sm:$0xf]
  %v2051 = vld [vmem:[%s3 + $0x898] sm:$0xff]
  %v2052 = vld [vmem:[%s3 + $0x8a0] sm:$0xff]
  %v2053 = vld [vmem:[%s3 + $0x8a8] sm:$0xf]
  %v2054 = vld [vmem:[%s3 + $0x8ac] sm:$0xff]
  %v2055 = vld [vmem:[%s3 + $0x8b4] sm:$0xff]
  %v2056 = vld [vmem:[%s3 + $0x8bc] sm:$0xf]
  %v2057 = vld [vmem:[%s3 + $0x8c0] sm:$0xff]
  %v2058 = vld [vmem:[%s3 + $0x8c8] sm:$0xff]
  %v2059 = vld [vmem:[%s3 + $0x8d0] sm:$0xf]
  %v2060 = vld [vmem:[%s3 + $0x8d4] sm:$0xff]
  %v2061 = vld [vmem:[%s3 + $0x8dc] sm:$0xff]
  %v2062 = vld [vmem:[%s3 + $0x8e4] sm:$0xf]
  %v2063 = vld [vmem:[%s3 + $0x8e8] sm:$0xff]
  %v2064 = vld [vmem:[%s3 + $0x8f0] sm:$0xff]
  %v2065 = vld [vmem:[%s3 + $0x8f8] sm:$0xf]
  %v2066 = vld [vmem:[%s3 + $0x8fc] sm:$0xff]
  %v2067 = vld [vmem:[%s3 + $0x904] sm:$0xff]
  %v2068 = vld [vmem:[%s3 + $0x90c] sm:$0xf]
  %v2069 = vld [vmem:[%s3 + $0x910] sm:$0xff]
  %v2070 = vld [vmem:[%s3 + $0x918] sm:$0xff]
  %v2071 = vld [vmem:[%s3 + $0x920] sm:$0xf]
  %v2072 = vld [vmem:[%s3 + $0x924] sm:$0xff]
  %v2073 = vld [vmem:[%s3 + $0x92c] sm:$0xff]
  %v2074 = vld [vmem:[%s3 + $0x934] sm:$0xf]
  %v2075 = vld [vmem:[%s3 + $0x938] sm:$0xff]
  %v2076 = vld [vmem:[%s3 + $0x940] sm:$0xff]
  %v2077 = vld [vmem:[%s3 + $0x948] sm:$0xf]
  %v2078 = vld [vmem:[%s3 + $0x94c] sm:$0xff]
  %v2079 = vld [vmem:[%s3 + $0x954] sm:$0xff]
  %v2080 = vld [vmem:[%s3 + $0x95c] sm:$0xf]
  %v2081 = vld [vmem:[%s3 + $0x960] sm:$0xff]
  %v2082 = vld [vmem:[%s3 + $0x968] sm:$0xff]
  %v2083 = vld [vmem:[%s3 + $0x970] sm:$0xf]
  %v2084 = vld [vmem:[%s3 + $0x974] sm:$0xff]
  %v2085 = vld [vmem:[%s3 + $0x97c] sm:$0xff]
  %v2086 = vld [vmem:[%s3 + $0x984] sm:$0xf]
  %v2087 = vld [vmem:[%s3 + $0x988] sm:$0xff]
  %v2088 = vld [vmem:[%s3 + $0x990] sm:$0xff]
  %v2089 = vld [vmem:[%s3 + $0x998] sm:$0xf]
  %v2090 = vld [vmem:[%s3 + $0x99c] sm:$0xff]
  %v2091 = vld [vmem:[%s3 + $0x9a4] sm:$0xff]
  %v2092 = vld [vmem:[%s3 + $0x9ac] sm:$0xf]
  %v2093 = vld [vmem:[%s3 + $0x9b0] sm:$0xff]
  %v2094 = vld [vmem:[%s3 + $0x9b8] sm:$0xff]
  %v2095 = vld [vmem:[%s3 + $0x9c0] sm:$0xf]
  %v2096 = vld [vmem:[%s3 + $0x9c4] sm:$0xff]
  %v2097 = vld [vmem:[%s3 + $0x9cc] sm:$0xff]
  %v2098 = vld [vmem:[%s3 + $0x9d4] sm:$0xf]
  %v2099 = vld [vmem:[%s3 + $0x9d8] sm:$0xff]
  %v2100 = vld [vmem:[%s3 + $0x9e0] sm:$0xff]
  %v2101 = vld [vmem:[%s3 + $0x9e8] sm:$0xf]
  %v2102 = vld [vmem:[%s3 + $0x9ec] sm:$0xff]
  %v2103 = vld [vmem:[%s3 + $0x9f4] sm:$0xff]
  %v2104 = vld [vmem:[%s3 + $0x9fc] sm:$0xf]
  %v2105 = vld [vmem:[%s3 + $0xa00] sm:$0xff]
  %v2106 = vld [vmem:[%s3 + $0xa08] sm:$0xff]
  %v2107 = vld [vmem:[%s3 + $0xa10] sm:$0xf]
  %v2108 = vld [vmem:[%s3 + $0xa14] sm:$0xff]
  %v2109 = vld [vmem:[%s3 + $0xa1c] sm:$0xff]
  %v2110 = vld [vmem:[%s3 + $0xa24] sm:$0xf]
  %v2111 = vld [vmem:[%s3 + $0xa28] sm:$0xff]
  %v2112 = vld [vmem:[%s3 + $0xa30] sm:$0xff]
  %v2113 = vld [vmem:[%s3 + $0xa38] sm:$0xf]
  %v2114 = vld [vmem:[%s3 + $0xa3c] sm:$0xff]
  %v2115 = vld [vmem:[%s3 + $0xa44] sm:$0xff]
  %v2116 = vld [vmem:[%s3 + $0xa4c] sm:$0xf]
  %v2117 = vld [vmem:[%s3 + $0xa50] sm:$0xff]
  %v2118 = vld [vmem:[%s3 + $0xa58] sm:$0xff]
  %v2119 = vld [vmem:[%s3 + $0xa60] sm:$0xf]
  %v2120 = vld [vmem:[%s3 + $0xa64] sm:$0xff]
  %v2121 = vld [vmem:[%s3 + $0xa6c] sm:$0xff]
  %v2122 = vld [vmem:[%s3 + $0xa74] sm:$0xf]
  %v2123 = vld [vmem:[%s3 + $0xa78] sm:$0xff]
  %v2124 = vld [vmem:[%s3 + $0xa80] sm:$0xff]
  %v2125 = vld [vmem:[%s3 + $0xa88] sm:$0xf]
  %v2126 = vld [vmem:[%s3 + $0xa8c] sm:$0xff]
  %v2127 = vld [vmem:[%s3 + $0xa94] sm:$0xff]
  %v2128 = vld [vmem:[%s3 + $0xa9c] sm:$0xf]
  %v2129 = vld [vmem:[%s3 + $0xaa0] sm:$0xff]
  %v2130 = vld [vmem:[%s3 + $0xaa8] sm:$0xff]
  %v2131 = vld [vmem:[%s3 + $0xab0] sm:$0xf]
  %v2132 = vld [vmem:[%s3 + $0xab4] sm:$0xff]
  %v2133 = vld [vmem:[%s3 + $0xabc] sm:$0xff]
  %v2134 = vld [vmem:[%s3 + $0xac4] sm:$0xf]
  %v2135 = vld [vmem:[%s3 + $0xac8] sm:$0xff]
  %v2136 = vld [vmem:[%s3 + $0xad0] sm:$0xff]
  %v2137 = vld [vmem:[%s3 + $0xad8] sm:$0xf]
  %v2138 = vld [vmem:[%s3 + $0xadc] sm:$0xff]
  %v2139 = vld [vmem:[%s3 + $0xae4] sm:$0xff]
  %v2140 = vld [vmem:[%s3 + $0xaec] sm:$0xf]
  %v2141 = vld [vmem:[%s3 + $0xaf0] sm:$0xff]
  %v2142 = vld [vmem:[%s3 + $0xaf8] sm:$0xff]
  %v2143 = vld [vmem:[%s3 + $0xb00] sm:$0xf]
  %v2144 = vld [vmem:[%s3 + $0xb04] sm:$0xff]
  %v2145 = vld [vmem:[%s3 + $0xb0c] sm:$0xff]
  %v2146 = vld [vmem:[%s3 + $0xb14] sm:$0xf]
  %v2147 = vld [vmem:[%s3 + $0xb18] sm:$0xff]
  %v2148 = vld [vmem:[%s3 + $0xb20] sm:$0xff]
  %v2149 = vld [vmem:[%s3 + $0xb28] sm:$0xf]
  %v2150 = vld [vmem:[%s3 + $0xb2c] sm:$0xff]
  %v2151 = vld [vmem:[%s3 + $0xb34] sm:$0xff]
  %v2152 = vld [vmem:[%s3 + $0xb3c] sm:$0xf]
  %v2153 = vld [vmem:[%s3 + $0xb40] sm:$0xff]
  %v2154 = vld [vmem:[%s3 + $0xb48] sm:$0xff]
  %v2155 = vld [vmem:[%s3 + $0xb50] sm:$0xf]
  %v2156 = vld [vmem:[%s3 + $0xb54] sm:$0xff]
  %v2157 = vld [vmem:[%s3 + $0xb5c] sm:$0xff]
  %v2158 = vld [vmem:[%s3 + $0xb64] sm:$0xf]
  %v2159 = vld [vmem:[%s3 + $0xb68] sm:$0xff]
  %v2160 = vld [vmem:[%s3 + $0xb70] sm:$0xff]
  %v2161 = vld [vmem:[%s3 + $0xb78] sm:$0xf]
  %v2162 = vld [vmem:[%s3 + $0xb7c] sm:$0xff]
  %v2163 = vld [vmem:[%s3 + $0xb84] sm:$0xff]
  %v2164 = vld [vmem:[%s3 + $0xb8c] sm:$0xf]
  %v2165 = vld [vmem:[%s3 + $0xb90] sm:$0xff]
  %v2166 = vld [vmem:[%s3 + $0xb98] sm:$0xff]
  %v2167 = vld [vmem:[%s3 + $0xba0] sm:$0xf]
  %v2168 = vld [vmem:[%s3 + $0xba4] sm:$0xff]
  %v2169 = vld [vmem:[%s3 + $0xbac] sm:$0xff]
  %v2170 = vld [vmem:[%s3 + $0xbb4] sm:$0xf]
  %v2171 = vld [vmem:[%s3 + $0xbb8] sm:$0xff]
  %v2172 = vld [vmem:[%s3 + $0xbc0] sm:$0xff]
  %v2173 = vld [vmem:[%s3 + $0xbc8] sm:$0xf]
  %v2174 = vld [vmem:[%s3 + $0xbcc] sm:$0xff]
  %v2175 = vld [vmem:[%s3 + $0xbd4] sm:$0xff]
  %v2176 = vld [vmem:[%s3 + $0xbdc] sm:$0xf]
  %v2177 = vld [vmem:[%s3 + $0xbe0] sm:$0xff]
  %v2178 = vld [vmem:[%s3 + $0xbe8] sm:$0xff]
  %v2179 = vld [vmem:[%s3 + $0xbf0] sm:$0xf]
  %v2180 = vld [vmem:[%s3 + $0xbf4] sm:$0xff]
  %v2181 = vld [vmem:[%s3 + $0xbfc] sm:$0xff]
  %v2182 = vld [vmem:[%s3 + $0xc04] sm:$0xf]
  %v2183 = vld [vmem:[%s3 + $0xc08] sm:$0xff]
  %v2184 = vld [vmem:[%s3 + $0xc10] sm:$0xff]
  %v2185 = vld [vmem:[%s3 + $0xc18] sm:$0xf]
  %v2186 = vld [vmem:[%s3 + $0xc1c] sm:$0xff]
  %v2187 = vld [vmem:[%s3 + $0xc24] sm:$0xff]
  %v2188 = vld [vmem:[%s3 + $0xc2c] sm:$0xf]
  %v2189 = vld [vmem:[%s3 + $0xc30] sm:$0xff]
  %v2190 = vld [vmem:[%s3 + $0xc38] sm:$0xff]
  %v2191 = vld [vmem:[%s3 + $0xc40] sm:$0xf]
  %v2192 = vld [vmem:[%s3 + $0xc44] sm:$0xff]
  %v2193 = vld [vmem:[%s3 + $0xc4c] sm:$0xff]
  %v2194 = vld [vmem:[%s3 + $0xc54] sm:$0xf]
  %v2195 = vld [vmem:[%s3 + $0xc58] sm:$0xff]
  %v2196 = vld [vmem:[%s3 + $0xc60] sm:$0xff]
  %v2197 = vld [vmem:[%s3 + $0xc68] sm:$0xf]
  %v2198 = vld [vmem:[%s3 + $0xc6c] sm:$0xff]
  %v2199 = vld [vmem:[%s3 + $0xc74] sm:$0xff]
  %v2200 = vld [vmem:[%s3 + $0xc7c] sm:$0xf]
  %v2201 = vld [vmem:[%s3 + $0xc80] sm:$0xff]
  %v2202 = vld [vmem:[%s3 + $0xc88] sm:$0xff]
  %v2203 = vld [vmem:[%s3 + $0xc90] sm:$0xf]
  %v2204 = vld [vmem:[%s3 + $0xc94] sm:$0xff]
  %v2205 = vld [vmem:[%s3 + $0xc9c] sm:$0xff]
  %v2206 = vld [vmem:[%s3 + $0xca4] sm:$0xf]
  %v2207 = vld [vmem:[%s3 + $0xca8] sm:$0xff]
  %v2208 = vld [vmem:[%s3 + $0xcb0] sm:$0xff]
  %v2209 = vld [vmem:[%s3 + $0xcb8] sm:$0xf]
  %v2210 = vld [vmem:[%s3 + $0xcbc] sm:$0xff]
  %v2211 = vld [vmem:[%s3 + $0xcc4] sm:$0xff]
  %v2212 = vld [vmem:[%s3 + $0xccc] sm:$0xf]
  %v2213 = vld [vmem:[%s3 + $0xcd0] sm:$0xff]
  %v2214 = vld [vmem:[%s3 + $0xcd8] sm:$0xff]
  %v2215 = vld [vmem:[%s3 + $0xce0] sm:$0xf]
  %v2216 = vld [vmem:[%s3 + $0xce4] sm:$0xff]
  %v2217 = vld [vmem:[%s3 + $0xcec] sm:$0xff]
  %v2218 = vld [vmem:[%s3 + $0xcf4] sm:$0xf]
  %v2219 = vld [vmem:[%s3 + $0xcf8] sm:$0xff]
  %v2220 = vld [vmem:[%s3 + $0xd00] sm:$0xff]
  %v2221 = vld [vmem:[%s3 + $0xd08] sm:$0xf]
  %v2222 = vld [vmem:[%s3 + $0xd0c] sm:$0xff]
  %v2223 = vld [vmem:[%s3 + $0xd14] sm:$0xff]
  %v2224 = vld [vmem:[%s3 + $0xd1c] sm:$0xf]
  %v2225 = vld [vmem:[%s3 + $0xd20] sm:$0xff]
  %v2226 = vld [vmem:[%s3 + $0xd28] sm:$0xff]
  %v2227 = vld [vmem:[%s3 + $0xd30] sm:$0xf]
  %v2228 = vld [vmem:[%s3 + $0xd34] sm:$0xff]
  %v2229 = vld [vmem:[%s3 + $0xd3c] sm:$0xff]
  %v2230 = vld [vmem:[%s3 + $0xd44] sm:$0xf]
  %v2231 = vld [vmem:[%s3 + $0xd48] sm:$0xff]
  %v2232 = vld [vmem:[%s3 + $0xd50] sm:$0xff]
  %v2233 = vld [vmem:[%s3 + $0xd58] sm:$0xf]
  %v2234 = vld [vmem:[%s3 + $0xd5c] sm:$0xff]
  %v2235 = vld [vmem:[%s3 + $0xd64] sm:$0xff]
  %v2236 = vld [vmem:[%s3 + $0xd6c] sm:$0xf]
  %v2237 = vld [vmem:[%s3 + $0xd70] sm:$0xff]
  %v2238 = vld [vmem:[%s3 + $0xd78] sm:$0xff]
  %v2239 = vld [vmem:[%s3 + $0xd80] sm:$0xf]
  %v2240 = vld [vmem:[%s3 + $0xd84] sm:$0xff]
  %v2241 = vld [vmem:[%s3 + $0xd8c] sm:$0xff]
  %v2242 = vld [vmem:[%s3 + $0xd94] sm:$0xf]
  %v2243 = vld [vmem:[%s3 + $0xd98] sm:$0xff]
  %v2244 = vld [vmem:[%s3 + $0xda0] sm:$0xff]
  %v2245 = vld [vmem:[%s3 + $0xda8] sm:$0xf]
  %v2246 = vld [vmem:[%s3 + $0xdac] sm:$0xff]
  %v2247 = vld [vmem:[%s3 + $0xdb4] sm:$0xff]
  %v2248 = vld [vmem:[%s3 + $0xdbc] sm:$0xf]
  %v2249 = vld [vmem:[%s3 + $0xdc0] sm:$0xff]
  %v2250 = vld [vmem:[%s3 + $0xdc8] sm:$0xff]
  %v2251 = vld [vmem:[%s3 + $0xdd0] sm:$0xf]
  %v2252 = vld [vmem:[%s3 + $0xdd4] sm:$0xff]
  %v2253 = vld [vmem:[%s3 + $0xddc] sm:$0xff]
  %v2254 = vld [vmem:[%s3 + $0xde4] sm:$0xf]
  %v2255 = vld [vmem:[%s3 + $0xde8] sm:$0xff]
  %v2256 = vld [vmem:[%s3 + $0xdf0] sm:$0xff]
  %v2257 = vld [vmem:[%s3 + $0xdf8] sm:$0xf]
  %v2258 = vld [vmem:[%s3 + $0xdfc] sm:$0xff]
  %v2259 = vld [vmem:[%s3 + $0xe04] sm:$0xff]
  %v2260 = vld [vmem:[%s3 + $0xe0c] sm:$0xf]
  %v2261 = vld [vmem:[%s3 + $0xe10] sm:$0xff]
  %v2262 = vld [vmem:[%s3 + $0xe18] sm:$0xff]
  %v2263 = vld [vmem:[%s3 + $0xe20] sm:$0xf]
  %v2264 = vld [vmem:[%s3 + $0xe24] sm:$0xff]
  %v2265 = vld [vmem:[%s3 + $0xe2c] sm:$0xff]
  %v2266 = vld [vmem:[%s3 + $0xe34] sm:$0xf]
  %v2267 = vld [vmem:[%s3 + $0xe38] sm:$0xff]
  %v2268 = vld [vmem:[%s3 + $0xe40] sm:$0xff]
  %v2269 = vld [vmem:[%s3 + $0xe48] sm:$0xf]
  %v2270 = vld [vmem:[%s3 + $0xe4c] sm:$0xff]
  %v2271 = vld [vmem:[%s3 + $0xe54] sm:$0xff]
  %v2272 = vld [vmem:[%s3 + $0xe5c] sm:$0xf]
  %v2273 = vld [vmem:[%s3 + $0xe60] sm:$0xff]
  %v2274 = vld [vmem:[%s3 + $0xe68] sm:$0xff]
  %v2275 = vld [vmem:[%s3 + $0xe70] sm:$0xf]
  %v2276 = vld [vmem:[%s3 + $0xe74] sm:$0xff]
  %v2277 = vld [vmem:[%s3 + $0xe7c] sm:$0xff]
  %v2278 = vld [vmem:[%s3 + $0xe84] sm:$0xf]
  %v2279 = vld [vmem:[%s3 + $0xe88] sm:$0xff]
  %v2280 = vld [vmem:[%s3 + $0xe90] sm:$0xff]
  %v2281 = vld [vmem:[%s3 + $0xe98] sm:$0xf]
  %v2282 = vld [vmem:[%s3 + $0xe9c] sm:$0xff]
  %v2283 = vld [vmem:[%s3 + $0xea4] sm:$0xff]
  %v2284 = vld [vmem:[%s3 + $0xeac] sm:$0xf]
  %v2285 = vld [vmem:[%s3 + $0xeb0] sm:$0xff]
  %v2286 = vld [vmem:[%s3 + $0xeb8] sm:$0xff]
  %v2287 = vld [vmem:[%s3 + $0xec0] sm:$0xf]
  %v2288 = vld [vmem:[%s3 + $0xec4] sm:$0xff]
  %v2289 = vld [vmem:[%s3 + $0xecc] sm:$0xff]
  %v2290 = vld [vmem:[%s3 + $0xed4] sm:$0xf]
  %v2291 = vld [vmem:[%s3 + $0xed8] sm:$0xff]
  %v2292 = vld [vmem:[%s3 + $0xee0] sm:$0xff]
  %v2293 = vld [vmem:[%s3 + $0xee8] sm:$0xf]
  %v2294 = vld [vmem:[%s3 + $0xeec] sm:$0xff]
  %v2295 = vld [vmem:[%s3 + $0xef4] sm:$0xff]
  %v2296 = vld [vmem:[%s3 + $0xefc] sm:$0xf]
  %v2297 = vld [vmem:[%s3 + $0xf00] sm:$0xff]
  %v2298 = vld [vmem:[%s3 + $0xf08] sm:$0xff]
  %v2299 = vld [vmem:[%s3 + $0xf10] sm:$0xf]
  %v2300 = vld [vmem:[%s3 + $0xf14] sm:$0xff]
  %v2301 = vld [vmem:[%s3 + $0xf1c] sm:$0xff]
  %v2302 = vld [vmem:[%s3 + $0xf24] sm:$0xf]
  %v2303 = vld [vmem:[%s3 + $0xf28] sm:$0xff]
  %v2304 = vld [vmem:[%s3 + $0xf30] sm:$0xff]
  %v2305 = vld [vmem:[%s3 + $0xf38] sm:$0xf]
  %v2306 = vld [vmem:[%s3 + $0xf3c] sm:$0xff]
  %v2307 = vld [vmem:[%s3 + $0xf44] sm:$0xff]
  %v2308 = vld [vmem:[%s3 + $0xf4c] sm:$0xf]
  %v2309 = vld [vmem:[%s4] sm:$0x1f]
  %v2311 = vperm.slane %v2309, 0
  %v2312 = vperm.slane %v2309, 1
  %v2313 = vperm.slane %v2309, 2
  %v2314 = vperm.slane %v2309, 3
  %v2315 = vperm.slane %v2309, 4
  %v2909 = vunpack.c.l.b16 %v1721
  %v2910 = vunpack.c.h.b16 %v1721
  %v2911 = vunpack.c.l.b16 %v1722
  %v2912 = vunpack.c.h.b16 %v1722
  %v2913 = vunpack.c.l.b16 %v1723
  %v2914 = vunpack.c.l.b16 %v1724
  %v2915 = vunpack.c.h.b16 %v1724
  %v2916 = vunpack.c.l.b16 %v1725
  %v2917 = vunpack.c.h.b16 %v1725
  %v2918 = vunpack.c.l.b16 %v1726
  %v2919 = vunpack.c.l.b16 %v1727
  %v2920 = vunpack.c.h.b16 %v1727
  %v2921 = vunpack.c.l.b16 %v1728
  %v2922 = vunpack.c.h.b16 %v1728
  %v2923 = vunpack.c.l.b16 %v1729
  %v2924 = vunpack.c.l.b16 %v1730
  %v2925 = vunpack.c.h.b16 %v1730
  %v2926 = vunpack.c.l.b16 %v1731
  %v2927 = vunpack.c.h.b16 %v1731
  %v2928 = vunpack.c.l.b16 %v1732
  %v2929 = vunpack.c.l.b16 %v1733
  %v2930 = vunpack.c.h.b16 %v1733
  %v2931 = vunpack.c.l.b16 %v1734
  %v2932 = vunpack.c.h.b16 %v1734
  %v2933 = vunpack.c.l.b16 %v1735
  %v2934 = vunpack.c.l.b16 %v1736
  %v2935 = vunpack.c.h.b16 %v1736
  %v2936 = vunpack.c.l.b16 %v1737
  %v2937 = vunpack.c.h.b16 %v1737
  %v2938 = vunpack.c.l.b16 %v1738
  %v2939 = vunpack.c.l.b16 %v1739
  %v2940 = vunpack.c.h.b16 %v1739
  %v2941 = vunpack.c.l.b16 %v1740
  %v2942 = vunpack.c.h.b16 %v1740
  %v2943 = vunpack.c.l.b16 %v1741
  %v2944 = vunpack.c.l.b16 %v1742
  %v2945 = vunpack.c.h.b16 %v1742
  %v2946 = vunpack.c.l.b16 %v1743
  %v2947 = vunpack.c.h.b16 %v1743
  %v2948 = vunpack.c.l.b16 %v1744
  %v2949 = vunpack.c.l.b16 %v1745
  %v2950 = vunpack.c.h.b16 %v1745
  %v2951 = vunpack.c.l.b16 %v1746
  %v2952 = vunpack.c.h.b16 %v1746
  %v2953 = vunpack.c.l.b16 %v1747
  %v2954 = vunpack.c.l.b16 %v1748
  %v2955 = vunpack.c.h.b16 %v1748
  %v2956 = vunpack.c.l.b16 %v1749
  %v2957 = vunpack.c.h.b16 %v1749
  %v2958 = vunpack.c.l.b16 %v1750
  %v2959 = vunpack.c.l.b16 %v1751
  %v2960 = vunpack.c.h.b16 %v1751
  %v2961 = vunpack.c.l.b16 %v1752
  %v2962 = vunpack.c.h.b16 %v1752
  %v2963 = vunpack.c.l.b16 %v1753
  %v2964 = vunpack.c.l.b16 %v1754
  %v2965 = vunpack.c.h.b16 %v1754
  %v2966 = vunpack.c.l.b16 %v1755
  %v2967 = vunpack.c.h.b16 %v1755
  %v2968 = vunpack.c.l.b16 %v1756
  %v2969 = vunpack.c.l.b16 %v1757
  %v2970 = vunpack.c.h.b16 %v1757
  %v2971 = vunpack.c.l.b16 %v1758
  %v2972 = vunpack.c.h.b16 %v1758
  %v2973 = vunpack.c.l.b16 %v1759
  %v2974 = vunpack.c.l.b16 %v1760
  %v2975 = vunpack.c.h.b16 %v1760
  %v2976 = vunpack.c.l.b16 %v1761
  %v2977 = vunpack.c.h.b16 %v1761
  %v2978 = vunpack.c.l.b16 %v1762
  %v2979 = vunpack.c.l.b16 %v1763
  %v2980 = vunpack.c.h.b16 %v1763
  %v2981 = vunpack.c.l.b16 %v1764
  %v2982 = vunpack.c.h.b16 %v1764
  %v2983 = vunpack.c.l.b16 %v1765
  %v2984 = vunpack.c.l.b16 %v1766
  %v2985 = vunpack.c.h.b16 %v1766
  %v2986 = vunpack.c.l.b16 %v1767
  %v2987 = vunpack.c.h.b16 %v1767
  %v2988 = vunpack.c.l.b16 %v1768
  %v2989 = vunpack.c.l.b16 %v1769
  %v2990 = vunpack.c.h.b16 %v1769
  %v2991 = vunpack.c.l.b16 %v1770
  %v2992 = vunpack.c.h.b16 %v1770
  %v2993 = vunpack.c.l.b16 %v1771
  %v2994 = vunpack.c.l.b16 %v1772
  %v2995 = vunpack.c.h.b16 %v1772
  %v2996 = vunpack.c.l.b16 %v1773
  %v2997 = vunpack.c.h.b16 %v1773
  %v2998 = vunpack.c.l.b16 %v1774
  %v2999 = vunpack.c.l.b16 %v1775
  %v3000 = vunpack.c.h.b16 %v1775
  %v3001 = vunpack.c.l.b16 %v1776
  %v3002 = vunpack.c.h.b16 %v1776
  %v3003 = vunpack.c.l.b16 %v1777
  %v3004 = vunpack.c.l.b16 %v1778
  %v3005 = vunpack.c.h.b16 %v1778
  %v3006 = vunpack.c.l.b16 %v1779
  %v3007 = vunpack.c.h.b16 %v1779
  %v3008 = vunpack.c.l.b16 %v1780
  %v3009 = vunpack.c.l.b16 %v1781
  %v3010 = vunpack.c.h.b16 %v1781
  %v3011 = vunpack.c.l.b16 %v1782
  %v3012 = vunpack.c.h.b16 %v1782
  %v3013 = vunpack.c.l.b16 %v1783
  %v3014 = vunpack.c.l.b16 %v1784
  %v3015 = vunpack.c.h.b16 %v1784
  %v3016 = vunpack.c.l.b16 %v1785
  %v3017 = vunpack.c.h.b16 %v1785
  %v3018 = vunpack.c.l.b16 %v1786
  %v3019 = vunpack.c.l.b16 %v1787
  %v3020 = vunpack.c.h.b16 %v1787
  %v3021 = vunpack.c.l.b16 %v1788
  %v3022 = vunpack.c.h.b16 %v1788
  %v3023 = vunpack.c.l.b16 %v1789
  %v3024 = vunpack.c.l.b16 %v1790
  %v3025 = vunpack.c.h.b16 %v1790
  %v3026 = vunpack.c.l.b16 %v1791
  %v3027 = vunpack.c.h.b16 %v1791
  %v3028 = vunpack.c.l.b16 %v1792
  %v3029 = vunpack.c.l.b16 %v1793
  %v3030 = vunpack.c.h.b16 %v1793
  %v3031 = vunpack.c.l.b16 %v1794
  %v3032 = vunpack.c.h.b16 %v1794
  %v3033 = vunpack.c.l.b16 %v1795
  %v3034 = vunpack.c.l.b16 %v1796
  %v3035 = vunpack.c.h.b16 %v1796
  %v3036 = vunpack.c.l.b16 %v1797
  %v3037 = vunpack.c.h.b16 %v1797
  %v3038 = vunpack.c.l.b16 %v1798
  %v3039 = vunpack.c.l.b16 %v1799
  %v3040 = vunpack.c.h.b16 %v1799
  %v3041 = vunpack.c.l.b16 %v1800
  %v3042 = vunpack.c.h.b16 %v1800
  %v3043 = vunpack.c.l.b16 %v1801
  %v3044 = vunpack.c.l.b16 %v1802
  %v3045 = vunpack.c.h.b16 %v1802
  %v3046 = vunpack.c.l.b16 %v1803
  %v3047 = vunpack.c.h.b16 %v1803
  %v3048 = vunpack.c.l.b16 %v1804
  %v3049 = vunpack.c.l.b16 %v1805
  %v3050 = vunpack.c.h.b16 %v1805
  %v3051 = vunpack.c.l.b16 %v1806
  %v3052 = vunpack.c.h.b16 %v1806
  %v3053 = vunpack.c.l.b16 %v1807
  %v3054 = vunpack.c.l.b16 %v1808
  %v3055 = vunpack.c.h.b16 %v1808
  %v3056 = vunpack.c.l.b16 %v1809
  %v3057 = vunpack.c.h.b16 %v1809
  %v3058 = vunpack.c.l.b16 %v1810
  %v3059 = vunpack.c.l.b16 %v1811
  %v3060 = vunpack.c.h.b16 %v1811
  %v3061 = vunpack.c.l.b16 %v1812
  %v3062 = vunpack.c.h.b16 %v1812
  %v3063 = vunpack.c.l.b16 %v1813
  %v3064 = vunpack.c.l.b16 %v1814
  %v3065 = vunpack.c.h.b16 %v1814
  %v3066 = vunpack.c.l.b16 %v1815
  %v3067 = vunpack.c.h.b16 %v1815
  %v3068 = vunpack.c.l.b16 %v1816
  %v3069 = vunpack.c.l.b16 %v1817
  %v3070 = vunpack.c.h.b16 %v1817
  %v3071 = vunpack.c.l.b16 %v1818
  %v3072 = vunpack.c.h.b16 %v1818
  %v3073 = vunpack.c.l.b16 %v1819
  %v3074 = vunpack.c.l.b16 %v1820
  %v3075 = vunpack.c.h.b16 %v1820
  %v3076 = vunpack.c.l.b16 %v1821
  %v3077 = vunpack.c.h.b16 %v1821
  %v3078 = vunpack.c.l.b16 %v1822
  %v3079 = vunpack.c.l.b16 %v1823
  %v3080 = vunpack.c.h.b16 %v1823
  %v3081 = vunpack.c.l.b16 %v1824
  %v3082 = vunpack.c.h.b16 %v1824
  %v3083 = vunpack.c.l.b16 %v1825
  %v3084 = vunpack.c.l.b16 %v1826
  %v3085 = vunpack.c.h.b16 %v1826
  %v3086 = vunpack.c.l.b16 %v1827
  %v3087 = vunpack.c.h.b16 %v1827
  %v3088 = vunpack.c.l.b16 %v1828
  %v3089 = vunpack.c.l.b16 %v1829
  %v3090 = vunpack.c.h.b16 %v1829
  %v3091 = vunpack.c.l.b16 %v1830
  %v3092 = vunpack.c.h.b16 %v1830
  %v3093 = vunpack.c.l.b16 %v1831
  %v3094 = vunpack.c.l.b16 %v1832
  %v3095 = vunpack.c.h.b16 %v1832
  %v3096 = vunpack.c.l.b16 %v1833
  %v3097 = vunpack.c.h.b16 %v1833
  %v3098 = vunpack.c.l.b16 %v1834
  %v3099 = vunpack.c.l.b16 %v1835
  %v3100 = vunpack.c.h.b16 %v1835
  %v3101 = vunpack.c.l.b16 %v1836
  %v3102 = vunpack.c.h.b16 %v1836
  %v3103 = vunpack.c.l.b16 %v1837
  %v3104 = vunpack.c.l.b16 %v1838
  %v3105 = vunpack.c.h.b16 %v1838
  %v3106 = vunpack.c.l.b16 %v1839
  %v3107 = vunpack.c.h.b16 %v1839
  %v3108 = vunpack.c.l.b16 %v1840
  %v3109 = vunpack.c.l.b16 %v1841
  %v3110 = vunpack.c.h.b16 %v1841
  %v3111 = vunpack.c.l.b16 %v1842
  %v3112 = vunpack.c.h.b16 %v1842
  %v3113 = vunpack.c.l.b16 %v1843
  %v3114 = vunpack.c.l.b16 %v1844
  %v3115 = vunpack.c.h.b16 %v1844
  %v3116 = vunpack.c.l.b16 %v1845
  %v3117 = vunpack.c.h.b16 %v1845
  %v3118 = vunpack.c.l.b16 %v1846
  %v3119 = vunpack.c.l.b16 %v1847
  %v3120 = vunpack.c.h.b16 %v1847
  %v3121 = vunpack.c.l.b16 %v1848
  %v3122 = vunpack.c.h.b16 %v1848
  %v3123 = vunpack.c.l.b16 %v1849
  %v3124 = vunpack.c.l.b16 %v1850
  %v3125 = vunpack.c.h.b16 %v1850
  %v3126 = vunpack.c.l.b16 %v1851
  %v3127 = vunpack.c.h.b16 %v1851
  %v3128 = vunpack.c.l.b16 %v1852
  %v3129 = vunpack.c.l.b16 %v1853
  %v3130 = vunpack.c.h.b16 %v1853
  %v3131 = vunpack.c.l.b16 %v1854
  %v3132 = vunpack.c.h.b16 %v1854
  %v3133 = vunpack.c.l.b16 %v1855
  %v3134 = vunpack.c.l.b16 %v1856
  %v3135 = vunpack.c.h.b16 %v1856
  %v3136 = vunpack.c.l.b16 %v1857
  %v3137 = vunpack.c.h.b16 %v1857
  %v3138 = vunpack.c.l.b16 %v1858
  %v3139 = vunpack.c.l.b16 %v1859
  %v3140 = vunpack.c.h.b16 %v1859
  %v3141 = vunpack.c.l.b16 %v1860
  %v3142 = vunpack.c.h.b16 %v1860
  %v3143 = vunpack.c.l.b16 %v1861
  %v3144 = vunpack.c.l.b16 %v1862
  %v3145 = vunpack.c.h.b16 %v1862
  %v3146 = vunpack.c.l.b16 %v1863
  %v3147 = vunpack.c.h.b16 %v1863
  %v3148 = vunpack.c.l.b16 %v1864
  %v3149 = vunpack.c.l.b16 %v1865
  %v3150 = vunpack.c.h.b16 %v1865
  %v3151 = vunpack.c.l.b16 %v1866
  %v3152 = vunpack.c.h.b16 %v1866
  %v3153 = vunpack.c.l.b16 %v1867
  %v3154 = vunpack.c.l.b16 %v1868
  %v3155 = vunpack.c.h.b16 %v1868
  %v3156 = vunpack.c.l.b16 %v1869
  %v3157 = vunpack.c.h.b16 %v1869
  %v3158 = vunpack.c.l.b16 %v1870
  %v3159 = vunpack.c.l.b16 %v1871
  %v3160 = vunpack.c.h.b16 %v1871
  %v3161 = vunpack.c.l.b16 %v1872
  %v3162 = vunpack.c.h.b16 %v1872
  %v3163 = vunpack.c.l.b16 %v1873
  %v3164 = vunpack.c.l.b16 %v1874
  %v3165 = vunpack.c.h.b16 %v1874
  %v3166 = vunpack.c.l.b16 %v1875
  %v3167 = vunpack.c.h.b16 %v1875
  %v3168 = vunpack.c.l.b16 %v1876
  %v3169 = vunpack.c.l.b16 %v1877
  %v3170 = vunpack.c.h.b16 %v1877
  %v3171 = vunpack.c.l.b16 %v1878
  %v3172 = vunpack.c.h.b16 %v1878
  %v3173 = vunpack.c.l.b16 %v1879
  %v3174 = vunpack.c.l.b16 %v1880
  %v3175 = vunpack.c.h.b16 %v1880
  %v3176 = vunpack.c.l.b16 %v1881
  %v3177 = vunpack.c.h.b16 %v1881
  %v3178 = vunpack.c.l.b16 %v1882
  %v3179 = vunpack.c.l.b16 %v1883
  %v3180 = vunpack.c.h.b16 %v1883
  %v3181 = vunpack.c.l.b16 %v1884
  %v3182 = vunpack.c.h.b16 %v1884
  %v3183 = vunpack.c.l.b16 %v1885
  %v3184 = vunpack.c.l.b16 %v1886
  %v3185 = vunpack.c.h.b16 %v1886
  %v3186 = vunpack.c.l.b16 %v1887
  %v3187 = vunpack.c.h.b16 %v1887
  %v3188 = vunpack.c.l.b16 %v1888
  %v3189 = vunpack.c.l.b16 %v1889
  %v3190 = vunpack.c.h.b16 %v1889
  %v3191 = vunpack.c.l.b16 %v1890
  %v3192 = vunpack.c.h.b16 %v1890
  %v3193 = vunpack.c.l.b16 %v1891
  %v3194 = vunpack.c.l.b16 %v1892
  %v3195 = vunpack.c.h.b16 %v1892
  %v3196 = vunpack.c.l.b16 %v1893
  %v3197 = vunpack.c.h.b16 %v1893
  %v3198 = vunpack.c.l.b16 %v1894
  %v3199 = vunpack.c.l.b16 %v1895
  %v3200 = vunpack.c.h.b16 %v1895
  %v3201 = vunpack.c.l.b16 %v1896
  %v3202 = vunpack.c.h.b16 %v1896
  %v3203 = vunpack.c.l.b16 %v1897
  %v3204 = vunpack.c.l.b16 %v1898
  %v3205 = vunpack.c.h.b16 %v1898
  %v3206 = vunpack.c.l.b16 %v1899
  %v3207 = vunpack.c.h.b16 %v1899
  %v3208 = vunpack.c.l.b16 %v1900
  %v3209 = vunpack.c.l.b16 %v1901
  %v3210 = vunpack.c.h.b16 %v1901
  %v3211 = vunpack.c.l.b16 %v1902
  %v3212 = vunpack.c.h.b16 %v1902
  %v3213 = vunpack.c.l.b16 %v1903
  %v3214 = vunpack.c.l.b16 %v1904
  %v3215 = vunpack.c.h.b16 %v1904
  %v3216 = vunpack.c.l.b16 %v1905
  %v3217 = vunpack.c.h.b16 %v1905
  %v3218 = vunpack.c.l.b16 %v1906
  %v3219 = vunpack.c.l.b16 %v1907
  %v3220 = vunpack.c.h.b16 %v1907
  %v3221 = vunpack.c.l.b16 %v1908
  %v3222 = vunpack.c.h.b16 %v1908
  %v3223 = vunpack.c.l.b16 %v1909
  %v3224 = vunpack.c.l.b16 %v1910
  %v3225 = vunpack.c.h.b16 %v1910
  %v3226 = vunpack.c.l.b16 %v1911
  %v3227 = vunpack.c.h.b16 %v1911
  %v3228 = vunpack.c.l.b16 %v1912
  %v3229 = vunpack.c.l.b16 %v1913
  %v3230 = vunpack.c.h.b16 %v1913
  %v3231 = vunpack.c.l.b16 %v1914
  %v3232 = vunpack.c.h.b16 %v1914
  %v3233 = vunpack.c.l.b16 %v1915
  %v3234 = vunpack.c.l.b16 %v1916
  %v3235 = vunpack.c.h.b16 %v1916
  %v3236 = vunpack.c.l.b16 %v1917
  %v3237 = vunpack.c.h.b16 %v1917
  %v3238 = vunpack.c.l.b16 %v1918
  %v3239 = vunpack.c.l.b16 %v1919
  %v3240 = vunpack.c.h.b16 %v1919
  %v3241 = vunpack.c.l.b16 %v1920
  %v3242 = vunpack.c.h.b16 %v1920
  %v3243 = vunpack.c.l.b16 %v1921
  %v3244 = vunpack.c.l.b16 %v1922
  %v3245 = vunpack.c.h.b16 %v1922
  %v3246 = vunpack.c.l.b16 %v1923
  %v3247 = vunpack.c.h.b16 %v1923
  %v3248 = vunpack.c.l.b16 %v1924
  %v3249 = vunpack.c.l.b16 %v1925
  %v3250 = vunpack.c.h.b16 %v1925
  %v3251 = vunpack.c.l.b16 %v1926
  %v3252 = vunpack.c.h.b16 %v1926
  %v3253 = vunpack.c.l.b16 %v1927
  %v3254 = vunpack.c.l.b16 %v1928
  %v3255 = vunpack.c.h.b16 %v1928
  %v3256 = vunpack.c.l.b16 %v1929
  %v3257 = vunpack.c.h.b16 %v1929
  %v3258 = vunpack.c.l.b16 %v1930
  %v3259 = vunpack.c.l.b16 %v1931
  %v3260 = vunpack.c.h.b16 %v1931
  %v3261 = vunpack.c.l.b16 %v1932
  %v3262 = vunpack.c.h.b16 %v1932
  %v3263 = vunpack.c.l.b16 %v1933
  %v3264 = vunpack.c.l.b16 %v1934
  %v3265 = vunpack.c.h.b16 %v1934
  %v3266 = vunpack.c.l.b16 %v1935
  %v3267 = vunpack.c.h.b16 %v1935
  %v3268 = vunpack.c.l.b16 %v1936
  %v3269 = vunpack.c.l.b16 %v1937
  %v3270 = vunpack.c.h.b16 %v1937
  %v3271 = vunpack.c.l.b16 %v1938
  %v3272 = vunpack.c.h.b16 %v1938
  %v3273 = vunpack.c.l.b16 %v1939
  %v3274 = vunpack.c.l.b16 %v1940
  %v3275 = vunpack.c.h.b16 %v1940
  %v3276 = vunpack.c.l.b16 %v1941
  %v3277 = vunpack.c.h.b16 %v1941
  %v3278 = vunpack.c.l.b16 %v1942
  %v3279 = vunpack.c.l.b16 %v1943
  %v3280 = vunpack.c.h.b16 %v1943
  %v3281 = vunpack.c.l.b16 %v1944
  %v3282 = vunpack.c.h.b16 %v1944
  %v3283 = vunpack.c.l.b16 %v1945
  %v3284 = vunpack.c.l.b16 %v1946
  %v3285 = vunpack.c.h.b16 %v1946
  %v3286 = vunpack.c.l.b16 %v1947
  %v3287 = vunpack.c.h.b16 %v1947
  %v3288 = vunpack.c.l.b16 %v1948
  %v3289 = vunpack.c.l.b16 %v1949
  %v3290 = vunpack.c.h.b16 %v1949
  %v3291 = vunpack.c.l.b16 %v1950
  %v3292 = vunpack.c.h.b16 %v1950
  %v3293 = vunpack.c.l.b16 %v1951
  %v3294 = vunpack.c.l.b16 %v1952
  %v3295 = vunpack.c.h.b16 %v1952
  %v3296 = vunpack.c.l.b16 %v1953
  %v3297 = vunpack.c.h.b16 %v1953
  %v3298 = vunpack.c.l.b16 %v1954
  %v3299 = vunpack.c.l.b16 %v1955
  %v3300 = vunpack.c.h.b16 %v1955
  %v3301 = vunpack.c.l.b16 %v1956
  %v3302 = vunpack.c.h.b16 %v1956
  %v3303 = vunpack.c.l.b16 %v1957
  %v3304 = vunpack.c.l.b16 %v1958
  %v3305 = vunpack.c.h.b16 %v1958
  %v3306 = vunpack.c.l.b16 %v1959
  %v3307 = vunpack.c.h.b16 %v1959
  %v3308 = vunpack.c.l.b16 %v1960
  %v3309 = vunpack.c.l.b16 %v1961
  %v3310 = vunpack.c.h.b16 %v1961
  %v3311 = vunpack.c.l.b16 %v1962
  %v3312 = vunpack.c.h.b16 %v1962
  %v3313 = vunpack.c.l.b16 %v1963
  %v3314 = vunpack.c.l.b16 %v1964
  %v3315 = vunpack.c.h.b16 %v1964
  %v3316 = vunpack.c.l.b16 %v1965
  %v3317 = vunpack.c.h.b16 %v1965
  %v3318 = vunpack.c.l.b16 %v1966
  %v3319 = vunpack.c.l.b16 %v1967
  %v3320 = vunpack.c.h.b16 %v1967
  %v3321 = vunpack.c.l.b16 %v1968
  %v3322 = vunpack.c.h.b16 %v1968
  %v3323 = vunpack.c.l.b16 %v1969
  %v3324 = vunpack.c.l.b16 %v1970
  %v3325 = vunpack.c.h.b16 %v1970
  %v3326 = vunpack.c.l.b16 %v1971
  %v3327 = vunpack.c.h.b16 %v1971
  %v3328 = vunpack.c.l.b16 %v1972
  %v3329 = vunpack.c.l.b16 %v1973
  %v3330 = vunpack.c.h.b16 %v1973
  %v3331 = vunpack.c.l.b16 %v1974
  %v3332 = vunpack.c.h.b16 %v1974
  %v3333 = vunpack.c.l.b16 %v1975
  %v3334 = vunpack.c.l.b16 %v1976
  %v3335 = vunpack.c.h.b16 %v1976
  %v3336 = vunpack.c.l.b16 %v1977
  %v3337 = vunpack.c.h.b16 %v1977
  %v3338 = vunpack.c.l.b16 %v1978
  %v3339 = vunpack.c.l.b16 %v1979
  %v3340 = vunpack.c.h.b16 %v1979
  %v3341 = vunpack.c.l.b16 %v1980
  %v3342 = vunpack.c.h.b16 %v1980
  %v3343 = vunpack.c.l.b16 %v1981
  %v3344 = vunpack.c.l.b16 %v1982
  %v3345 = vunpack.c.h.b16 %v1982
  %v3346 = vunpack.c.l.b16 %v1983
  %v3347 = vunpack.c.h.b16 %v1983
  %v3348 = vunpack.c.l.b16 %v1984
  %v3349 = vunpack.c.l.b16 %v1985
  %v3350 = vunpack.c.h.b16 %v1985
  %v3351 = vunpack.c.l.b16 %v1986
  %v3352 = vunpack.c.h.b16 %v1986
  %v3353 = vunpack.c.l.b16 %v1987
  %v3354 = vunpack.c.l.b16 %v1988
  %v3355 = vunpack.c.h.b16 %v1988
  %v3356 = vunpack.c.l.b16 %v1989
  %v3357 = vunpack.c.h.b16 %v1989
  %v3358 = vunpack.c.l.b16 %v1990
  %v3359 = vunpack.c.l.b16 %v1991
  %v3360 = vunpack.c.h.b16 %v1991
  %v3361 = vunpack.c.l.b16 %v1992
  %v3362 = vunpack.c.h.b16 %v1992
  %v3363 = vunpack.c.l.b16 %v1993
  %v3364 = vunpack.c.l.b16 %v1994
  %v3365 = vunpack.c.h.b16 %v1994
  %v3366 = vunpack.c.l.b16 %v1995
  %v3367 = vunpack.c.h.b16 %v1995
  %v3368 = vunpack.c.l.b16 %v1996
  %v3369 = vunpack.c.l.b16 %v1997
  %v3370 = vunpack.c.h.b16 %v1997
  %v3371 = vunpack.c.l.b16 %v1998
  %v3372 = vunpack.c.h.b16 %v1998
  %v3373 = vunpack.c.l.b16 %v1999
  %v3374 = vunpack.c.l.b16 %v2000
  %v3375 = vunpack.c.h.b16 %v2000
  %v3376 = vunpack.c.l.b16 %v2001
  %v3377 = vunpack.c.h.b16 %v2001
  %v3378 = vunpack.c.l.b16 %v2002
  %v3379 = vunpack.c.l.b16 %v2003
  %v3380 = vunpack.c.h.b16 %v2003
  %v3381 = vunpack.c.l.b16 %v2004
  %v3382 = vunpack.c.h.b16 %v2004
  %v3383 = vunpack.c.l.b16 %v2005
  %v3384 = vunpack.c.l.b16 %v2006
  %v3385 = vunpack.c.h.b16 %v2006
  %v3386 = vunpack.c.l.b16 %v2007
  %v3387 = vunpack.c.h.b16 %v2007
  %v3388 = vunpack.c.l.b16 %v2008
  %v3389 = vunpack.c.l.b16 %v2009
  %v3390 = vunpack.c.h.b16 %v2009
  %v3391 = vunpack.c.l.b16 %v2010
  %v3392 = vunpack.c.h.b16 %v2010
  %v3393 = vunpack.c.l.b16 %v2011
  %v3394 = vunpack.c.l.b16 %v2012
  %v3395 = vunpack.c.h.b16 %v2012
  %v3396 = vunpack.c.l.b16 %v2013
  %v3397 = vunpack.c.h.b16 %v2013
  %v3398 = vunpack.c.l.b16 %v2014
  %v3399 = vunpack.c.l.b16 %v2015
  %v3400 = vunpack.c.h.b16 %v2015
  %v3401 = vunpack.c.l.b16 %v2016
  %v3402 = vunpack.c.h.b16 %v2016
  %v3403 = vunpack.c.l.b16 %v2017
  %v3404 = vunpack.c.l.b16 %v2018
  %v3405 = vunpack.c.h.b16 %v2018
  %v3406 = vunpack.c.l.b16 %v2019
  %v3407 = vunpack.c.h.b16 %v2019
  %v3408 = vunpack.c.l.b16 %v2020
  %v3409 = vunpack.c.l.b16 %v2021
  %v3410 = vunpack.c.h.b16 %v2021
  %v3411 = vunpack.c.l.b16 %v2022
  %v3412 = vunpack.c.h.b16 %v2022
  %v3413 = vunpack.c.l.b16 %v2023
  %v3414 = vunpack.c.l.b16 %v2024
  %v3415 = vunpack.c.h.b16 %v2024
  %v3416 = vunpack.c.l.b16 %v2025
  %v3417 = vunpack.c.h.b16 %v2025
  %v3418 = vunpack.c.l.b16 %v2026
  %v3419 = vunpack.c.l.b16 %v2027
  %v3420 = vunpack.c.h.b16 %v2027
  %v3421 = vunpack.c.l.b16 %v2028
  %v3422 = vunpack.c.h.b16 %v2028
  %v3423 = vunpack.c.l.b16 %v2029
  %v3424 = vunpack.c.l.b16 %v2030
  %v3425 = vunpack.c.h.b16 %v2030
  %v3426 = vunpack.c.l.b16 %v2031
  %v3427 = vunpack.c.h.b16 %v2031
  %v3428 = vunpack.c.l.b16 %v2032
  %v3429 = vunpack.c.l.b16 %v2033
  %v3430 = vunpack.c.h.b16 %v2033
  %v3431 = vunpack.c.l.b16 %v2034
  %v3432 = vunpack.c.h.b16 %v2034
  %v3433 = vunpack.c.l.b16 %v2035
  %v3434 = vunpack.c.l.b16 %v2036
  %v3435 = vunpack.c.h.b16 %v2036
  %v3436 = vunpack.c.l.b16 %v2037
  %v3437 = vunpack.c.h.b16 %v2037
  %v3438 = vunpack.c.l.b16 %v2038
  %v3439 = vunpack.c.l.b16 %v2039
  %v3440 = vunpack.c.h.b16 %v2039
  %v3441 = vunpack.c.l.b16 %v2040
  %v3442 = vunpack.c.h.b16 %v2040
  %v3443 = vunpack.c.l.b16 %v2041
  %v3444 = vunpack.c.l.b16 %v2042
  %v3445 = vunpack.c.h.b16 %v2042
  %v3446 = vunpack.c.l.b16 %v2043
  %v3447 = vunpack.c.h.b16 %v2043
  %v3448 = vunpack.c.l.b16 %v2044
  %v3449 = vunpack.c.l.b16 %v2045
  %v3450 = vunpack.c.h.b16 %v2045
  %v3451 = vunpack.c.l.b16 %v2046
  %v3452 = vunpack.c.h.b16 %v2046
  %v3453 = vunpack.c.l.b16 %v2047
  %v3454 = vunpack.c.l.b16 %v2048
  %v3455 = vunpack.c.h.b16 %v2048
  %v3456 = vunpack.c.l.b16 %v2049
  %v3457 = vunpack.c.h.b16 %v2049
  %v3458 = vunpack.c.l.b16 %v2050
  %v3459 = vunpack.c.l.b16 %v2051
  %v3460 = vunpack.c.h.b16 %v2051
  %v3461 = vunpack.c.l.b16 %v2052
  %v3462 = vunpack.c.h.b16 %v2052
  %v3463 = vunpack.c.l.b16 %v2053
  %v3464 = vunpack.c.l.b16 %v2054
  %v3465 = vunpack.c.h.b16 %v2054
  %v3466 = vunpack.c.l.b16 %v2055
  %v3467 = vunpack.c.h.b16 %v2055
  %v3468 = vunpack.c.l.b16 %v2056
  %v3469 = vunpack.c.l.b16 %v2057
  %v3470 = vunpack.c.h.b16 %v2057
  %v3471 = vunpack.c.l.b16 %v2058
  %v3472 = vunpack.c.h.b16 %v2058
  %v3473 = vunpack.c.l.b16 %v2059
  %v3474 = vunpack.c.l.b16 %v2060
  %v3475 = vunpack.c.h.b16 %v2060
  %v3476 = vunpack.c.l.b16 %v2061
  %v3477 = vunpack.c.h.b16 %v2061
  %v3478 = vunpack.c.l.b16 %v2062
  %v3479 = vunpack.c.l.b16 %v2063
  %v3480 = vunpack.c.h.b16 %v2063
  %v3481 = vunpack.c.l.b16 %v2064
  %v3482 = vunpack.c.h.b16 %v2064
  %v3483 = vunpack.c.l.b16 %v2065
  %v3484 = vunpack.c.l.b16 %v2066
  %v3485 = vunpack.c.h.b16 %v2066
  %v3486 = vunpack.c.l.b16 %v2067
  %v3487 = vunpack.c.h.b16 %v2067
  %v3488 = vunpack.c.l.b16 %v2068
  %v3489 = vunpack.c.l.b16 %v2069
  %v3490 = vunpack.c.h.b16 %v2069
  %v3491 = vunpack.c.l.b16 %v2070
  %v3492 = vunpack.c.h.b16 %v2070
  %v3493 = vunpack.c.l.b16 %v2071
  %v3494 = vunpack.c.l.b16 %v2072
  %v3495 = vunpack.c.h.b16 %v2072
  %v3496 = vunpack.c.l.b16 %v2073
  %v3497 = vunpack.c.h.b16 %v2073
  %v3498 = vunpack.c.l.b16 %v2074
  %v3499 = vunpack.c.l.b16 %v2075
  %v3500 = vunpack.c.h.b16 %v2075
  %v3501 = vunpack.c.l.b16 %v2076
  %v3502 = vunpack.c.h.b16 %v2076
  %v3503 = vunpack.c.l.b16 %v2077
  %v3504 = vunpack.c.l.b16 %v2078
  %v3505 = vunpack.c.h.b16 %v2078
  %v3506 = vunpack.c.l.b16 %v2079
  %v3507 = vunpack.c.h.b16 %v2079
  %v3508 = vunpack.c.l.b16 %v2080
  %v3509 = vunpack.c.l.b16 %v2081
  %v3510 = vunpack.c.h.b16 %v2081
  %v3511 = vunpack.c.l.b16 %v2082
  %v3512 = vunpack.c.h.b16 %v2082
  %v3513 = vunpack.c.l.b16 %v2083
  %v3514 = vunpack.c.l.b16 %v2084
  %v3515 = vunpack.c.h.b16 %v2084
  %v3516 = vunpack.c.l.b16 %v2085
  %v3517 = vunpack.c.h.b16 %v2085
  %v3518 = vunpack.c.l.b16 %v2086
  %v3519 = vunpack.c.l.b16 %v2087
  %v3520 = vunpack.c.h.b16 %v2087
  %v3521 = vunpack.c.l.b16 %v2088
  %v3522 = vunpack.c.h.b16 %v2088
  %v3523 = vunpack.c.l.b16 %v2089
  %v3524 = vunpack.c.l.b16 %v2090
  %v3525 = vunpack.c.h.b16 %v2090
  %v3526 = vunpack.c.l.b16 %v2091
  %v3527 = vunpack.c.h.b16 %v2091
  %v3528 = vunpack.c.l.b16 %v2092
  %v3529 = vunpack.c.l.b16 %v2093
  %v3530 = vunpack.c.h.b16 %v2093
  %v3531 = vunpack.c.l.b16 %v2094
  %v3532 = vunpack.c.h.b16 %v2094
  %v3533 = vunpack.c.l.b16 %v2095
  %v3534 = vunpack.c.l.b16 %v2096
  %v3535 = vunpack.c.h.b16 %v2096
  %v3536 = vunpack.c.l.b16 %v2097
  %v3537 = vunpack.c.h.b16 %v2097
  %v3538 = vunpack.c.l.b16 %v2098
  %v3539 = vunpack.c.l.b16 %v2099
  %v3540 = vunpack.c.h.b16 %v2099
  %v3541 = vunpack.c.l.b16 %v2100
  %v3542 = vunpack.c.h.b16 %v2100
  %v3543 = vunpack.c.l.b16 %v2101
  %v3544 = vunpack.c.l.b16 %v2102
  %v3545 = vunpack.c.h.b16 %v2102
  %v3546 = vunpack.c.l.b16 %v2103
  %v3547 = vunpack.c.h.b16 %v2103
  %v3548 = vunpack.c.l.b16 %v2104
  %v3549 = vunpack.c.l.b16 %v2105
  %v3550 = vunpack.c.h.b16 %v2105
  %v3551 = vunpack.c.l.b16 %v2106
  %v3552 = vunpack.c.h.b16 %v2106
  %v3553 = vunpack.c.l.b16 %v2107
  %v3554 = vunpack.c.l.b16 %v2108
  %v3555 = vunpack.c.h.b16 %v2108
  %v3556 = vunpack.c.l.b16 %v2109
  %v3557 = vunpack.c.h.b16 %v2109
  %v3558 = vunpack.c.l.b16 %v2110
  %v3559 = vunpack.c.l.b16 %v2111
  %v3560 = vunpack.c.h.b16 %v2111
  %v3561 = vunpack.c.l.b16 %v2112
  %v3562 = vunpack.c.h.b16 %v2112
  %v3563 = vunpack.c.l.b16 %v2113
  %v3564 = vunpack.c.l.b16 %v2114
  %v3565 = vunpack.c.h.b16 %v2114
  %v3566 = vunpack.c.l.b16 %v2115
  %v3567 = vunpack.c.h.b16 %v2115
  %v3568 = vunpack.c.l.b16 %v2116
  %v3569 = vunpack.c.l.b16 %v2117
  %v3570 = vunpack.c.h.b16 %v2117
  %v3571 = vunpack.c.l.b16 %v2118
  %v3572 = vunpack.c.h.b16 %v2118
  %v3573 = vunpack.c.l.b16 %v2119
  %v3574 = vunpack.c.l.b16 %v2120
  %v3575 = vunpack.c.h.b16 %v2120
  %v3576 = vunpack.c.l.b16 %v2121
  %v3577 = vunpack.c.h.b16 %v2121
  %v3578 = vunpack.c.l.b16 %v2122
  %v3579 = vunpack.c.l.b16 %v2123
  %v3580 = vunpack.c.h.b16 %v2123
  %v3581 = vunpack.c.l.b16 %v2124
  %v3582 = vunpack.c.h.b16 %v2124
  %v3583 = vunpack.c.l.b16 %v2125
  %v3584 = vunpack.c.l.b16 %v2126
  %v3585 = vunpack.c.h.b16 %v2126
  %v3586 = vunpack.c.l.b16 %v2127
  %v3587 = vunpack.c.h.b16 %v2127
  %v3588 = vunpack.c.l.b16 %v2128
  %v3589 = vunpack.c.l.b16 %v2129
  %v3590 = vunpack.c.h.b16 %v2129
  %v3591 = vunpack.c.l.b16 %v2130
  %v3592 = vunpack.c.h.b16 %v2130
  %v3593 = vunpack.c.l.b16 %v2131
  %v3594 = vunpack.c.l.b16 %v2132
  %v3595 = vunpack.c.h.b16 %v2132
  %v3596 = vunpack.c.l.b16 %v2133
  %v3597 = vunpack.c.h.b16 %v2133
  %v3598 = vunpack.c.l.b16 %v2134
  %v3599 = vunpack.c.l.b16 %v2135
  %v3600 = vunpack.c.h.b16 %v2135
  %v3601 = vunpack.c.l.b16 %v2136
  %v3602 = vunpack.c.h.b16 %v2136
  %v3603 = vunpack.c.l.b16 %v2137
  %v3604 = vunpack.c.l.b16 %v2138
  %v3605 = vunpack.c.h.b16 %v2138
  %v3606 = vunpack.c.l.b16 %v2139
  %v3607 = vunpack.c.h.b16 %v2139
  %v3608 = vunpack.c.l.b16 %v2140
  %v3609 = vunpack.c.l.b16 %v2141
  %v3610 = vunpack.c.h.b16 %v2141
  %v3611 = vunpack.c.l.b16 %v2142
  %v3612 = vunpack.c.h.b16 %v2142
  %v3613 = vunpack.c.l.b16 %v2143
  %v3614 = vunpack.c.l.b16 %v2144
  %v3615 = vunpack.c.h.b16 %v2144
  %v3616 = vunpack.c.l.b16 %v2145
  %v3617 = vunpack.c.h.b16 %v2145
  %v3618 = vunpack.c.l.b16 %v2146
  %v3619 = vunpack.c.l.b16 %v2147
  %v3620 = vunpack.c.h.b16 %v2147
  %v3621 = vunpack.c.l.b16 %v2148
  %v3622 = vunpack.c.h.b16 %v2148
  %v3623 = vunpack.c.l.b16 %v2149
  %v3624 = vunpack.c.l.b16 %v2150
  %v3625 = vunpack.c.h.b16 %v2150
  %v3626 = vunpack.c.l.b16 %v2151
  %v3627 = vunpack.c.h.b16 %v2151
  %v3628 = vunpack.c.l.b16 %v2152
  %v3629 = vunpack.c.l.b16 %v2153
  %v3630 = vunpack.c.h.b16 %v2153
  %v3631 = vunpack.c.l.b16 %v2154
  %v3632 = vunpack.c.h.b16 %v2154
  %v3633 = vunpack.c.l.b16 %v2155
  %v3634 = vunpack.c.l.b16 %v2156
  %v3635 = vunpack.c.h.b16 %v2156
  %v3636 = vunpack.c.l.b16 %v2157
  %v3637 = vunpack.c.h.b16 %v2157
  %v3638 = vunpack.c.l.b16 %v2158
  %v3639 = vunpack.c.l.b16 %v2159
  %v3640 = vunpack.c.h.b16 %v2159
  %v3641 = vunpack.c.l.b16 %v2160
  %v3642 = vunpack.c.h.b16 %v2160
  %v3643 = vunpack.c.l.b16 %v2161
  %v3644 = vunpack.c.l.b16 %v2162
  %v3645 = vunpack.c.h.b16 %v2162
  %v3646 = vunpack.c.l.b16 %v2163
  %v3647 = vunpack.c.h.b16 %v2163
  %v3648 = vunpack.c.l.b16 %v2164
  %v3649 = vunpack.c.l.b16 %v2165
  %v3650 = vunpack.c.h.b16 %v2165
  %v3651 = vunpack.c.l.b16 %v2166
  %v3652 = vunpack.c.h.b16 %v2166
  %v3653 = vunpack.c.l.b16 %v2167
  %v3654 = vunpack.c.l.b16 %v2168
  %v3655 = vunpack.c.h.b16 %v2168
  %v3656 = vunpack.c.l.b16 %v2169
  %v3657 = vunpack.c.h.b16 %v2169
  %v3658 = vunpack.c.l.b16 %v2170
  %v3659 = vunpack.c.l.b16 %v2171
  %v3660 = vunpack.c.h.b16 %v2171
  %v3661 = vunpack.c.l.b16 %v2172
  %v3662 = vunpack.c.h.b16 %v2172
  %v3663 = vunpack.c.l.b16 %v2173
  %v3664 = vunpack.c.l.b16 %v2174
  %v3665 = vunpack.c.h.b16 %v2174
  %v3666 = vunpack.c.l.b16 %v2175
  %v3667 = vunpack.c.h.b16 %v2175
  %v3668 = vunpack.c.l.b16 %v2176
  %v3669 = vunpack.c.l.b16 %v2177
  %v3670 = vunpack.c.h.b16 %v2177
  %v3671 = vunpack.c.l.b16 %v2178
  %v3672 = vunpack.c.h.b16 %v2178
  %v3673 = vunpack.c.l.b16 %v2179
  %v3674 = vunpack.c.l.b16 %v2180
  %v3675 = vunpack.c.h.b16 %v2180
  %v3676 = vunpack.c.l.b16 %v2181
  %v3677 = vunpack.c.h.b16 %v2181
  %v3678 = vunpack.c.l.b16 %v2182
  %v3679 = vunpack.c.l.b16 %v2183
  %v3680 = vunpack.c.h.b16 %v2183
  %v3681 = vunpack.c.l.b16 %v2184
  %v3682 = vunpack.c.h.b16 %v2184
  %v3683 = vunpack.c.l.b16 %v2185
  %v3684 = vunpack.c.l.b16 %v2186
  %v3685 = vunpack.c.h.b16 %v2186
  %v3686 = vunpack.c.l.b16 %v2187
  %v3687 = vunpack.c.h.b16 %v2187
  %v3688 = vunpack.c.l.b16 %v2188
  %v3689 = vunpack.c.l.b16 %v2189
  %v3690 = vunpack.c.h.b16 %v2189
  %v3691 = vunpack.c.l.b16 %v2190
  %v3692 = vunpack.c.h.b16 %v2190
  %v3693 = vunpack.c.l.b16 %v2191
  %v3694 = vunpack.c.l.b16 %v2192
  %v3695 = vunpack.c.h.b16 %v2192
  %v3696 = vunpack.c.l.b16 %v2193
  %v3697 = vunpack.c.h.b16 %v2193
  %v3698 = vunpack.c.l.b16 %v2194
  %v3699 = vunpack.c.l.b16 %v2195
  %v3700 = vunpack.c.h.b16 %v2195
  %v3701 = vunpack.c.l.b16 %v2196
  %v3702 = vunpack.c.h.b16 %v2196
  %v3703 = vunpack.c.l.b16 %v2197
  %v3704 = vunpack.c.l.b16 %v2198
  %v3705 = vunpack.c.h.b16 %v2198
  %v3706 = vunpack.c.l.b16 %v2199
  %v3707 = vunpack.c.h.b16 %v2199
  %v3708 = vunpack.c.l.b16 %v2200
  %v3709 = vunpack.c.l.b16 %v2201
  %v3710 = vunpack.c.h.b16 %v2201
  %v3711 = vunpack.c.l.b16 %v2202
  %v3712 = vunpack.c.h.b16 %v2202
  %v3713 = vunpack.c.l.b16 %v2203
  %v3714 = vunpack.c.l.b16 %v2204
  %v3715 = vunpack.c.h.b16 %v2204
  %v3716 = vunpack.c.l.b16 %v2205
  %v3717 = vunpack.c.h.b16 %v2205
  %v3718 = vunpack.c.l.b16 %v2206
  %v3719 = vunpack.c.l.b16 %v2207
  %v3720 = vunpack.c.h.b16 %v2207
  %v3721 = vunpack.c.l.b16 %v2208
  %v3722 = vunpack.c.h.b16 %v2208
  %v3723 = vunpack.c.l.b16 %v2209
  %v3724 = vunpack.c.l.b16 %v2210
  %v3725 = vunpack.c.h.b16 %v2210
  %v3726 = vunpack.c.l.b16 %v2211
  %v3727 = vunpack.c.h.b16 %v2211
  %v3728 = vunpack.c.l.b16 %v2212
  %v3729 = vunpack.c.l.b16 %v2213
  %v3730 = vunpack.c.h.b16 %v2213
  %v3731 = vunpack.c.l.b16 %v2214
  %v3732 = vunpack.c.h.b16 %v2214
  %v3733 = vunpack.c.l.b16 %v2215
  %v3734 = vunpack.c.l.b16 %v2216
  %v3735 = vunpack.c.h.b16 %v2216
  %v3736 = vunpack.c.l.b16 %v2217
  %v3737 = vunpack.c.h.b16 %v2217
  %v3738 = vunpack.c.l.b16 %v2218
  %v3739 = vunpack.c.l.b16 %v2219
  %v3740 = vunpack.c.h.b16 %v2219
  %v3741 = vunpack.c.l.b16 %v2220
  %v3742 = vunpack.c.h.b16 %v2220
  %v3743 = vunpack.c.l.b16 %v2221
  %v3744 = vunpack.c.l.b16 %v2222
  %v3745 = vunpack.c.h.b16 %v2222
  %v3746 = vunpack.c.l.b16 %v2223
  %v3747 = vunpack.c.h.b16 %v2223
  %v3748 = vunpack.c.l.b16 %v2224
  %v3749 = vunpack.c.l.b16 %v2225
  %v3750 = vunpack.c.h.b16 %v2225
  %v3751 = vunpack.c.l.b16 %v2226
  %v3752 = vunpack.c.h.b16 %v2226
  %v3753 = vunpack.c.l.b16 %v2227
  %v3754 = vunpack.c.l.b16 %v2228
  %v3755 = vunpack.c.h.b16 %v2228
  %v3756 = vunpack.c.l.b16 %v2229
  %v3757 = vunpack.c.h.b16 %v2229
  %v3758 = vunpack.c.l.b16 %v2230
  %v3759 = vunpack.c.l.b16 %v2231
  %v3760 = vunpack.c.h.b16 %v2231
  %v3761 = vunpack.c.l.b16 %v2232
  %v3762 = vunpack.c.h.b16 %v2232
  %v3763 = vunpack.c.l.b16 %v2233
  %v3764 = vunpack.c.l.b16 %v2234
  %v3765 = vunpack.c.h.b16 %v2234
  %v3766 = vunpack.c.l.b16 %v2235
  %v3767 = vunpack.c.h.b16 %v2235
  %v3768 = vunpack.c.l.b16 %v2236
  %v3769 = vunpack.c.l.b16 %v2237
  %v3770 = vunpack.c.h.b16 %v2237
  %v3771 = vunpack.c.l.b16 %v2238
  %v3772 = vunpack.c.h.b16 %v2238
  %v3773 = vunpack.c.l.b16 %v2239
  %v3774 = vunpack.c.l.b16 %v2240
  %v3775 = vunpack.c.h.b16 %v2240
  %v3776 = vunpack.c.l.b16 %v2241
  %v3777 = vunpack.c.h.b16 %v2241
  %v3778 = vunpack.c.l.b16 %v2242
  %v3779 = vunpack.c.l.b16 %v2243
  %v3780 = vunpack.c.h.b16 %v2243
  %v3781 = vunpack.c.l.b16 %v2244
  %v3782 = vunpack.c.h.b16 %v2244
  %v3783 = vunpack.c.l.b16 %v2245
  %v3784 = vunpack.c.l.b16 %v2246
  %v3785 = vunpack.c.h.b16 %v2246
  %v3786 = vunpack.c.l.b16 %v2247
  %v3787 = vunpack.c.h.b16 %v2247
  %v3788 = vunpack.c.l.b16 %v2248
  %v3789 = vunpack.c.l.b16 %v2249
  %v3790 = vunpack.c.h.b16 %v2249
  %v3791 = vunpack.c.l.b16 %v2250
  %v3792 = vunpack.c.h.b16 %v2250
  %v3793 = vunpack.c.l.b16 %v2251
  %v3794 = vunpack.c.l.b16 %v2252
  %v3795 = vunpack.c.h.b16 %v2252
  %v3796 = vunpack.c.l.b16 %v2253
  %v3797 = vunpack.c.h.b16 %v2253
  %v3798 = vunpack.c.l.b16 %v2254
  %v3799 = vunpack.c.l.b16 %v2255
  %v3800 = vunpack.c.h.b16 %v2255
  %v3801 = vunpack.c.l.b16 %v2256
  %v3802 = vunpack.c.h.b16 %v2256
  %v3803 = vunpack.c.l.b16 %v2257
  %v3804 = vunpack.c.l.b16 %v2258
  %v3805 = vunpack.c.h.b16 %v2258
  %v3806 = vunpack.c.l.b16 %v2259
  %v3807 = vunpack.c.h.b16 %v2259
  %v3808 = vunpack.c.l.b16 %v2260
  %v3809 = vunpack.c.l.b16 %v2261
  %v3810 = vunpack.c.h.b16 %v2261
  %v3811 = vunpack.c.l.b16 %v2262
  %v3812 = vunpack.c.h.b16 %v2262
  %v3813 = vunpack.c.l.b16 %v2263
  %v3814 = vunpack.c.l.b16 %v2264
  %v3815 = vunpack.c.h.b16 %v2264
  %v3816 = vunpack.c.l.b16 %v2265
  %v3817 = vunpack.c.h.b16 %v2265
  %v3818 = vunpack.c.l.b16 %v2266
  %v3819 = vunpack.c.l.b16 %v2267
  %v3820 = vunpack.c.h.b16 %v2267
  %v3821 = vunpack.c.l.b16 %v2268
  %v3822 = vunpack.c.h.b16 %v2268
  %v3823 = vunpack.c.l.b16 %v2269
  %v3824 = vunpack.c.l.b16 %v2270
  %v3825 = vunpack.c.h.b16 %v2270
  %v3826 = vunpack.c.l.b16 %v2271
  %v3827 = vunpack.c.h.b16 %v2271
  %v3828 = vunpack.c.l.b16 %v2272
  %v3829 = vunpack.c.l.b16 %v2273
  %v3830 = vunpack.c.h.b16 %v2273
  %v3831 = vunpack.c.l.b16 %v2274
  %v3832 = vunpack.c.h.b16 %v2274
  %v3833 = vunpack.c.l.b16 %v2275
  %v3834 = vunpack.c.l.b16 %v2276
  %v3835 = vunpack.c.h.b16 %v2276
  %v3836 = vunpack.c.l.b16 %v2277
  %v3837 = vunpack.c.h.b16 %v2277
  %v3838 = vunpack.c.l.b16 %v2278
  %v3839 = vunpack.c.l.b16 %v2279
  %v3840 = vunpack.c.h.b16 %v2279
  %v3841 = vunpack.c.l.b16 %v2280
  %v3842 = vunpack.c.h.b16 %v2280
  %v3843 = vunpack.c.l.b16 %v2281
  %v3844 = vunpack.c.l.b16 %v2282
  %v3845 = vunpack.c.h.b16 %v2282
  %v3846 = vunpack.c.l.b16 %v2283
  %v3847 = vunpack.c.h.b16 %v2283
  %v3848 = vunpack.c.l.b16 %v2284
  %v3849 = vunpack.c.l.b16 %v2285
  %v3850 = vunpack.c.h.b16 %v2285
  %v3851 = vunpack.c.l.b16 %v2286
  %v3852 = vunpack.c.h.b16 %v2286
  %v3853 = vunpack.c.l.b16 %v2287
  %v3854 = vunpack.c.l.b16 %v2288
  %v3855 = vunpack.c.h.b16 %v2288
  %v3856 = vunpack.c.l.b16 %v2289
  %v3857 = vunpack.c.h.b16 %v2289
  %v3858 = vunpack.c.l.b16 %v2290
  %v3859 = vunpack.c.l.b16 %v2291
  %v3860 = vunpack.c.h.b16 %v2291
  %v3861 = vunpack.c.l.b16 %v2292
  %v3862 = vunpack.c.h.b16 %v2292
  %v3863 = vunpack.c.l.b16 %v2293
  %v3864 = vunpack.c.l.b16 %v2294
  %v3865 = vunpack.c.h.b16 %v2294
  %v3866 = vunpack.c.l.b16 %v2295
  %v3867 = vunpack.c.h.b16 %v2295
  %v3868 = vunpack.c.l.b16 %v2296
  %v3869 = vunpack.c.l.b16 %v2297
  %v3870 = vunpack.c.h.b16 %v2297
  %v3871 = vunpack.c.l.b16 %v2298
  %v3872 = vunpack.c.h.b16 %v2298
  %v3873 = vunpack.c.l.b16 %v2299
  %v3874 = vunpack.c.l.b16 %v2300
  %v3875 = vunpack.c.h.b16 %v2300
  %v3876 = vunpack.c.l.b16 %v2301
  %v3877 = vunpack.c.h.b16 %v2301
  %v3878 = vunpack.c.l.b16 %v2302
  %v3879 = vunpack.c.l.b16 %v2303
  %v3880 = vunpack.c.h.b16 %v2303
  %v3881 = vunpack.c.l.b16 %v2304
  %v3882 = vunpack.c.h.b16 %v2304
  %v3883 = vunpack.c.l.b16 %v2305
  %v3884 = vunpack.c.l.b16 %v2306
  %v3885 = vunpack.c.h.b16 %v2306
  %v3886 = vunpack.c.l.b16 %v2307
  %v3887 = vunpack.c.h.b16 %v2307
  %v3888 = vunpack.c.l.b16 %v2308
  %v3889 = vpack.c.b16 %v2914, %v2909
  %v3890 = vpack.c.b16 %v2915, %v2910
  %v3891 = vpack.c.b16 %v2916, %v2911
  %v3892 = vpack.c.b16 %v2917, %v2912
  %v3893 = vpack.c.b16 %v2918, %v2913
  %v3894 = vpack.c.b16 %v2924, %v2919
  %v3895 = vpack.c.b16 %v2925, %v2920
  %v3896 = vpack.c.b16 %v2926, %v2921
  %v3897 = vpack.c.b16 %v2927, %v2922
  %v3898 = vpack.c.b16 %v2928, %v2923
  %v3899 = vpack.c.b16 %v2934, %v2929
  %v3900 = vpack.c.b16 %v2935, %v2930
  %v3901 = vpack.c.b16 %v2936, %v2931
  %v3902 = vpack.c.b16 %v2937, %v2932
  %v3903 = vpack.c.b16 %v2938, %v2933
  %v3904 = vpack.c.b16 %v2944, %v2939
  %v3905 = vpack.c.b16 %v2945, %v2940
  %v3906 = vpack.c.b16 %v2946, %v2941
  %v3907 = vpack.c.b16 %v2947, %v2942
  %v3908 = vpack.c.b16 %v2948, %v2943
  %v3909 = vpack.c.b16 %v2954, %v2949
  %v3910 = vpack.c.b16 %v2955, %v2950
  %v3911 = vpack.c.b16 %v2956, %v2951
  %v3912 = vpack.c.b16 %v2957, %v2952
  %v3913 = vpack.c.b16 %v2958, %v2953
  %v3914 = vpack.c.b16 %v2964, %v2959
  %v3915 = vpack.c.b16 %v2965, %v2960
  %v3916 = vpack.c.b16 %v2966, %v2961
  %v3917 = vpack.c.b16 %v2967, %v2962
  %v3918 = vpack.c.b16 %v2968, %v2963
  %v3919 = vpack.c.b16 %v2974, %v2969
  %v3920 = vpack.c.b16 %v2975, %v2970
  %v3921 = vpack.c.b16 %v2976, %v2971
  %v3922 = vpack.c.b16 %v2977, %v2972
  %v3923 = vpack.c.b16 %v2978, %v2973
  %v3924 = vpack.c.b16 %v2984, %v2979
  %v3925 = vpack.c.b16 %v2985, %v2980
  %v3926 = vpack.c.b16 %v2986, %v2981
  %v3927 = vpack.c.b16 %v2987, %v2982
  %v3928 = vpack.c.b16 %v2988, %v2983
  %v3929 = vpack.c.b16 %v2994, %v2989
  %v3930 = vpack.c.b16 %v2995, %v2990
  %v3931 = vpack.c.b16 %v2996, %v2991
  %v3932 = vpack.c.b16 %v2997, %v2992
  %v3933 = vpack.c.b16 %v2998, %v2993
  %v3934 = vpack.c.b16 %v3004, %v2999
  %v3935 = vpack.c.b16 %v3005, %v3000
  %v3936 = vpack.c.b16 %v3006, %v3001
  %v3937 = vpack.c.b16 %v3007, %v3002
  %v3938 = vpack.c.b16 %v3008, %v3003
  %v3939 = vpack.c.b16 %v3014, %v3009
  %v3940 = vpack.c.b16 %v3015, %v3010
  %v3941 = vpack.c.b16 %v3016, %v3011
  %v3942 = vpack.c.b16 %v3017, %v3012
  %v3943 = vpack.c.b16 %v3018, %v3013
  %v3944 = vpack.c.b16 %v3024, %v3019
  %v3945 = vpack.c.b16 %v3025, %v3020
  %v3946 = vpack.c.b16 %v3026, %v3021
  %v3947 = vpack.c.b16 %v3027, %v3022
  %v3948 = vpack.c.b16 %v3028, %v3023
  %v3949 = vpack.c.b16 %v3034, %v3029
  %v3950 = vpack.c.b16 %v3035, %v3030
  %v3951 = vpack.c.b16 %v3036, %v3031
  %v3952 = vpack.c.b16 %v3037, %v3032
  %v3953 = vpack.c.b16 %v3038, %v3033
  %v3954 = vpack.c.b16 %v3044, %v3039
  %v3955 = vpack.c.b16 %v3045, %v3040
  %v3956 = vpack.c.b16 %v3046, %v3041
  %v3957 = vpack.c.b16 %v3047, %v3042
  %v3958 = vpack.c.b16 %v3048, %v3043
  %v3959 = vpack.c.b16 %v3054, %v3049
  %v3960 = vpack.c.b16 %v3055, %v3050
  %v3961 = vpack.c.b16 %v3056, %v3051
  %v3962 = vpack.c.b16 %v3057, %v3052
  %v3963 = vpack.c.b16 %v3058, %v3053
  %v3964 = vpack.c.b16 %v3064, %v3059
  %v3965 = vpack.c.b16 %v3065, %v3060
  %v3966 = vpack.c.b16 %v3066, %v3061
  %v3967 = vpack.c.b16 %v3067, %v3062
  %v3968 = vpack.c.b16 %v3068, %v3063
  %v3969 = vpack.c.b16 %v3074, %v3069
  %v3970 = vpack.c.b16 %v3075, %v3070
  %v3971 = vpack.c.b16 %v3076, %v3071
  %v3972 = vpack.c.b16 %v3077, %v3072
  %v3973 = vpack.c.b16 %v3078, %v3073
  %v3974 = vpack.c.b16 %v3084, %v3079
  %v3975 = vpack.c.b16 %v3085, %v3080
  %v3976 = vpack.c.b16 %v3086, %v3081
  %v3977 = vpack.c.b16 %v3087, %v3082
  %v3978 = vpack.c.b16 %v3088, %v3083
  %v3979 = vpack.c.b16 %v3094, %v3089
  %v3980 = vpack.c.b16 %v3095, %v3090
  %v3981 = vpack.c.b16 %v3096, %v3091
  %v3982 = vpack.c.b16 %v3097, %v3092
  %v3983 = vpack.c.b16 %v3098, %v3093
  %v3984 = vpack.c.b16 %v3104, %v3099
  %v3985 = vpack.c.b16 %v3105, %v3100
  %v3986 = vpack.c.b16 %v3106, %v3101
  %v3987 = vpack.c.b16 %v3107, %v3102
  %v3988 = vpack.c.b16 %v3108, %v3103
  %v3989 = vpack.c.b16 %v3114, %v3109
  %v3990 = vpack.c.b16 %v3115, %v3110
  %v3991 = vpack.c.b16 %v3116, %v3111
  %v3992 = vpack.c.b16 %v3117, %v3112
  %v3993 = vpack.c.b16 %v3118, %v3113
  %v3994 = vpack.c.b16 %v3124, %v3119
  %v3995 = vpack.c.b16 %v3125, %v3120
  %v3996 = vpack.c.b16 %v3126, %v3121
  %v3997 = vpack.c.b16 %v3127, %v3122
  %v3998 = vpack.c.b16 %v3128, %v3123
  %v3999 = vpack.c.b16 %v3134, %v3129
  %v4000 = vpack.c.b16 %v3135, %v3130
  %v4001 = vpack.c.b16 %v3136, %v3131
  %v4002 = vpack.c.b16 %v3137, %v3132
  %v4003 = vpack.c.b16 %v3138, %v3133
  %v4004 = vpack.c.b16 %v3144, %v3139
  %v4005 = vpack.c.b16 %v3145, %v3140
  %v4006 = vpack.c.b16 %v3146, %v3141
  %v4007 = vpack.c.b16 %v3147, %v3142
  %v4008 = vpack.c.b16 %v3148, %v3143
  %v4009 = vpack.c.b16 %v3154, %v3149
  %v4010 = vpack.c.b16 %v3155, %v3150
  %v4011 = vpack.c.b16 %v3156, %v3151
  %v4012 = vpack.c.b16 %v3157, %v3152
  %v4013 = vpack.c.b16 %v3158, %v3153
  %v4014 = vpack.c.b16 %v3164, %v3159
  %v4015 = vpack.c.b16 %v3165, %v3160
  %v4016 = vpack.c.b16 %v3166, %v3161
  %v4017 = vpack.c.b16 %v3167, %v3162
  %v4018 = vpack.c.b16 %v3168, %v3163
  %v4019 = vpack.c.b16 %v3174, %v3169
  %v4020 = vpack.c.b16 %v3175, %v3170
  %v4021 = vpack.c.b16 %v3176, %v3171
  %v4022 = vpack.c.b16 %v3177, %v3172
  %v4023 = vpack.c.b16 %v3178, %v3173
  %v4024 = vpack.c.b16 %v3184, %v3179
  %v4025 = vpack.c.b16 %v3185, %v3180
  %v4026 = vpack.c.b16 %v3186, %v3181
  %v4027 = vpack.c.b16 %v3187, %v3182
  %v4028 = vpack.c.b16 %v3188, %v3183
  %v4029 = vpack.c.b16 %v3194, %v3189
  %v4030 = vpack.c.b16 %v3195, %v3190
  %v4031 = vpack.c.b16 %v3196, %v3191
  %v4032 = vpack.c.b16 %v3197, %v3192
  %v4033 = vpack.c.b16 %v3198, %v3193
  %v4034 = vpack.c.b16 %v3204, %v3199
  %v4035 = vpack.c.b16 %v3205, %v3200
  %v4036 = vpack.c.b16 %v3206, %v3201
  %v4037 = vpack.c.b16 %v3207, %v3202
  %v4038 = vpack.c.b16 %v3208, %v3203
  %v4039 = vpack.c.b16 %v3214, %v3209
  %v4040 = vpack.c.b16 %v3215, %v3210
  %v4041 = vpack.c.b16 %v3216, %v3211
  %v4042 = vpack.c.b16 %v3217, %v3212
  %v4043 = vpack.c.b16 %v3218, %v3213
  %v4044 = vpack.c.b16 %v3224, %v3219
  %v4045 = vpack.c.b16 %v3225, %v3220
  %v4046 = vpack.c.b16 %v3226, %v3221
  %v4047 = vpack.c.b16 %v3227, %v3222
  %v4048 = vpack.c.b16 %v3228, %v3223
  %v4049 = vpack.c.b16 %v3234, %v3229
  %v4050 = vpack.c.b16 %v3235, %v3230
  %v4051 = vpack.c.b16 %v3236, %v3231
  %v4052 = vpack.c.b16 %v3237, %v3232
  %v4053 = vpack.c.b16 %v3238, %v3233
  %v4054 = vpack.c.b16 %v3244, %v3239
  %v4055 = vpack.c.b16 %v3245, %v3240
  %v4056 = vpack.c.b16 %v3246, %v3241
  %v4057 = vpack.c.b16 %v3247, %v3242
  %v4058 = vpack.c.b16 %v3248, %v3243
  %v4059 = vpack.c.b16 %v3254, %v3249
  %v4060 = vpack.c.b16 %v3255, %v3250
  %v4061 = vpack.c.b16 %v3256, %v3251
  %v4062 = vpack.c.b16 %v3257, %v3252
  %v4063 = vpack.c.b16 %v3258, %v3253
  %v4064 = vpack.c.b16 %v3264, %v3259
  %v4065 = vpack.c.b16 %v3265, %v3260
  %v4066 = vpack.c.b16 %v3266, %v3261
  %v4067 = vpack.c.b16 %v3267, %v3262
  %v4068 = vpack.c.b16 %v3268, %v3263
  %v4069 = vpack.c.b16 %v3274, %v3269
  %v4070 = vpack.c.b16 %v3275, %v3270
  %v4071 = vpack.c.b16 %v3276, %v3271
  %v4072 = vpack.c.b16 %v3277, %v3272
  %v4073 = vpack.c.b16 %v3278, %v3273
  %v4074 = vpack.c.b16 %v3284, %v3279
  %v4075 = vpack.c.b16 %v3285, %v3280
  %v4076 = vpack.c.b16 %v3286, %v3281
  %v4077 = vpack.c.b16 %v3287, %v3282
  %v4078 = vpack.c.b16 %v3288, %v3283
  %v4079 = vpack.c.b16 %v3294, %v3289
  %v4080 = vpack.c.b16 %v3295, %v3290
  %v4081 = vpack.c.b16 %v3296, %v3291
  %v4082 = vpack.c.b16 %v3297, %v3292
  %v4083 = vpack.c.b16 %v3298, %v3293
  %v4084 = vpack.c.b16 %v3304, %v3299
  %v4085 = vpack.c.b16 %v3305, %v3300
  %v4086 = vpack.c.b16 %v3306, %v3301
  %v4087 = vpack.c.b16 %v3307, %v3302
  %v4088 = vpack.c.b16 %v3308, %v3303
  %v4089 = vpack.c.b16 %v3314, %v3309
  %v4090 = vpack.c.b16 %v3315, %v3310
  %v4091 = vpack.c.b16 %v3316, %v3311
  %v4092 = vpack.c.b16 %v3317, %v3312
  %v4093 = vpack.c.b16 %v3318, %v3313
  %v4094 = vpack.c.b16 %v3324, %v3319
  %v4095 = vpack.c.b16 %v3325, %v3320
  %v4096 = vpack.c.b16 %v3326, %v3321
  %v4097 = vpack.c.b16 %v3327, %v3322
  %v4098 = vpack.c.b16 %v3328, %v3323
  %v4099 = vpack.c.b16 %v3334, %v3329
  %v4100 = vpack.c.b16 %v3335, %v3330
  %v4101 = vpack.c.b16 %v3336, %v3331
  %v4102 = vpack.c.b16 %v3337, %v3332
  %v4103 = vpack.c.b16 %v3338, %v3333
  %v4104 = vpack.c.b16 %v3344, %v3339
  %v4105 = vpack.c.b16 %v3345, %v3340
  %v4106 = vpack.c.b16 %v3346, %v3341
  %v4107 = vpack.c.b16 %v3347, %v3342
  %v4108 = vpack.c.b16 %v3348, %v3343
  %v4109 = vpack.c.b16 %v3354, %v3349
  %v4110 = vpack.c.b16 %v3355, %v3350
  %v4111 = vpack.c.b16 %v3356, %v3351
  %v4112 = vpack.c.b16 %v3357, %v3352
  %v4113 = vpack.c.b16 %v3358, %v3353
  %v4114 = vpack.c.b16 %v3364, %v3359
  %v4115 = vpack.c.b16 %v3365, %v3360
  %v4116 = vpack.c.b16 %v3366, %v3361
  %v4117 = vpack.c.b16 %v3367, %v3362
  %v4118 = vpack.c.b16 %v3368, %v3363
  %v4119 = vpack.c.b16 %v3374, %v3369
  %v4120 = vpack.c.b16 %v3375, %v3370
  %v4121 = vpack.c.b16 %v3376, %v3371
  %v4122 = vpack.c.b16 %v3377, %v3372
  %v4123 = vpack.c.b16 %v3378, %v3373
  %v4124 = vpack.c.b16 %v3384, %v3379
  %v4125 = vpack.c.b16 %v3385, %v3380
  %v4126 = vpack.c.b16 %v3386, %v3381
  %v4127 = vpack.c.b16 %v3387, %v3382
  %v4128 = vpack.c.b16 %v3388, %v3383
  %v4129 = vpack.c.b16 %v3394, %v3389
  %v4130 = vpack.c.b16 %v3395, %v3390
  %v4131 = vpack.c.b16 %v3396, %v3391
  %v4132 = vpack.c.b16 %v3397, %v3392
  %v4133 = vpack.c.b16 %v3398, %v3393
  %v4134 = vpack.c.b16 %v3404, %v3399
  %v4135 = vpack.c.b16 %v3405, %v3400
  %v4136 = vpack.c.b16 %v3406, %v3401
  %v4137 = vpack.c.b16 %v3407, %v3402
  %v4138 = vpack.c.b16 %v3408, %v3403
  %v4139 = vpack.c.b16 %v3414, %v3409
  %v4140 = vpack.c.b16 %v3415, %v3410
  %v4141 = vpack.c.b16 %v3416, %v3411
  %v4142 = vpack.c.b16 %v3417, %v3412
  %v4143 = vpack.c.b16 %v3418, %v3413
  %v4144 = vpack.c.b16 %v3424, %v3419
  %v4145 = vpack.c.b16 %v3425, %v3420
  %v4146 = vpack.c.b16 %v3426, %v3421
  %v4147 = vpack.c.b16 %v3427, %v3422
  %v4148 = vpack.c.b16 %v3428, %v3423
  %v4149 = vpack.c.b16 %v3434, %v3429
  %v4150 = vpack.c.b16 %v3435, %v3430
  %v4151 = vpack.c.b16 %v3436, %v3431
  %v4152 = vpack.c.b16 %v3437, %v3432
  %v4153 = vpack.c.b16 %v3438, %v3433
  %v4154 = vpack.c.b16 %v3444, %v3439
  %v4155 = vpack.c.b16 %v3445, %v3440
  %v4156 = vpack.c.b16 %v3446, %v3441
  %v4157 = vpack.c.b16 %v3447, %v3442
  %v4158 = vpack.c.b16 %v3448, %v3443
  %v4159 = vpack.c.b16 %v3454, %v3449
  %v4160 = vpack.c.b16 %v3455, %v3450
  %v4161 = vpack.c.b16 %v3456, %v3451
  %v4162 = vpack.c.b16 %v3457, %v3452
  %v4163 = vpack.c.b16 %v3458, %v3453
  %v4164 = vpack.c.b16 %v3464, %v3459
  %v4165 = vpack.c.b16 %v3465, %v3460
  %v4166 = vpack.c.b16 %v3466, %v3461
  %v4167 = vpack.c.b16 %v3467, %v3462
  %v4168 = vpack.c.b16 %v3468, %v3463
  %v4169 = vpack.c.b16 %v3474, %v3469
  %v4170 = vpack.c.b16 %v3475, %v3470
  %v4171 = vpack.c.b16 %v3476, %v3471
  %v4172 = vpack.c.b16 %v3477, %v3472
  %v4173 = vpack.c.b16 %v3478, %v3473
  %v4174 = vpack.c.b16 %v3484, %v3479
  %v4175 = vpack.c.b16 %v3485, %v3480
  %v4176 = vpack.c.b16 %v3486, %v3481
  %v4177 = vpack.c.b16 %v3487, %v3482
  %v4178 = vpack.c.b16 %v3488, %v3483
  %v4179 = vpack.c.b16 %v3494, %v3489
  %v4180 = vpack.c.b16 %v3495, %v3490
  %v4181 = vpack.c.b16 %v3496, %v3491
  %v4182 = vpack.c.b16 %v3497, %v3492
  %v4183 = vpack.c.b16 %v3498, %v3493
  %v4184 = vpack.c.b16 %v3504, %v3499
  %v4185 = vpack.c.b16 %v3505, %v3500
  %v4186 = vpack.c.b16 %v3506, %v3501
  %v4187 = vpack.c.b16 %v3507, %v3502
  %v4188 = vpack.c.b16 %v3508, %v3503
  %v4189 = vpack.c.b16 %v3514, %v3509
  %v4190 = vpack.c.b16 %v3515, %v3510
  %v4191 = vpack.c.b16 %v3516, %v3511
  %v4192 = vpack.c.b16 %v3517, %v3512
  %v4193 = vpack.c.b16 %v3518, %v3513
  %v4194 = vpack.c.b16 %v3524, %v3519
  %v4195 = vpack.c.b16 %v3525, %v3520
  %v4196 = vpack.c.b16 %v3526, %v3521
  %v4197 = vpack.c.b16 %v3527, %v3522
  %v4198 = vpack.c.b16 %v3528, %v3523
  %v4199 = vpack.c.b16 %v3534, %v3529
  %v4200 = vpack.c.b16 %v3535, %v3530
  %v4201 = vpack.c.b16 %v3536, %v3531
  %v4202 = vpack.c.b16 %v3537, %v3532
  %v4203 = vpack.c.b16 %v3538, %v3533
  %v4204 = vpack.c.b16 %v3544, %v3539
  %v4205 = vpack.c.b16 %v3545, %v3540
  %v4206 = vpack.c.b16 %v3546, %v3541
  %v4207 = vpack.c.b16 %v3547, %v3542
  %v4208 = vpack.c.b16 %v3548, %v3543
  %v4209 = vpack.c.b16 %v3554, %v3549
  %v4210 = vpack.c.b16 %v3555, %v3550
  %v4211 = vpack.c.b16 %v3556, %v3551
  %v4212 = vpack.c.b16 %v3557, %v3552
  %v4213 = vpack.c.b16 %v3558, %v3553
  %v4214 = vpack.c.b16 %v3564, %v3559
  %v4215 = vpack.c.b16 %v3565, %v3560
  %v4216 = vpack.c.b16 %v3566, %v3561
  %v4217 = vpack.c.b16 %v3567, %v3562
  %v4218 = vpack.c.b16 %v3568, %v3563
  %v4219 = vpack.c.b16 %v3574, %v3569
  %v4220 = vpack.c.b16 %v3575, %v3570
  %v4221 = vpack.c.b16 %v3576, %v3571
  %v4222 = vpack.c.b16 %v3577, %v3572
  %v4223 = vpack.c.b16 %v3578, %v3573
  %v4224 = vpack.c.b16 %v3584, %v3579
  %v4225 = vpack.c.b16 %v3585, %v3580
  %v4226 = vpack.c.b16 %v3586, %v3581
  %v4227 = vpack.c.b16 %v3587, %v3582
  %v4228 = vpack.c.b16 %v3588, %v3583
  %v4229 = vpack.c.b16 %v3594, %v3589
  %v4230 = vpack.c.b16 %v3595, %v3590
  %v4231 = vpack.c.b16 %v3596, %v3591
  %v4232 = vpack.c.b16 %v3597, %v3592
  %v4233 = vpack.c.b16 %v3598, %v3593
  %v4234 = vpack.c.b16 %v3604, %v3599
  %v4235 = vpack.c.b16 %v3605, %v3600
  %v4236 = vpack.c.b16 %v3606, %v3601
  %v4237 = vpack.c.b16 %v3607, %v3602
  %v4238 = vpack.c.b16 %v3608, %v3603
  %v4239 = vpack.c.b16 %v3614, %v3609
  %v4240 = vpack.c.b16 %v3615, %v3610
  %v4241 = vpack.c.b16 %v3616, %v3611
  %v4242 = vpack.c.b16 %v3617, %v3612
  %v4243 = vpack.c.b16 %v3618, %v3613
  %v4244 = vpack.c.b16 %v3624, %v3619
  %v4245 = vpack.c.b16 %v3625, %v3620
  %v4246 = vpack.c.b16 %v3626, %v3621
  %v4247 = vpack.c.b16 %v3627, %v3622
  %v4248 = vpack.c.b16 %v3628, %v3623
  %v4249 = vpack.c.b16 %v3634, %v3629
  %v4250 = vpack.c.b16 %v3635, %v3630
  %v4251 = vpack.c.b16 %v3636, %v3631
  %v4252 = vpack.c.b16 %v3637, %v3632
  %v4253 = vpack.c.b16 %v3638, %v3633
  %v4254 = vpack.c.b16 %v3644, %v3639
  %v4255 = vpack.c.b16 %v3645, %v3640
  %v4256 = vpack.c.b16 %v3646, %v3641
  %v4257 = vpack.c.b16 %v3647, %v3642
  %v4258 = vpack.c.b16 %v3648, %v3643
  %v4259 = vpack.c.b16 %v3654, %v3649
  %v4260 = vpack.c.b16 %v3655, %v3650
  %v4261 = vpack.c.b16 %v3656, %v3651
  %v4262 = vpack.c.b16 %v3657, %v3652
  %v4263 = vpack.c.b16 %v3658, %v3653
  %v4264 = vpack.c.b16 %v3664, %v3659
  %v4265 = vpack.c.b16 %v3665, %v3660
  %v4266 = vpack.c.b16 %v3666, %v3661
  %v4267 = vpack.c.b16 %v3667, %v3662
  %v4268 = vpack.c.b16 %v3668, %v3663
  %v4269 = vpack.c.b16 %v3674, %v3669
  %v4270 = vpack.c.b16 %v3675, %v3670
  %v4271 = vpack.c.b16 %v3676, %v3671
  %v4272 = vpack.c.b16 %v3677, %v3672
  %v4273 = vpack.c.b16 %v3678, %v3673
  %v4274 = vpack.c.b16 %v3684, %v3679
  %v4275 = vpack.c.b16 %v3685, %v3680
  %v4276 = vpack.c.b16 %v3686, %v3681
  %v4277 = vpack.c.b16 %v3687, %v3682
  %v4278 = vpack.c.b16 %v3688, %v3683
  %v4279 = vpack.c.b16 %v3694, %v3689
  %v4280 = vpack.c.b16 %v3695, %v3690
  %v4281 = vpack.c.b16 %v3696, %v3691
  %v4282 = vpack.c.b16 %v3697, %v3692
  %v4283 = vpack.c.b16 %v3698, %v3693
  %v4284 = vpack.c.b16 %v3704, %v3699
  %v4285 = vpack.c.b16 %v3705, %v3700
  %v4286 = vpack.c.b16 %v3706, %v3701
  %v4287 = vpack.c.b16 %v3707, %v3702
  %v4288 = vpack.c.b16 %v3708, %v3703
  %v4289 = vpack.c.b16 %v3714, %v3709
  %v4290 = vpack.c.b16 %v3715, %v3710
  %v4291 = vpack.c.b16 %v3716, %v3711
  %v4292 = vpack.c.b16 %v3717, %v3712
  %v4293 = vpack.c.b16 %v3718, %v3713
  %v4294 = vpack.c.b16 %v3724, %v3719
  %v4295 = vpack.c.b16 %v3725, %v3720
  %v4296 = vpack.c.b16 %v3726, %v3721
  %v4297 = vpack.c.b16 %v3727, %v3722
  %v4298 = vpack.c.b16 %v3728, %v3723
  %v4299 = vpack.c.b16 %v3734, %v3729
  %v4300 = vpack.c.b16 %v3735, %v3730
  %v4301 = vpack.c.b16 %v3736, %v3731
  %v4302 = vpack.c.b16 %v3737, %v3732
  %v4303 = vpack.c.b16 %v3738, %v3733
  %v4304 = vpack.c.b16 %v3744, %v3739
  %v4305 = vpack.c.b16 %v3745, %v3740
  %v4306 = vpack.c.b16 %v3746, %v3741
  %v4307 = vpack.c.b16 %v3747, %v3742
  %v4308 = vpack.c.b16 %v3748, %v3743
  %v4309 = vpack.c.b16 %v3754, %v3749
  %v4310 = vpack.c.b16 %v3755, %v3750
  %v4311 = vpack.c.b16 %v3756, %v3751
  %v4312 = vpack.c.b16 %v3757, %v3752
  %v4313 = vpack.c.b16 %v3758, %v3753
  %v4314 = vpack.c.b16 %v3764, %v3759
  %v4315 = vpack.c.b16 %v3765, %v3760
  %v4316 = vpack.c.b16 %v3766, %v3761
  %v4317 = vpack.c.b16 %v3767, %v3762
  %v4318 = vpack.c.b16 %v3768, %v3763
  %v4319 = vpack.c.b16 %v3774, %v3769
  %v4320 = vpack.c.b16 %v3775, %v3770
  %v4321 = vpack.c.b16 %v3776, %v3771
  %v4322 = vpack.c.b16 %v3777, %v3772
  %v4323 = vpack.c.b16 %v3778, %v3773
  %v4324 = vpack.c.b16 %v3784, %v3779
  %v4325 = vpack.c.b16 %v3785, %v3780
  %v4326 = vpack.c.b16 %v3786, %v3781
  %v4327 = vpack.c.b16 %v3787, %v3782
  %v4328 = vpack.c.b16 %v3788, %v3783
  %v4329 = vpack.c.b16 %v3794, %v3789
  %v4330 = vpack.c.b16 %v3795, %v3790
  %v4331 = vpack.c.b16 %v3796, %v3791
  %v4332 = vpack.c.b16 %v3797, %v3792
  %v4333 = vpack.c.b16 %v3798, %v3793
  %v4334 = vpack.c.b16 %v3804, %v3799
  %v4335 = vpack.c.b16 %v3805, %v3800
  %v4336 = vpack.c.b16 %v3806, %v3801
  %v4337 = vpack.c.b16 %v3807, %v3802
  %v4338 = vpack.c.b16 %v3808, %v3803
  %v4339 = vpack.c.b16 %v3814, %v3809
  %v4340 = vpack.c.b16 %v3815, %v3810
  %v4341 = vpack.c.b16 %v3816, %v3811
  %v4342 = vpack.c.b16 %v3817, %v3812
  %v4343 = vpack.c.b16 %v3818, %v3813
  %v4344 = vpack.c.b16 %v3824, %v3819
  %v4345 = vpack.c.b16 %v3825, %v3820
  %v4346 = vpack.c.b16 %v3826, %v3821
  %v4347 = vpack.c.b16 %v3827, %v3822
  %v4348 = vpack.c.b16 %v3828, %v3823
  %v4349 = vpack.c.b16 %v3834, %v3829
  %v4350 = vpack.c.b16 %v3835, %v3830
  %v4351 = vpack.c.b16 %v3836, %v3831
  %v4352 = vpack.c.b16 %v3837, %v3832
  %v4353 = vpack.c.b16 %v3838, %v3833
  %v4354 = vpack.c.b16 %v3844, %v3839
  %v4355 = vpack.c.b16 %v3845, %v3840
  %v4356 = vpack.c.b16 %v3846, %v3841
  %v4357 = vpack.c.b16 %v3847, %v3842
  %v4358 = vpack.c.b16 %v3848, %v3843
  %v4359 = vpack.c.b16 %v3854, %v3849
  %v4360 = vpack.c.b16 %v3855, %v3850
  %v4361 = vpack.c.b16 %v3856, %v3851
  %v4362 = vpack.c.b16 %v3857, %v3852
  %v4363 = vpack.c.b16 %v3858, %v3853
  %v4364 = vpack.c.b16 %v3864, %v3859
  %v4365 = vpack.c.b16 %v3865, %v3860
  %v4366 = vpack.c.b16 %v3866, %v3861
  %v4367 = vpack.c.b16 %v3867, %v3862
  %v4368 = vpack.c.b16 %v3868, %v3863
  %v4369 = vpack.c.b16 %v3874, %v3869
  %v4370 = vpack.c.b16 %v3875, %v3870
  %v4371 = vpack.c.b16 %v3876, %v3871
  %v4372 = vpack.c.b16 %v3877, %v3872
  %v4373 = vpack.c.b16 %v3878, %v3873
  %v4374 = vpack.c.b16 %v3884, %v3879
  %v4375 = vpack.c.b16 %v3885, %v3880
  %v4376 = vpack.c.b16 %v3886, %v3881
  %v4377 = vpack.c.b16 %v3887, %v3882
  %v4378 = vpack.c.b16 %v3888, %v3883
  %vm4869 = vcmask 261120
  %v4871 = vsel %vm4869, %v1720, 0
  %4873 = vmatpush.bf16.msra.mxu0 %v3924
  %4874 = vmatpush.bf16.msra.mxu0 %v3919
  %4875 = vmatpush.bf16.msra.mxu0 %v3914
  %4876 = vmatpush.bf16.msra.mxu0 %v3909
  %4877 = vmatpush.bf16.msra.mxu0 %v3904
  %4878 = vmatpush.bf16.msra.mxu0 %v3899
  %4879 = vmatpush.bf16.msra.mxu0 %v3894
  %4880 = vmatpush.bf16.msra.mxu0 %v3889
  %4881 = vmatmul.bf16.gmra.mxu0 %v1708
  %v4882 = vpop.f32.mrf.mxu0
  %v4883 = vadd.f32 %v2311, %v4882
  %v4884 = vpop.f32.mrf.mxu0
  %4885 = vdwg.mxu0
  %4886 = vmatpush.bf16.msra.mxu0 %v3964
  %4887 = vmatpush.bf16.msra.mxu0 %v3959
  %4888 = vmatpush.bf16.msra.mxu0 %v3954
  %4889 = vmatpush.bf16.msra.mxu0 %v3949
  %4890 = vmatpush.bf16.msra.mxu0 %v3944
  %4891 = vmatpush.bf16.msra.mxu0 %v3939
  %4892 = vmatpush.bf16.msra.mxu0 %v3934
  %4893 = vmatpush.bf16.msra.mxu0 %v3929
  %4894 = vmatmul.bf16.gmra.mxu0 %v1709
  %v4895 = vpop.f32.mrf.mxu0
  %v4896 = vadd.f32 %v4883, %v4895
  %v4897 = vpop.f32.mrf.mxu0
  %4898 = vdwg.mxu0
  %4899 = vmatpush.bf16.msra.mxu0 %v4004
  %4900 = vmatpush.bf16.msra.mxu0 %v3999
  %4901 = vmatpush.bf16.msra.mxu0 %v3994
  %4902 = vmatpush.bf16.msra.mxu0 %v3989
  %4903 = vmatpush.bf16.msra.mxu0 %v3984
  %4904 = vmatpush.bf16.msra.mxu0 %v3979
  %4905 = vmatpush.bf16.msra.mxu0 %v3974
  %4906 = vmatpush.bf16.msra.mxu0 %v3969
  %4907 = vmatmul.bf16.gmra.mxu0 %v1710
  %v4908 = vpop.f32.mrf.mxu0
  %v4909 = vadd.f32 %v4896, %v4908
  %v4910 = vpop.f32.mrf.mxu0
  %4911 = vdwg.mxu0
  %4912 = vmatpush.bf16.msra.mxu0 %v4044
  %4913 = vmatpush.bf16.msra.mxu0 %v4039
  %4914 = vmatpush.bf16.msra.mxu0 %v4034
  %4915 = vmatpush.bf16.msra.mxu0 %v4029
  %4916 = vmatpush.bf16.msra.mxu0 %v4024
  %4917 = vmatpush.bf16.msra.mxu0 %v4019
  %4918 = vmatpush.bf16.msra.mxu0 %v4014
  %4919 = vmatpush.bf16.msra.mxu0 %v4009
  %4920 = vmatmul.bf16.gmra.mxu0 %v1711
  %v4921 = vpop.f32.mrf.mxu0
  %v4922 = vadd.f32 %v4909, %v4921
  %v4923 = vpop.f32.mrf.mxu0
  %4924 = vdwg.mxu0
  %4925 = vmatpush.bf16.msra.mxu0 %v4084
  %4926 = vmatpush.bf16.msra.mxu0 %v4079
  %4927 = vmatpush.bf16.msra.mxu0 %v4074
  %4928 = vmatpush.bf16.msra.mxu0 %v4069
  %4929 = vmatpush.bf16.msra.mxu0 %v4064
  %4930 = vmatpush.bf16.msra.mxu0 %v4059
  %4931 = vmatpush.bf16.msra.mxu0 %v4054
  %4932 = vmatpush.bf16.msra.mxu0 %v4049
  %4933 = vmatmul.bf16.gmra.mxu0 %v1712
  %v4934 = vpop.f32.mrf.mxu0
  %v4935 = vadd.f32 %v4922, %v4934
  %v4936 = vpop.f32.mrf.mxu0
  %4937 = vdwg.mxu0
  %4938 = vmatpush.bf16.msra.mxu0 %v4124
  %4939 = vmatpush.bf16.msra.mxu0 %v4119
  %4940 = vmatpush.bf16.msra.mxu0 %v4114
  %4941 = vmatpush.bf16.msra.mxu0 %v4109
  %4942 = vmatpush.bf16.msra.mxu0 %v4104
  %4943 = vmatpush.bf16.msra.mxu0 %v4099
  %4944 = vmatpush.bf16.msra.mxu0 %v4094
  %4945 = vmatpush.bf16.msra.mxu0 %v4089
  %4946 = vmatmul.bf16.gmra.mxu0 %v1713
  %v4947 = vpop.f32.mrf.mxu0
  %v4948 = vadd.f32 %v4935, %v4947
  %v4949 = vpop.f32.mrf.mxu0
  %4950 = vdwg.mxu0
  %4951 = vmatpush.bf16.msra.mxu0 %v4164
  %4952 = vmatpush.bf16.msra.mxu0 %v4159
  %4953 = vmatpush.bf16.msra.mxu0 %v4154
  %4954 = vmatpush.bf16.msra.mxu0 %v4149
  %4955 = vmatpush.bf16.msra.mxu0 %v4144
  %4956 = vmatpush.bf16.msra.mxu0 %v4139
  %4957 = vmatpush.bf16.msra.mxu0 %v4134
  %4958 = vmatpush.bf16.msra.mxu0 %v4129
  %4959 = vmatmul.bf16.gmra.mxu0 %v1714
  %v4960 = vpop.f32.mrf.mxu0
  %v4961 = vadd.f32 %v4948, %v4960
  %v4962 = vpop.f32.mrf.mxu0
  %4963 = vdwg.mxu0
  %4964 = vmatpush.bf16.msra.mxu0 %v4204
  %4965 = vmatpush.bf16.msra.mxu0 %v4199
  %4966 = vmatpush.bf16.msra.mxu0 %v4194
  %4967 = vmatpush.bf16.msra.mxu0 %v4189
  %4968 = vmatpush.bf16.msra.mxu0 %v4184
  %4969 = vmatpush.bf16.msra.mxu0 %v4179
  %4970 = vmatpush.bf16.msra.mxu0 %v4174
  %4971 = vmatpush.bf16.msra.mxu0 %v4169
  %4972 = vmatmul.bf16.gmra.mxu0 %v1715
  %v4973 = vpop.f32.mrf.mxu0
  %v4974 = vadd.f32 %v4961, %v4973
  %v4975 = vpop.f32.mrf.mxu0
  %4976 = vdwg.mxu0
  %4977 = vmatpush.bf16.msra.mxu0 %v4244
  %4978 = vmatpush.bf16.msra.mxu0 %v4239
  %4979 = vmatpush.bf16.msra.mxu0 %v4234
  %4980 = vmatpush.bf16.msra.mxu0 %v4229
  %4981 = vmatpush.bf16.msra.mxu0 %v4224
  %4982 = vmatpush.bf16.msra.mxu0 %v4219
  %4983 = vmatpush.bf16.msra.mxu0 %v4214
  %4984 = vmatpush.bf16.msra.mxu0 %v4209
  %4985 = vmatmul.bf16.gmra.mxu0 %v1716
  %v4986 = vpop.f32.mrf.mxu0
  %v4987 = vadd.f32 %v4974, %v4986
  %v4988 = vpop.f32.mrf.mxu0
  %4989 = vdwg.mxu0
  %4990 = vmatpush.bf16.msra.mxu0 %v4284
  %4991 = vmatpush.bf16.msra.mxu0 %v4279
  %4992 = vmatpush.bf16.msra.mxu0 %v4274
  %4993 = vmatpush.bf16.msra.mxu0 %v4269
  %4994 = vmatpush.bf16.msra.mxu0 %v4264
  %4995 = vmatpush.bf16.msra.mxu0 %v4259
  %4996 = vmatpush.bf16.msra.mxu0 %v4254
  %4997 = vmatpush.bf16.msra.mxu0 %v4249
  %4998 = vmatmul.bf16.gmra.mxu0 %v1717
  %v4999 = vpop.f32.mrf.mxu0
  %v5000 = vadd.f32 %v4987, %v4999
  %v5001 = vpop.f32.mrf.mxu0
  %5002 = vdwg.mxu0
  %5003 = vmatpush.bf16.msra.mxu0 %v4324
  %5004 = vmatpush.bf16.msra.mxu0 %v4319
  %5005 = vmatpush.bf16.msra.mxu0 %v4314
  %5006 = vmatpush.bf16.msra.mxu0 %v4309
  %5007 = vmatpush.bf16.msra.mxu0 %v4304
  %5008 = vmatpush.bf16.msra.mxu0 %v4299
  %5009 = vmatpush.bf16.msra.mxu0 %v4294
  %5010 = vmatpush.bf16.msra.mxu0 %v4289
  %5011 = vmatmul.bf16.gmra.mxu0 %v1718
  %v5012 = vpop.f32.mrf.mxu0
  %v5013 = vadd.f32 %v5000, %v5012
  %v5014 = vpop.f32.mrf.mxu0
  %5015 = vdwg.mxu0
  %5016 = vmatpush.bf16.msra.mxu0 %v4364
  %5017 = vmatpush.bf16.msra.mxu0 %v4359
  %5018 = vmatpush.bf16.msra.mxu0 %v4354
  %5019 = vmatpush.bf16.msra.mxu0 %v4349
  %5020 = vmatpush.bf16.msra.mxu0 %v4344
  %5021 = vmatpush.bf16.msra.mxu0 %v4339
  %5022 = vmatpush.bf16.msra.mxu0 %v4334
  %5023 = vmatpush.bf16.msra.mxu0 %v4329
  %5024 = vmatmul.bf16.gmra.mxu0 %v1719
  %v5025 = vpop.f32.mrf.mxu0
  %v5026 = vadd.f32 %v5013, %v5025
  %v5027 = vpop.f32.mrf.mxu0
  %5028 = vdwg.mxu0
  %5029 = vmatpush.bf16.msra.mxu0 0
  %5030 = vmatpush.bf16.msra.mxu0 0
  %5031 = vmatpush.bf16.msra.mxu0 0
  %5032 = vmatpush.bf16.msra.mxu0 0
  %5033 = vmatpush.bf16.msra.mxu0 0
  %5034 = vmatpush.bf16.msra.mxu0 0
  %5035 = vmatpush.bf16.msra.mxu0 %v4374
  %5036 = vmatpush.bf16.msra.mxu0 %v4369
  %5037 = vmatmul.bf16.gmra.mxu0 %v4871
  %v5038 = vpop.f32.mrf.mxu0
  %v5039 = vadd.f32 %v5026, %v5038
  %v5040 = vpop.f32.mrf.mxu0
  %5041 = vdwg.mxu0
  %5042 = vmatpush.bf16.msra.mxu0 %v3925
  %5043 = vmatpush.bf16.msra.mxu0 %v3920
  %5044 = vmatpush.bf16.msra.mxu0 %v3915
  %5045 = vmatpush.bf16.msra.mxu0 %v3910
  %5046 = vmatpush.bf16.msra.mxu0 %v3905
  %5047 = vmatpush.bf16.msra.mxu0 %v3900
  %5048 = vmatpush.bf16.msra.mxu0 %v3895
  %5049 = vmatpush.bf16.msra.mxu0 %v3890
  %5050 = vmatmul.bf16.gmra.mxu0 %v1708
  %v5051 = vpop.f32.mrf.mxu0
  %v5052 = vadd.f32 %v2312, %v5051
  %v5053 = vpop.f32.mrf.mxu0
  %5054 = vdwg.mxu0
  %5055 = vmatpush.bf16.msra.mxu0 %v3965
  %5056 = vmatpush.bf16.msra.mxu0 %v3960
  %5057 = vmatpush.bf16.msra.mxu0 %v3955
  %5058 = vmatpush.bf16.msra.mxu0 %v3950
  %5059 = vmatpush.bf16.msra.mxu0 %v3945
  %5060 = vmatpush.bf16.msra.mxu0 %v3940
  %5061 = vmatpush.bf16.msra.mxu0 %v3935
  %5062 = vmatpush.bf16.msra.mxu0 %v3930
  %5063 = vmatmul.bf16.gmra.mxu0 %v1709
  %v5064 = vpop.f32.mrf.mxu0
  %v5065 = vadd.f32 %v5052, %v5064
  %v5066 = vpop.f32.mrf.mxu0
  %5067 = vdwg.mxu0
  %5068 = vmatpush.bf16.msra.mxu0 %v4005
  %5069 = vmatpush.bf16.msra.mxu0 %v4000
  %5070 = vmatpush.bf16.msra.mxu0 %v3995
  %5071 = vmatpush.bf16.msra.mxu0 %v3990
  %5072 = vmatpush.bf16.msra.mxu0 %v3985
  %5073 = vmatpush.bf16.msra.mxu0 %v3980
  %5074 = vmatpush.bf16.msra.mxu0 %v3975
  %5075 = vmatpush.bf16.msra.mxu0 %v3970
  %5076 = vmatmul.bf16.gmra.mxu0 %v1710
  %v5077 = vpop.f32.mrf.mxu0
  %v5078 = vadd.f32 %v5065, %v5077
  %v5079 = vpop.f32.mrf.mxu0
  %5080 = vdwg.mxu0
  %5081 = vmatpush.bf16.msra.mxu0 %v4045
  %5082 = vmatpush.bf16.msra.mxu0 %v4040
  %5083 = vmatpush.bf16.msra.mxu0 %v4035
  %5084 = vmatpush.bf16.msra.mxu0 %v4030
  %5085 = vmatpush.bf16.msra.mxu0 %v4025
  %5086 = vmatpush.bf16.msra.mxu0 %v4020
  %5087 = vmatpush.bf16.msra.mxu0 %v4015
  %5088 = vmatpush.bf16.msra.mxu0 %v4010
  %5089 = vmatmul.bf16.gmra.mxu0 %v1711
  %v5090 = vpop.f32.mrf.mxu0
  %v5091 = vadd.f32 %v5078, %v5090
  %v5092 = vpop.f32.mrf.mxu0
  %5093 = vdwg.mxu0
  %5094 = vmatpush.bf16.msra.mxu0 %v4085
  %5095 = vmatpush.bf16.msra.mxu0 %v4080
  %5096 = vmatpush.bf16.msra.mxu0 %v4075
  %5097 = vmatpush.bf16.msra.mxu0 %v4070
  %5098 = vmatpush.bf16.msra.mxu0 %v4065
  %5099 = vmatpush.bf16.msra.mxu0 %v4060
  %5100 = vmatpush.bf16.msra.mxu0 %v4055
  %5101 = vmatpush.bf16.msra.mxu0 %v4050
  %5102 = vmatmul.bf16.gmra.mxu0 %v1712
  %v5103 = vpop.f32.mrf.mxu0
  %v5104 = vadd.f32 %v5091, %v5103
  %v5105 = vpop.f32.mrf.mxu0
  %5106 = vdwg.mxu0
  %5107 = vmatpush.bf16.msra.mxu0 %v4125
  %5108 = vmatpush.bf16.msra.mxu0 %v4120
  %5109 = vmatpush.bf16.msra.mxu0 %v4115
  %5110 = vmatpush.bf16.msra.mxu0 %v4110
  %5111 = vmatpush.bf16.msra.mxu0 %v4105
  %5112 = vmatpush.bf16.msra.mxu0 %v4100
  %5113 = vmatpush.bf16.msra.mxu0 %v4095
  %5114 = vmatpush.bf16.msra.mxu0 %v4090
  %5115 = vmatmul.bf16.gmra.mxu0 %v1713
  %v5116 = vpop.f32.mrf.mxu0
  %v5117 = vadd.f32 %v5104, %v5116
  %v5118 = vpop.f32.mrf.mxu0
  %5119 = vdwg.mxu0
  %5120 = vmatpush.bf16.msra.mxu0 %v4165
  %5121 = vmatpush.bf16.msra.mxu0 %v4160
  %5122 = vmatpush.bf16.msra.mxu0 %v4155
  %5123 = vmatpush.bf16.msra.mxu0 %v4150
  %5124 = vmatpush.bf16.msra.mxu0 %v4145
  %5125 = vmatpush.bf16.msra.mxu0 %v4140
  %5126 = vmatpush.bf16.msra.mxu0 %v4135
  %5127 = vmatpush.bf16.msra.mxu0 %v4130
  %5128 = vmatmul.bf16.gmra.mxu0 %v1714
  %v5129 = vpop.f32.mrf.mxu0
  %v5130 = vadd.f32 %v5117, %v5129
  %v5131 = vpop.f32.mrf.mxu0
  %5132 = vdwg.mxu0
  %5133 = vmatpush.bf16.msra.mxu0 %v4205
  %5134 = vmatpush.bf16.msra.mxu0 %v4200
  %5135 = vmatpush.bf16.msra.mxu0 %v4195
  %5136 = vmatpush.bf16.msra.mxu0 %v4190
  %5137 = vmatpush.bf16.msra.mxu0 %v4185
  %5138 = vmatpush.bf16.msra.mxu0 %v4180
  %5139 = vmatpush.bf16.msra.mxu0 %v4175
  %5140 = vmatpush.bf16.msra.mxu0 %v4170
  %5141 = vmatmul.bf16.gmra.mxu0 %v1715
  %v5142 = vpop.f32.mrf.mxu0
  %v5143 = vadd.f32 %v5130, %v5142
  %v5144 = vpop.f32.mrf.mxu0
  %5145 = vdwg.mxu0
  %5146 = vmatpush.bf16.msra.mxu0 %v4245
  %5147 = vmatpush.bf16.msra.mxu0 %v4240
  %5148 = vmatpush.bf16.msra.mxu0 %v4235
  %5149 = vmatpush.bf16.msra.mxu0 %v4230
  %5150 = vmatpush.bf16.msra.mxu0 %v4225
  %5151 = vmatpush.bf16.msra.mxu0 %v4220
  %5152 = vmatpush.bf16.msra.mxu0 %v4215
  %5153 = vmatpush.bf16.msra.mxu0 %v4210
  %5154 = vmatmul.bf16.gmra.mxu0 %v1716
  %v5155 = vpop.f32.mrf.mxu0
  %v5156 = vadd.f32 %v5143, %v5155
  %v5157 = vpop.f32.mrf.mxu0
  %5158 = vdwg.mxu0
  %5159 = vmatpush.bf16.msra.mxu0 %v4285
  %5160 = vmatpush.bf16.msra.mxu0 %v4280
  %5161 = vmatpush.bf16.msra.mxu0 %v4275
  %5162 = vmatpush.bf16.msra.mxu0 %v4270
  %5163 = vmatpush.bf16.msra.mxu0 %v4265
  %5164 = vmatpush.bf16.msra.mxu0 %v4260
  %5165 = vmatpush.bf16.msra.mxu0 %v4255
  %5166 = vmatpush.bf16.msra.mxu0 %v4250
  %5167 = vmatmul.bf16.gmra.mxu0 %v1717
  %v5168 = vpop.f32.mrf.mxu0
  %v5169 = vadd.f32 %v5156, %v5168
  %v5170 = vpop.f32.mrf.mxu0
  %5171 = vdwg.mxu0
  %5172 = vmatpush.bf16.msra.mxu0 %v4325
  %5173 = vmatpush.bf16.msra.mxu0 %v4320
  %5174 = vmatpush.bf16.msra.mxu0 %v4315
  %5175 = vmatpush.bf16.msra.mxu0 %v4310
  %5176 = vmatpush.bf16.msra.mxu0 %v4305
  %5177 = vmatpush.bf16.msra.mxu0 %v4300
  %5178 = vmatpush.bf16.msra.mxu0 %v4295
  %5179 = vmatpush.bf16.msra.mxu0 %v4290
  %5180 = vmatmul.bf16.gmra.mxu0 %v1718
  %v5181 = vpop.f32.mrf.mxu0
  %v5182 = vadd.f32 %v5169, %v5181
  %v5183 = vpop.f32.mrf.mxu0
  %5184 = vdwg.mxu0
  %5185 = vmatpush.bf16.msra.mxu0 %v4365
  %5186 = vmatpush.bf16.msra.mxu0 %v4360
  %5187 = vmatpush.bf16.msra.mxu0 %v4355
  %5188 = vmatpush.bf16.msra.mxu0 %v4350
  %5189 = vmatpush.bf16.msra.mxu0 %v4345
  %5190 = vmatpush.bf16.msra.mxu0 %v4340
  %5191 = vmatpush.bf16.msra.mxu0 %v4335
  %5192 = vmatpush.bf16.msra.mxu0 %v4330
  %5193 = vmatmul.bf16.gmra.mxu0 %v1719
  %v5194 = vpop.f32.mrf.mxu0
  %v5195 = vadd.f32 %v5182, %v5194
  %v5196 = vpop.f32.mrf.mxu0
  %5197 = vdwg.mxu0
  %5198 = vmatpush.bf16.msra.mxu0 0
  %5199 = vmatpush.bf16.msra.mxu0 0
  %5200 = vmatpush.bf16.msra.mxu0 0
  %5201 = vmatpush.bf16.msra.mxu0 0
  %5202 = vmatpush.bf16.msra.mxu0 0
  %5203 = vmatpush.bf16.msra.mxu0 0
  %5204 = vmatpush.bf16.msra.mxu0 %v4375
  %5205 = vmatpush.bf16.msra.mxu0 %v4370
  %5206 = vmatmul.bf16.gmra.mxu0 %v4871
  %v5207 = vpop.f32.mrf.mxu0
  %v5208 = vadd.f32 %v5195, %v5207
  %v5209 = vpop.f32.mrf.mxu0
  %5210 = vdwg.mxu0
  %5211 = vmatpush.bf16.msra.mxu0 %v3926
  %5212 = vmatpush.bf16.msra.mxu0 %v3921
  %5213 = vmatpush.bf16.msra.mxu0 %v3916
  %5214 = vmatpush.bf16.msra.mxu0 %v3911
  %5215 = vmatpush.bf16.msra.mxu0 %v3906
  %5216 = vmatpush.bf16.msra.mxu0 %v3901
  %5217 = vmatpush.bf16.msra.mxu0 %v3896
  %5218 = vmatpush.bf16.msra.mxu0 %v3891
  %5219 = vmatmul.bf16.gmra.mxu0 %v1708
  %v5220 = vpop.f32.mrf.mxu0
  %v5221 = vadd.f32 %v2313, %v5220
  %v5222 = vpop.f32.mrf.mxu0
  %5223 = vdwg.mxu0
  %5224 = vmatpush.bf16.msra.mxu0 %v3966
  %5225 = vmatpush.bf16.msra.mxu0 %v3961
  %5226 = vmatpush.bf16.msra.mxu0 %v3956
  %5227 = vmatpush.bf16.msra.mxu0 %v3951
  %5228 = vmatpush.bf16.msra.mxu0 %v3946
  %5229 = vmatpush.bf16.msra.mxu0 %v3941
  %5230 = vmatpush.bf16.msra.mxu0 %v3936
  %5231 = vmatpush.bf16.msra.mxu0 %v3931
  %5232 = vmatmul.bf16.gmra.mxu0 %v1709
  %v5233 = vpop.f32.mrf.mxu0
  %v5234 = vadd.f32 %v5221, %v5233
  %v5235 = vpop.f32.mrf.mxu0
  %5236 = vdwg.mxu0
  %5237 = vmatpush.bf16.msra.mxu0 %v4006
  %5238 = vmatpush.bf16.msra.mxu0 %v4001
  %5239 = vmatpush.bf16.msra.mxu0 %v3996
  %5240 = vmatpush.bf16.msra.mxu0 %v3991
  %5241 = vmatpush.bf16.msra.mxu0 %v3986
  %5242 = vmatpush.bf16.msra.mxu0 %v3981
  %5243 = vmatpush.bf16.msra.mxu0 %v3976
  %5244 = vmatpush.bf16.msra.mxu0 %v3971
  %5245 = vmatmul.bf16.gmra.mxu0 %v1710
  %v5246 = vpop.f32.mrf.mxu0
  %v5247 = vadd.f32 %v5234, %v5246
  %v5248 = vpop.f32.mrf.mxu0
  %5249 = vdwg.mxu0
  %5250 = vmatpush.bf16.msra.mxu0 %v4046
  %5251 = vmatpush.bf16.msra.mxu0 %v4041
  %5252 = vmatpush.bf16.msra.mxu0 %v4036
  %5253 = vmatpush.bf16.msra.mxu0 %v4031
  %5254 = vmatpush.bf16.msra.mxu0 %v4026
  %5255 = vmatpush.bf16.msra.mxu0 %v4021
  %5256 = vmatpush.bf16.msra.mxu0 %v4016
  %5257 = vmatpush.bf16.msra.mxu0 %v4011
  %5258 = vmatmul.bf16.gmra.mxu0 %v1711
  %v5259 = vpop.f32.mrf.mxu0
  %v5260 = vadd.f32 %v5247, %v5259
  %v5261 = vpop.f32.mrf.mxu0
  %5262 = vdwg.mxu0
  %5263 = vmatpush.bf16.msra.mxu0 %v4086
  %5264 = vmatpush.bf16.msra.mxu0 %v4081
  %5265 = vmatpush.bf16.msra.mxu0 %v4076
  %5266 = vmatpush.bf16.msra.mxu0 %v4071
  %5267 = vmatpush.bf16.msra.mxu0 %v4066
  %5268 = vmatpush.bf16.msra.mxu0 %v4061
  %5269 = vmatpush.bf16.msra.mxu0 %v4056
  %5270 = vmatpush.bf16.msra.mxu0 %v4051
  %5271 = vmatmul.bf16.gmra.mxu0 %v1712
  %v5272 = vpop.f32.mrf.mxu0
  %v5273 = vadd.f32 %v5260, %v5272
  %v5274 = vpop.f32.mrf.mxu0
  %5275 = vdwg.mxu0
  %5276 = vmatpush.bf16.msra.mxu0 %v4126
  %5277 = vmatpush.bf16.msra.mxu0 %v4121
  %5278 = vmatpush.bf16.msra.mxu0 %v4116
  %5279 = vmatpush.bf16.msra.mxu0 %v4111
  %5280 = vmatpush.bf16.msra.mxu0 %v4106
  %5281 = vmatpush.bf16.msra.mxu0 %v4101
  %5282 = vmatpush.bf16.msra.mxu0 %v4096
  %5283 = vmatpush.bf16.msra.mxu0 %v4091
  %5284 = vmatmul.bf16.gmra.mxu0 %v1713
  %v5285 = vpop.f32.mrf.mxu0
  %v5286 = vadd.f32 %v5273, %v5285
  %v5287 = vpop.f32.mrf.mxu0
  %5288 = vdwg.mxu0
  %5289 = vmatpush.bf16.msra.mxu0 %v4166
  %5290 = vmatpush.bf16.msra.mxu0 %v4161
  %5291 = vmatpush.bf16.msra.mxu0 %v4156
  %5292 = vmatpush.bf16.msra.mxu0 %v4151
  %5293 = vmatpush.bf16.msra.mxu0 %v4146
  %5294 = vmatpush.bf16.msra.mxu0 %v4141
  %5295 = vmatpush.bf16.msra.mxu0 %v4136
  %5296 = vmatpush.bf16.msra.mxu0 %v4131
  %5297 = vmatmul.bf16.gmra.mxu0 %v1714
  %v5298 = vpop.f32.mrf.mxu0
  %v5299 = vadd.f32 %v5286, %v5298
  %v5300 = vpop.f32.mrf.mxu0
  %5301 = vdwg.mxu0
  %5302 = vmatpush.bf16.msra.mxu0 %v4206
  %5303 = vmatpush.bf16.msra.mxu0 %v4201
  %5304 = vmatpush.bf16.msra.mxu0 %v4196
  %5305 = vmatpush.bf16.msra.mxu0 %v4191
  %5306 = vmatpush.bf16.msra.mxu0 %v4186
  %5307 = vmatpush.bf16.msra.mxu0 %v4181
  %5308 = vmatpush.bf16.msra.mxu0 %v4176
  %5309 = vmatpush.bf16.msra.mxu0 %v4171
  %5310 = vmatmul.bf16.gmra.mxu0 %v1715
  %v5311 = vpop.f32.mrf.mxu0
  %v5312 = vadd.f32 %v5299, %v5311
  %v5313 = vpop.f32.mrf.mxu0
  %5314 = vdwg.mxu0
  %5315 = vmatpush.bf16.msra.mxu0 %v4246
  %5316 = vmatpush.bf16.msra.mxu0 %v4241
  %5317 = vmatpush.bf16.msra.mxu0 %v4236
  %5318 = vmatpush.bf16.msra.mxu0 %v4231
  %5319 = vmatpush.bf16.msra.mxu0 %v4226
  %5320 = vmatpush.bf16.msra.mxu0 %v4221
  %5321 = vmatpush.bf16.msra.mxu0 %v4216
  %5322 = vmatpush.bf16.msra.mxu0 %v4211
  %5323 = vmatmul.bf16.gmra.mxu0 %v1716
  %v5324 = vpop.f32.mrf.mxu0
  %v5325 = vadd.f32 %v5312, %v5324
  %v5326 = vpop.f32.mrf.mxu0
  %5327 = vdwg.mxu0
  %5328 = vmatpush.bf16.msra.mxu0 %v4286
  %5329 = vmatpush.bf16.msra.mxu0 %v4281
  %5330 = vmatpush.bf16.msra.mxu0 %v4276
  %5331 = vmatpush.bf16.msra.mxu0 %v4271
  %5332 = vmatpush.bf16.msra.mxu0 %v4266
  %5333 = vmatpush.bf16.msra.mxu0 %v4261
  %5334 = vmatpush.bf16.msra.mxu0 %v4256
  %5335 = vmatpush.bf16.msra.mxu0 %v4251
  %5336 = vmatmul.bf16.gmra.mxu0 %v1717
  %v5337 = vpop.f32.mrf.mxu0
  %v5338 = vadd.f32 %v5325, %v5337
  %v5339 = vpop.f32.mrf.mxu0
  %5340 = vdwg.mxu0
  %5341 = vmatpush.bf16.msra.mxu0 %v4326
  %5342 = vmatpush.bf16.msra.mxu0 %v4321
  %5343 = vmatpush.bf16.msra.mxu0 %v4316
  %5344 = vmatpush.bf16.msra.mxu0 %v4311
  %5345 = vmatpush.bf16.msra.mxu0 %v4306
  %5346 = vmatpush.bf16.msra.mxu0 %v4301
  %5347 = vmatpush.bf16.msra.mxu0 %v4296
  %5348 = vmatpush.bf16.msra.mxu0 %v4291
  %5349 = vmatmul.bf16.gmra.mxu0 %v1718
  %v5350 = vpop.f32.mrf.mxu0
  %v5351 = vadd.f32 %v5338, %v5350
  %v5352 = vpop.f32.mrf.mxu0
  %5353 = vdwg.mxu0
  %5354 = vmatpush.bf16.msra.mxu0 %v4366
  %5355 = vmatpush.bf16.msra.mxu0 %v4361
  %5356 = vmatpush.bf16.msra.mxu0 %v4356
  %5357 = vmatpush.bf16.msra.mxu0 %v4351
  %5358 = vmatpush.bf16.msra.mxu0 %v4346
  %5359 = vmatpush.bf16.msra.mxu0 %v4341
  %5360 = vmatpush.bf16.msra.mxu0 %v4336
  %5361 = vmatpush.bf16.msra.mxu0 %v4331
  %5362 = vmatmul.bf16.gmra.mxu0 %v1719
  %v5363 = vpop.f32.mrf.mxu0
  %v5364 = vadd.f32 %v5351, %v5363
  %v5365 = vpop.f32.mrf.mxu0
  %5366 = vdwg.mxu0
  %5367 = vmatpush.bf16.msra.mxu0 0
  %5368 = vmatpush.bf16.msra.mxu0 0
  %5369 = vmatpush.bf16.msra.mxu0 0
  %5370 = vmatpush.bf16.msra.mxu0 0
  %5371 = vmatpush.bf16.msra.mxu0 0
  %5372 = vmatpush.bf16.msra.mxu0 0
  %5373 = vmatpush.bf16.msra.mxu0 %v4376
  %5374 = vmatpush.bf16.msra.mxu0 %v4371
  %5375 = vmatmul.bf16.gmra.mxu0 %v4871
  %v5376 = vpop.f32.mrf.mxu0
  %v5377 = vadd.f32 %v5364, %v5376
  %v5378 = vpop.f32.mrf.mxu0
  %5379 = vdwg.mxu0
  %5380 = vmatpush.bf16.msra.mxu0 %v3927
  %5381 = vmatpush.bf16.msra.mxu0 %v3922
  %5382 = vmatpush.bf16.msra.mxu0 %v3917
  %5383 = vmatpush.bf16.msra.mxu0 %v3912
  %5384 = vmatpush.bf16.msra.mxu0 %v3907
  %5385 = vmatpush.bf16.msra.mxu0 %v3902
  %5386 = vmatpush.bf16.msra.mxu0 %v3897
  %5387 = vmatpush.bf16.msra.mxu0 %v3892
  %5388 = vmatmul.bf16.gmra.mxu0 %v1708
  %v5389 = vpop.f32.mrf.mxu0
  %v5390 = vadd.f32 %v2314, %v5389
  %v5391 = vpop.f32.mrf.mxu0
  %5392 = vdwg.mxu0
  %5393 = vmatpush.bf16.msra.mxu0 %v3967
  %5394 = vmatpush.bf16.msra.mxu0 %v3962
  %5395 = vmatpush.bf16.msra.mxu0 %v3957
  %5396 = vmatpush.bf16.msra.mxu0 %v3952
  %5397 = vmatpush.bf16.msra.mxu0 %v3947
  %5398 = vmatpush.bf16.msra.mxu0 %v3942
  %5399 = vmatpush.bf16.msra.mxu0 %v3937
  %5400 = vmatpush.bf16.msra.mxu0 %v3932
  %5401 = vmatmul.bf16.gmra.mxu0 %v1709
  %v5402 = vpop.f32.mrf.mxu0
  %v5403 = vadd.f32 %v5390, %v5402
  %v5404 = vpop.f32.mrf.mxu0
  %5405 = vdwg.mxu0
  %5406 = vmatpush.bf16.msra.mxu0 %v4007
  %5407 = vmatpush.bf16.msra.mxu0 %v4002
  %5408 = vmatpush.bf16.msra.mxu0 %v3997
  %5409 = vmatpush.bf16.msra.mxu0 %v3992
  %5410 = vmatpush.bf16.msra.mxu0 %v3987
  %5411 = vmatpush.bf16.msra.mxu0 %v3982
  %5412 = vmatpush.bf16.msra.mxu0 %v3977
  %5413 = vmatpush.bf16.msra.mxu0 %v3972
  %5414 = vmatmul.bf16.gmra.mxu0 %v1710
  %v5415 = vpop.f32.mrf.mxu0
  %v5416 = vadd.f32 %v5403, %v5415
  %v5417 = vpop.f32.mrf.mxu0
  %5418 = vdwg.mxu0
  %5419 = vmatpush.bf16.msra.mxu0 %v4047
  %5420 = vmatpush.bf16.msra.mxu0 %v4042
  %5421 = vmatpush.bf16.msra.mxu0 %v4037
  %5422 = vmatpush.bf16.msra.mxu0 %v4032
  %5423 = vmatpush.bf16.msra.mxu0 %v4027
  %5424 = vmatpush.bf16.msra.mxu0 %v4022
  %5425 = vmatpush.bf16.msra.mxu0 %v4017
  %5426 = vmatpush.bf16.msra.mxu0 %v4012
  %5427 = vmatmul.bf16.gmra.mxu0 %v1711
  %v5428 = vpop.f32.mrf.mxu0
  %v5429 = vadd.f32 %v5416, %v5428
  %v5430 = vpop.f32.mrf.mxu0
  %5431 = vdwg.mxu0
  %5432 = vmatpush.bf16.msra.mxu0 %v4087
  %5433 = vmatpush.bf16.msra.mxu0 %v4082
  %5434 = vmatpush.bf16.msra.mxu0 %v4077
  %5435 = vmatpush.bf16.msra.mxu0 %v4072
  %5436 = vmatpush.bf16.msra.mxu0 %v4067
  %5437 = vmatpush.bf16.msra.mxu0 %v4062
  %5438 = vmatpush.bf16.msra.mxu0 %v4057
  %5439 = vmatpush.bf16.msra.mxu0 %v4052
  %5440 = vmatmul.bf16.gmra.mxu0 %v1712
  %v5441 = vpop.f32.mrf.mxu0
  %v5442 = vadd.f32 %v5429, %v5441
  %v5443 = vpop.f32.mrf.mxu0
  %5444 = vdwg.mxu0
  %5445 = vmatpush.bf16.msra.mxu0 %v4127
  %5446 = vmatpush.bf16.msra.mxu0 %v4122
  %5447 = vmatpush.bf16.msra.mxu0 %v4117
  %5448 = vmatpush.bf16.msra.mxu0 %v4112
  %5449 = vmatpush.bf16.msra.mxu0 %v4107
  %5450 = vmatpush.bf16.msra.mxu0 %v4102
  %5451 = vmatpush.bf16.msra.mxu0 %v4097
  %5452 = vmatpush.bf16.msra.mxu0 %v4092
  %5453 = vmatmul.bf16.gmra.mxu0 %v1713
  %v5454 = vpop.f32.mrf.mxu0
  %v5455 = vadd.f32 %v5442, %v5454
  %v5456 = vpop.f32.mrf.mxu0
  %5457 = vdwg.mxu0
  %5458 = vmatpush.bf16.msra.mxu0 %v4167
  %5459 = vmatpush.bf16.msra.mxu0 %v4162
  %5460 = vmatpush.bf16.msra.mxu0 %v4157
  %5461 = vmatpush.bf16.msra.mxu0 %v4152
  %5462 = vmatpush.bf16.msra.mxu0 %v4147
  %5463 = vmatpush.bf16.msra.mxu0 %v4142
  %5464 = vmatpush.bf16.msra.mxu0 %v4137
  %5465 = vmatpush.bf16.msra.mxu0 %v4132
  %5466 = vmatmul.bf16.gmra.mxu0 %v1714
  %v5467 = vpop.f32.mrf.mxu0
  %v5468 = vadd.f32 %v5455, %v5467
  %v5469 = vpop.f32.mrf.mxu0
  %5470 = vdwg.mxu0
  %5471 = vmatpush.bf16.msra.mxu0 %v4207
  %5472 = vmatpush.bf16.msra.mxu0 %v4202
  %5473 = vmatpush.bf16.msra.mxu0 %v4197
  %5474 = vmatpush.bf16.msra.mxu0 %v4192
  %5475 = vmatpush.bf16.msra.mxu0 %v4187
  %5476 = vmatpush.bf16.msra.mxu0 %v4182
  %5477 = vmatpush.bf16.msra.mxu0 %v4177
  %5478 = vmatpush.bf16.msra.mxu0 %v4172
  %5479 = vmatmul.bf16.gmra.mxu0 %v1715
  %v5480 = vpop.f32.mrf.mxu0
  %v5481 = vadd.f32 %v5468, %v5480
  %v5482 = vpop.f32.mrf.mxu0
  %5483 = vdwg.mxu0
  %5484 = vmatpush.bf16.msra.mxu0 %v4247
  %5485 = vmatpush.bf16.msra.mxu0 %v4242
  %5486 = vmatpush.bf16.msra.mxu0 %v4237
  %5487 = vmatpush.bf16.msra.mxu0 %v4232
  %5488 = vmatpush.bf16.msra.mxu0 %v4227
  %5489 = vmatpush.bf16.msra.mxu0 %v4222
  %5490 = vmatpush.bf16.msra.mxu0 %v4217
  %5491 = vmatpush.bf16.msra.mxu0 %v4212
  %5492 = vmatmul.bf16.gmra.mxu0 %v1716
  %v5493 = vpop.f32.mrf.mxu0
  %v5494 = vadd.f32 %v5481, %v5493
  %v5495 = vpop.f32.mrf.mxu0
  %5496 = vdwg.mxu0
  %5497 = vmatpush.bf16.msra.mxu0 %v4287
  %5498 = vmatpush.bf16.msra.mxu0 %v4282
  %5499 = vmatpush.bf16.msra.mxu0 %v4277
  %5500 = vmatpush.bf16.msra.mxu0 %v4272
  %5501 = vmatpush.bf16.msra.mxu0 %v4267
  %5502 = vmatpush.bf16.msra.mxu0 %v4262
  %5503 = vmatpush.bf16.msra.mxu0 %v4257
  %5504 = vmatpush.bf16.msra.mxu0 %v4252
  %5505 = vmatmul.bf16.gmra.mxu0 %v1717
  %v5506 = vpop.f32.mrf.mxu0
  %v5507 = vadd.f32 %v5494, %v5506
  %v5508 = vpop.f32.mrf.mxu0
  %5509 = vdwg.mxu0
  %5510 = vmatpush.bf16.msra.mxu0 %v4327
  %5511 = vmatpush.bf16.msra.mxu0 %v4322
  %5512 = vmatpush.bf16.msra.mxu0 %v4317
  %5513 = vmatpush.bf16.msra.mxu0 %v4312
  %5514 = vmatpush.bf16.msra.mxu0 %v4307
  %5515 = vmatpush.bf16.msra.mxu0 %v4302
  %5516 = vmatpush.bf16.msra.mxu0 %v4297
  %5517 = vmatpush.bf16.msra.mxu0 %v4292
  %5518 = vmatmul.bf16.gmra.mxu0 %v1718
  %v5519 = vpop.f32.mrf.mxu0
  %v5520 = vadd.f32 %v5507, %v5519
  %v5521 = vpop.f32.mrf.mxu0
  %5522 = vdwg.mxu0
  %5523 = vmatpush.bf16.msra.mxu0 %v4367
  %5524 = vmatpush.bf16.msra.mxu0 %v4362
  %5525 = vmatpush.bf16.msra.mxu0 %v4357
  %5526 = vmatpush.bf16.msra.mxu0 %v4352
  %5527 = vmatpush.bf16.msra.mxu0 %v4347
  %5528 = vmatpush.bf16.msra.mxu0 %v4342
  %5529 = vmatpush.bf16.msra.mxu0 %v4337
  %5530 = vmatpush.bf16.msra.mxu0 %v4332
  %5531 = vmatmul.bf16.gmra.mxu0 %v1719
  %v5532 = vpop.f32.mrf.mxu0
  %v5533 = vadd.f32 %v5520, %v5532
  %v5534 = vpop.f32.mrf.mxu0
  %5535 = vdwg.mxu0
  %5536 = vmatpush.bf16.msra.mxu0 0
  %5537 = vmatpush.bf16.msra.mxu0 0
  %5538 = vmatpush.bf16.msra.mxu0 0
  %5539 = vmatpush.bf16.msra.mxu0 0
  %5540 = vmatpush.bf16.msra.mxu0 0
  %5541 = vmatpush.bf16.msra.mxu0 0
  %5542 = vmatpush.bf16.msra.mxu0 %v4377
  %5543 = vmatpush.bf16.msra.mxu0 %v4372
  %5544 = vmatmul.bf16.gmra.mxu0 %v4871
  %v5545 = vpop.f32.mrf.mxu0
  %v5546 = vadd.f32 %v5533, %v5545
  %v5547 = vpop.f32.mrf.mxu0
  %5548 = vdwg.mxu0
  %5549 = vmatpush.bf16.msra.mxu0 %v3928
  %5550 = vmatpush.bf16.msra.mxu0 %v3923
  %5551 = vmatpush.bf16.msra.mxu0 %v3918
  %5552 = vmatpush.bf16.msra.mxu0 %v3913
  %5553 = vmatpush.bf16.msra.mxu0 %v3908
  %5554 = vmatpush.bf16.msra.mxu0 %v3903
  %5555 = vmatpush.bf16.msra.mxu0 %v3898
  %5556 = vmatpush.bf16.msra.mxu0 %v3893
  %5557 = vmatmul.bf16.gmra.mxu0 %v1708
  %v5558 = vpop.f32.mrf.mxu0
  %v5559 = vadd.f32 %v2315, %v5558
  %v5560 = vpop.f32.mrf.mxu0
  %5561 = vdwg.mxu0
  %5562 = vmatpush.bf16.msra.mxu0 %v3968
  %5563 = vmatpush.bf16.msra.mxu0 %v3963
  %5564 = vmatpush.bf16.msra.mxu0 %v3958
  %5565 = vmatpush.bf16.msra.mxu0 %v3953
  %5566 = vmatpush.bf16.msra.mxu0 %v3948
  %5567 = vmatpush.bf16.msra.mxu0 %v3943
  %5568 = vmatpush.bf16.msra.mxu0 %v3938
  %5569 = vmatpush.bf16.msra.mxu0 %v3933
  %5570 = vmatmul.bf16.gmra.mxu0 %v1709
  %v5571 = vpop.f32.mrf.mxu0
  %v5572 = vadd.f32 %v5559, %v5571
  %v5573 = vpop.f32.mrf.mxu0
  %5574 = vdwg.mxu0
  %5575 = vmatpush.bf16.msra.mxu0 %v4008
  %5576 = vmatpush.bf16.msra.mxu0 %v4003
  %5577 = vmatpush.bf16.msra.mxu0 %v3998
  %5578 = vmatpush.bf16.msra.mxu0 %v3993
  %5579 = vmatpush.bf16.msra.mxu0 %v3988
  %5580 = vmatpush.bf16.msra.mxu0 %v3983
  %5581 = vmatpush.bf16.msra.mxu0 %v3978
  %5582 = vmatpush.bf16.msra.mxu0 %v3973
  %5583 = vmatmul.bf16.gmra.mxu0 %v1710
  %v5584 = vpop.f32.mrf.mxu0
  %v5585 = vadd.f32 %v5572, %v5584
  %v5586 = vpop.f32.mrf.mxu0
  %5587 = vdwg.mxu0
  %5588 = vmatpush.bf16.msra.mxu0 %v4048
  %5589 = vmatpush.bf16.msra.mxu0 %v4043
  %5590 = vmatpush.bf16.msra.mxu0 %v4038
  %5591 = vmatpush.bf16.msra.mxu0 %v4033
  %5592 = vmatpush.bf16.msra.mxu0 %v4028
  %5593 = vmatpush.bf16.msra.mxu0 %v4023
  %5594 = vmatpush.bf16.msra.mxu0 %v4018
  %5595 = vmatpush.bf16.msra.mxu0 %v4013
  %5596 = vmatmul.bf16.gmra.mxu0 %v1711
  %v5597 = vpop.f32.mrf.mxu0
  %v5598 = vadd.f32 %v5585, %v5597
  %v5599 = vpop.f32.mrf.mxu0
  %5600 = vdwg.mxu0
  %5601 = vmatpush.bf16.msra.mxu0 %v4088
  %5602 = vmatpush.bf16.msra.mxu0 %v4083
  %5603 = vmatpush.bf16.msra.mxu0 %v4078
  %5604 = vmatpush.bf16.msra.mxu0 %v4073
  %5605 = vmatpush.bf16.msra.mxu0 %v4068
  %5606 = vmatpush.bf16.msra.mxu0 %v4063
  %5607 = vmatpush.bf16.msra.mxu0 %v4058
  %5608 = vmatpush.bf16.msra.mxu0 %v4053
  %5609 = vmatmul.bf16.gmra.mxu0 %v1712
  %v5610 = vpop.f32.mrf.mxu0
  %v5611 = vadd.f32 %v5598, %v5610
  %v5612 = vpop.f32.mrf.mxu0
  %5613 = vdwg.mxu0
  %5614 = vmatpush.bf16.msra.mxu0 %v4128
  %5615 = vmatpush.bf16.msra.mxu0 %v4123
  %5616 = vmatpush.bf16.msra.mxu0 %v4118
  %5617 = vmatpush.bf16.msra.mxu0 %v4113
  %5618 = vmatpush.bf16.msra.mxu0 %v4108
  %5619 = vmatpush.bf16.msra.mxu0 %v4103
  %5620 = vmatpush.bf16.msra.mxu0 %v4098
  %5621 = vmatpush.bf16.msra.mxu0 %v4093
  %5622 = vmatmul.bf16.gmra.mxu0 %v1713
  %v5623 = vpop.f32.mrf.mxu0
  %v5624 = vadd.f32 %v5611, %v5623
  %v5625 = vpop.f32.mrf.mxu0
  %5626 = vdwg.mxu0
  %5627 = vmatpush.bf16.msra.mxu0 %v4168
  %5628 = vmatpush.bf16.msra.mxu0 %v4163
  %5629 = vmatpush.bf16.msra.mxu0 %v4158
  %5630 = vmatpush.bf16.msra.mxu0 %v4153
  %5631 = vmatpush.bf16.msra.mxu0 %v4148
  %5632 = vmatpush.bf16.msra.mxu0 %v4143
  %5633 = vmatpush.bf16.msra.mxu0 %v4138
  %5634 = vmatpush.bf16.msra.mxu0 %v4133
  %5635 = vmatmul.bf16.gmra.mxu0 %v1714
  %v5636 = vpop.f32.mrf.mxu0
  %v5637 = vadd.f32 %v5624, %v5636
  %v5638 = vpop.f32.mrf.mxu0
  %5639 = vdwg.mxu0
  %5640 = vmatpush.bf16.msra.mxu0 %v4208
  %5641 = vmatpush.bf16.msra.mxu0 %v4203
  %5642 = vmatpush.bf16.msra.mxu0 %v4198
  %5643 = vmatpush.bf16.msra.mxu0 %v4193
  %5644 = vmatpush.bf16.msra.mxu0 %v4188
  %5645 = vmatpush.bf16.msra.mxu0 %v4183
  %5646 = vmatpush.bf16.msra.mxu0 %v4178
  %5647 = vmatpush.bf16.msra.mxu0 %v4173
  %5648 = vmatmul.bf16.gmra.mxu0 %v1715
  %v5649 = vpop.f32.mrf.mxu0
  %v5650 = vadd.f32 %v5637, %v5649
  %v5651 = vpop.f32.mrf.mxu0
  %5652 = vdwg.mxu0
  %5653 = vmatpush.bf16.msra.mxu0 %v4248
  %5654 = vmatpush.bf16.msra.mxu0 %v4243
  %5655 = vmatpush.bf16.msra.mxu0 %v4238
  %5656 = vmatpush.bf16.msra.mxu0 %v4233
  %5657 = vmatpush.bf16.msra.mxu0 %v4228
  %5658 = vmatpush.bf16.msra.mxu0 %v4223
  %5659 = vmatpush.bf16.msra.mxu0 %v4218
  %5660 = vmatpush.bf16.msra.mxu0 %v4213
  %5661 = vmatmul.bf16.gmra.mxu0 %v1716
  %v5662 = vpop.f32.mrf.mxu0
  %v5663 = vadd.f32 %v5650, %v5662
  %v5664 = vpop.f32.mrf.mxu0
  %5665 = vdwg.mxu0
  %5666 = vmatpush.bf16.msra.mxu0 %v4288
  %5667 = vmatpush.bf16.msra.mxu0 %v4283
  %5668 = vmatpush.bf16.msra.mxu0 %v4278
  %5669 = vmatpush.bf16.msra.mxu0 %v4273
  %5670 = vmatpush.bf16.msra.mxu0 %v4268
  %5671 = vmatpush.bf16.msra.mxu0 %v4263
  %5672 = vmatpush.bf16.msra.mxu0 %v4258
  %5673 = vmatpush.bf16.msra.mxu0 %v4253
  %5674 = vmatmul.bf16.gmra.mxu0 %v1717
  %v5675 = vpop.f32.mrf.mxu0
  %v5676 = vadd.f32 %v5663, %v5675
  %v5677 = vpop.f32.mrf.mxu0
  %5678 = vdwg.mxu0
  %5679 = vmatpush.bf16.msra.mxu0 %v4328
  %5680 = vmatpush.bf16.msra.mxu0 %v4323
  %5681 = vmatpush.bf16.msra.mxu0 %v4318
  %5682 = vmatpush.bf16.msra.mxu0 %v4313
  %5683 = vmatpush.bf16.msra.mxu0 %v4308
  %5684 = vmatpush.bf16.msra.mxu0 %v4303
  %5685 = vmatpush.bf16.msra.mxu0 %v4298
  %5686 = vmatpush.bf16.msra.mxu0 %v4293
  %5687 = vmatmul.bf16.gmra.mxu0 %v1718
  %v5688 = vpop.f32.mrf.mxu0
  %v5689 = vadd.f32 %v5676, %v5688
  %v5690 = vpop.f32.mrf.mxu0
  %5691 = vdwg.mxu0
  %5692 = vmatpush.bf16.msra.mxu0 %v4368
  %5693 = vmatpush.bf16.msra.mxu0 %v4363
  %5694 = vmatpush.bf16.msra.mxu0 %v4358
  %5695 = vmatpush.bf16.msra.mxu0 %v4353
  %5696 = vmatpush.bf16.msra.mxu0 %v4348
  %5697 = vmatpush.bf16.msra.mxu0 %v4343
  %5698 = vmatpush.bf16.msra.mxu0 %v4338
  %5699 = vmatpush.bf16.msra.mxu0 %v4333
  %5700 = vmatmul.bf16.gmra.mxu0 %v1719
  %v5701 = vpop.f32.mrf.mxu0
  %v5702 = vadd.f32 %v5689, %v5701
  %v5703 = vpop.f32.mrf.mxu0
  %5704 = vdwg.mxu0
  %5705 = vmatpush.bf16.msra.mxu0 0
  %5706 = vmatpush.bf16.msra.mxu0 0
  %5707 = vmatpush.bf16.msra.mxu0 0
  %5708 = vmatpush.bf16.msra.mxu0 0
  %5709 = vmatpush.bf16.msra.mxu0 0
  %5710 = vmatpush.bf16.msra.mxu0 0
  %5711 = vmatpush.bf16.msra.mxu0 %v4378
  %5712 = vmatpush.bf16.msra.mxu0 %v4373
  %5713 = vmatmul.bf16.gmra.mxu0 %v4871
  %v5714 = vpop.f32.mrf.mxu0
  %v5715 = vadd.f32 %v5702, %v5714
  %v5716 = vpop.f32.mrf.mxu0
  %5717 = vdwg.mxu0
  %v5718 = vmax.f32 %v5039, 0.0
  %v5719 = vmax.f32 %v5208, 0.0
  %v5720 = vmax.f32 %v5377, 0.0
  %v5721 = vmax.f32 %v5546, 0.0
  %v5722 = vmax.f32 %v5715, 0.0
  %v5723 = vpack.c.bf16 %v5718, %v5718
  %v5724 = vpack.c.bf16 %v5719, %v5719
  %v5725 = vpack.c.bf16 %v5720, %v5720
  %v5726 = vpack.c.bf16 %v5721, %v5721
  %v5727 = vpack.c.bf16 %v5722, %v5722
  %v5728 = vld [vmem:[%s5] sm:$0xf]
  %v5729 = vld [vmem:[%s5 + $0x4] sm:$0xf]
  %v5730 = vld [vmem:[%s5 + $0x8] sm:$0xf]
  %v5731 = vld [vmem:[%s5 + $0xc] sm:$0xf]
  %v5732 = vld [vmem:[%s5 + $0x10] sm:$0xf]
  %v5733 = vld [vmem:[%s5 + $0x14] sm:$0xf]
  %v5734 = vld [vmem:[%s5 + $0x18] sm:$0xf]
  %v5735 = vld [vmem:[%s5 + $0x1c] sm:$0xf]
  %v5736 = vld [vmem:[%s5 + $0x20] sm:$0xf]
  %v5737 = vld [vmem:[%s5 + $0x24] sm:$0xf]
  %v5738 = vld [vmem:[%s5 + $0x28] sm:$0xf]
  %v5739 = vld [vmem:[%s5 + $0x2c] sm:$0xf]
  %v5740 = vld [vmem:[%s5 + $0x30] sm:$0xf]
  %v5741 = vld [vmem:[%s5 + $0x34] sm:$0xf]
  %v5742 = vld [vmem:[%s5 + $0x38] sm:$0xf]
  %v5743 = vld [vmem:[%s5 + $0x3c] sm:$0xf]
  %v5744 = vld [vmem:[%s5 + $0x40] sm:$0xf]
  %v5745 = vld [vmem:[%s5 + $0x44] sm:$0xf]
  %v5746 = vld [vmem:[%s5 + $0x48] sm:$0xf]
  %v5747 = vld [vmem:[%s5 + $0x4c] sm:$0xf]
  %v5748 = vld [vmem:[%s5 + $0x50] sm:$0xf]
  %v5749 = vld [vmem:[%s5 + $0x54] sm:$0xf]
  %v5750 = vld [vmem:[%s5 + $0x58] sm:$0xf]
  %v5751 = vld [vmem:[%s5 + $0x5c] sm:$0xf]
  %v5752 = vld [vmem:[%s5 + $0x60] sm:$0xf]
  %v5753 = vld [vmem:[%s5 + $0x64] sm:$0xf]
  %v5754 = vld [vmem:[%s5 + $0x68] sm:$0xf]
  %v5755 = vld [vmem:[%s5 + $0x6c] sm:$0xf]
  %v5756 = vld [vmem:[%s5 + $0x70] sm:$0xf]
  %v5757 = vld [vmem:[%s5 + $0x74] sm:$0xf]
  %v5758 = vld [vmem:[%s5 + $0x78] sm:$0xf]
  %v5759 = vld [vmem:[%s5 + $0x7c] sm:$0xf]
  %v5760 = vld [vmem:[%s5 + $0x80] sm:$0xf]
  %v5761 = vld [vmem:[%s5 + $0x84] sm:$0xf]
  %v5762 = vld [vmem:[%s5 + $0x88] sm:$0xf]
  %v5763 = vld [vmem:[%s5 + $0x8c] sm:$0xf]
  %v5764 = vld [vmem:[%s5 + $0x90] sm:$0xf]
  %v5765 = vld [vmem:[%s5 + $0x94] sm:$0xf]
  %v5766 = vld [vmem:[%s5 + $0x98] sm:$0xf]
  %v5767 = vld [vmem:[%s5 + $0x9c] sm:$0xf]
  %v5768 = vld [vmem:[%s5 + $0xa0] sm:$0xf]
  %v5769 = vld [vmem:[%s5 + $0xa4] sm:$0xf]
  %v5770 = vld [vmem:[%s5 + $0xa8] sm:$0xf]
  %v5771 = vld [vmem:[%s5 + $0xac] sm:$0xf]
  %v5772 = vld [vmem:[%s5 + $0xb0] sm:$0xf]
  %v5773 = vld [vmem:[%s5 + $0xb4] sm:$0xf]
  %v5774 = vld [vmem:[%s5 + $0xb8] sm:$0xf]
  %v5775 = vld [vmem:[%s5 + $0xbc] sm:$0xf]
  %v5776 = vld [vmem:[%s5 + $0xc0] sm:$0xf]
  %v5777 = vld [vmem:[%s5 + $0xc4] sm:$0xf]
  %v5778 = vld [vmem:[%s5 + $0xc8] sm:$0xf]
  %v5779 = vld [vmem:[%s5 + $0xcc] sm:$0xf]
  %v5780 = vld [vmem:[%s5 + $0xd0] sm:$0xf]
  %v5781 = vld [vmem:[%s5 + $0xd4] sm:$0xf]
  %v5782 = vld [vmem:[%s5 + $0xd8] sm:$0xf]
  %v5783 = vld [vmem:[%s5 + $0xdc] sm:$0xf]
  %v5784 = vld [vmem:[%s5 + $0xe0] sm:$0xf]
  %v5785 = vld [vmem:[%s5 + $0xe4] sm:$0xf]
  %v5786 = vld [vmem:[%s5 + $0xe8] sm:$0xf]
  %v5787 = vld [vmem:[%s5 + $0xec] sm:$0xf]
  %v5788 = vld [vmem:[%s5 + $0xf0] sm:$0xf]
  %v5789 = vld [vmem:[%s5 + $0xf4] sm:$0xf]
  %v5790 = vld [vmem:[%s5 + $0xf8] sm:$0xf]
  %v5791 = vld [vmem:[%s5 + $0xfc] sm:$0xf]
  %v5792 = vld [vmem:[%s5 + $0x100] sm:$0xf]
  %v5793 = vld [vmem:[%s5 + $0x104] sm:$0xf]
  %v5794 = vld [vmem:[%s5 + $0x108] sm:$0xf]
  %v5795 = vld [vmem:[%s5 + $0x10c] sm:$0xf]
  %v5796 = vld [vmem:[%s5 + $0x110] sm:$0xf]
  %v5797 = vld [vmem:[%s5 + $0x114] sm:$0xf]
  %v5798 = vld [vmem:[%s5 + $0x118] sm:$0xf]
  %v5799 = vld [vmem:[%s5 + $0x11c] sm:$0xf]
  %v5800 = vld [vmem:[%s6] sm:$0x1]
  %v5802 = vperm.slane %v5800, 0
  %v5876 = vunpack.c.l.b16 %v5728
  %v5877 = vunpack.c.l.b16 %v5729
  %v5878 = vunpack.c.l.b16 %v5730
  %v5879 = vunpack.c.l.b16 %v5731
  %v5880 = vunpack.c.l.b16 %v5732
  %v5881 = vunpack.c.l.b16 %v5733
  %v5882 = vunpack.c.l.b16 %v5734
  %v5883 = vunpack.c.l.b16 %v5735
  %v5884 = vunpack.c.l.b16 %v5736
  %v5885 = vunpack.c.l.b16 %v5737
  %v5886 = vunpack.c.l.b16 %v5738
  %v5887 = vunpack.c.l.b16 %v5739
  %v5888 = vunpack.c.l.b16 %v5740
  %v5889 = vunpack.c.l.b16 %v5741
  %v5890 = vunpack.c.l.b16 %v5742
  %v5891 = vunpack.c.l.b16 %v5743
  %v5892 = vunpack.c.l.b16 %v5744
  %v5893 = vunpack.c.l.b16 %v5745
  %v5894 = vunpack.c.l.b16 %v5746
  %v5895 = vunpack.c.l.b16 %v5747
  %v5896 = vunpack.c.l.b16 %v5748
  %v5897 = vunpack.c.l.b16 %v5749
  %v5898 = vunpack.c.l.b16 %v5750
  %v5899 = vunpack.c.l.b16 %v5751
  %v5900 = vunpack.c.l.b16 %v5752
  %v5901 = vunpack.c.l.b16 %v5753
  %v5902 = vunpack.c.l.b16 %v5754
  %v5903 = vunpack.c.l.b16 %v5755
  %v5904 = vunpack.c.l.b16 %v5756
  %v5905 = vunpack.c.l.b16 %v5757
  %v5906 = vunpack.c.l.b16 %v5758
  %v5907 = vunpack.c.l.b16 %v5759
  %v5908 = vunpack.c.l.b16 %v5760
  %v5909 = vunpack.c.l.b16 %v5761
  %v5910 = vunpack.c.l.b16 %v5762
  %v5911 = vunpack.c.l.b16 %v5763
  %v5912 = vunpack.c.l.b16 %v5764
  %v5913 = vunpack.c.l.b16 %v5765
  %v5914 = vunpack.c.l.b16 %v5766
  %v5915 = vunpack.c.l.b16 %v5767
  %v5916 = vunpack.c.l.b16 %v5768
  %v5917 = vunpack.c.l.b16 %v5769
  %v5918 = vunpack.c.l.b16 %v5770
  %v5919 = vunpack.c.l.b16 %v5771
  %v5920 = vunpack.c.l.b16 %v5772
  %v5921 = vunpack.c.l.b16 %v5773
  %v5922 = vunpack.c.l.b16 %v5774
  %v5923 = vunpack.c.l.b16 %v5775
  %v5924 = vunpack.c.l.b16 %v5776
  %v5925 = vunpack.c.l.b16 %v5777
  %v5926 = vunpack.c.l.b16 %v5778
  %v5927 = vunpack.c.l.b16 %v5779
  %v5928 = vunpack.c.l.b16 %v5780
  %v5929 = vunpack.c.l.b16 %v5781
  %v5930 = vunpack.c.l.b16 %v5782
  %v5931 = vunpack.c.l.b16 %v5783
  %v5932 = vunpack.c.l.b16 %v5784
  %v5933 = vunpack.c.l.b16 %v5785
  %v5934 = vunpack.c.l.b16 %v5786
  %v5935 = vunpack.c.l.b16 %v5787
  %v5936 = vunpack.c.l.b16 %v5788
  %v5937 = vunpack.c.l.b16 %v5789
  %v5938 = vunpack.c.l.b16 %v5790
  %v5939 = vunpack.c.l.b16 %v5791
  %v5940 = vunpack.c.l.b16 %v5792
  %v5941 = vunpack.c.l.b16 %v5793
  %v5942 = vunpack.c.l.b16 %v5794
  %v5943 = vunpack.c.l.b16 %v5795
  %v5944 = vunpack.c.l.b16 %v5796
  %v5945 = vunpack.c.l.b16 %v5797
  %v5946 = vunpack.c.l.b16 %v5798
  %v5947 = vunpack.c.l.b16 %v5799
  %v5948 = vpack.c.b16 %v5877, %v5876
  %v5949 = vpack.c.b16 %v5879, %v5878
  %v5950 = vpack.c.b16 %v5881, %v5880
  %v5951 = vpack.c.b16 %v5883, %v5882
  %v5952 = vpack.c.b16 %v5885, %v5884
  %v5953 = vpack.c.b16 %v5887, %v5886
  %v5954 = vpack.c.b16 %v5889, %v5888
  %v5955 = vpack.c.b16 %v5891, %v5890
  %v5956 = vpack.c.b16 %v5893, %v5892
  %v5957 = vpack.c.b16 %v5895, %v5894
  %v5958 = vpack.c.b16 %v5897, %v5896
  %v5959 = vpack.c.b16 %v5899, %v5898
  %v5960 = vpack.c.b16 %v5901, %v5900
  %v5961 = vpack.c.b16 %v5903, %v5902
  %v5962 = vpack.c.b16 %v5905, %v5904
  %v5963 = vpack.c.b16 %v5907, %v5906
  %v5964 = vpack.c.b16 %v5909, %v5908
  %v5965 = vpack.c.b16 %v5911, %v5910
  %v5966 = vpack.c.b16 %v5913, %v5912
  %v5967 = vpack.c.b16 %v5915, %v5914
  %v5968 = vpack.c.b16 %v5917, %v5916
  %v5969 = vpack.c.b16 %v5919, %v5918
  %v5970 = vpack.c.b16 %v5921, %v5920
  %v5971 = vpack.c.b16 %v5923, %v5922
  %v5972 = vpack.c.b16 %v5925, %v5924
  %v5973 = vpack.c.b16 %v5927, %v5926
  %v5974 = vpack.c.b16 %v5929, %v5928
  %v5975 = vpack.c.b16 %v5931, %v5930
  %v5976 = vpack.c.b16 %v5933, %v5932
  %v5977 = vpack.c.b16 %v5935, %v5934
  %v5978 = vpack.c.b16 %v5937, %v5936
  %v5979 = vpack.c.b16 %v5939, %v5938
  %v5980 = vpack.c.b16 %v5941, %v5940
  %v5981 = vpack.c.b16 %v5943, %v5942
  %v5982 = vpack.c.b16 %v5945, %v5944
  %v5983 = vpack.c.b16 %v5947, %v5946
  %vm6020 = vcmask 523264
  %v6022 = vsel %vm6020, %v5727, 0
  %6024 = vmatpush.bf16.msra.mxu0 %v5955
  %6025 = vmatpush.bf16.msra.mxu0 %v5954
  %6026 = vmatpush.bf16.msra.mxu0 %v5953
  %6027 = vmatpush.bf16.msra.mxu0 %v5952
  %6028 = vmatpush.bf16.msra.mxu0 %v5951
  %6029 = vmatpush.bf16.msra.mxu0 %v5950
  %6030 = vmatpush.bf16.msra.mxu0 %v5949
  %6031 = vmatpush.bf16.msra.mxu0 %v5948
  %6032 = vmatmul.bf16.gmra.mxu0 %v5723
  %v6033 = vpop.f32.mrf.mxu0
  %v6034 = vadd.f32 %v5802, %v6033
  %v6035 = vpop.f32.mrf.mxu0
  %6036 = vdwg.mxu0
  %6037 = vmatpush.bf16.msra.mxu0 %v5963
  %6038 = vmatpush.bf16.msra.mxu0 %v5962
  %6039 = vmatpush.bf16.msra.mxu0 %v5961
  %6040 = vmatpush.bf16.msra.mxu0 %v5960
  %6041 = vmatpush.bf16.msra.mxu0 %v5959
  %6042 = vmatpush.bf16.msra.mxu0 %v5958
  %6043 = vmatpush.bf16.msra.mxu0 %v5957
  %6044 = vmatpush.bf16.msra.mxu0 %v5956
  %6045 = vmatmul.bf16.gmra.mxu0 %v5724
  %v6046 = vpop.f32.mrf.mxu0
  %v6047 = vadd.f32 %v6034, %v6046
  %v6048 = vpop.f32.mrf.mxu0
  %6049 = vdwg.mxu0
  %6050 = vmatpush.bf16.msra.mxu0 %v5971
  %6051 = vmatpush.bf16.msra.mxu0 %v5970
  %6052 = vmatpush.bf16.msra.mxu0 %v5969
  %6053 = vmatpush.bf16.msra.mxu0 %v5968
  %6054 = vmatpush.bf16.msra.mxu0 %v5967
  %6055 = vmatpush.bf16.msra.mxu0 %v5966
  %6056 = vmatpush.bf16.msra.mxu0 %v5965
  %6057 = vmatpush.bf16.msra.mxu0 %v5964
  %6058 = vmatmul.bf16.gmra.mxu0 %v5725
  %v6059 = vpop.f32.mrf.mxu0
  %v6060 = vadd.f32 %v6047, %v6059
  %v6061 = vpop.f32.mrf.mxu0
  %6062 = vdwg.mxu0
  %6063 = vmatpush.bf16.msra.mxu0 %v5979
  %6064 = vmatpush.bf16.msra.mxu0 %v5978
  %6065 = vmatpush.bf16.msra.mxu0 %v5977
  %6066 = vmatpush.bf16.msra.mxu0 %v5976
  %6067 = vmatpush.bf16.msra.mxu0 %v5975
  %6068 = vmatpush.bf16.msra.mxu0 %v5974
  %6069 = vmatpush.bf16.msra.mxu0 %v5973
  %6070 = vmatpush.bf16.msra.mxu0 %v5972
  %6071 = vmatmul.bf16.gmra.mxu0 %v5726
  %v6072 = vpop.f32.mrf.mxu0
  %v6073 = vadd.f32 %v6060, %v6072
  %v6074 = vpop.f32.mrf.mxu0
  %6075 = vdwg.mxu0
  %6076 = vmatpush.bf16.msra.mxu0 0
  %6077 = vmatpush.bf16.msra.mxu0 0
  %6078 = vmatpush.bf16.msra.mxu0 0
  %6079 = vmatpush.bf16.msra.mxu0 0
  %6080 = vmatpush.bf16.msra.mxu0 %v5983
  %6081 = vmatpush.bf16.msra.mxu0 %v5982
  %6082 = vmatpush.bf16.msra.mxu0 %v5981
  %6083 = vmatpush.bf16.msra.mxu0 %v5980
  %6084 = vmatmul.bf16.gmra.mxu0 %v6022
  %v6085 = vpop.f32.mrf.mxu0
  %v6086 = vadd.f32 %v6073, %v6085
  %v6087 = vpop.f32.mrf.mxu0
  %6088 = vdwg.mxu0
  %v6089 = vmax.f32 %v6086, 0.0
  %v6090 = vpack.c.bf16 %v6089, %v6089
  %v6091 = vld [vmem:[%s7] sm:$0xf]
  %v6092 = vld [vmem:[%s7 + $0x4] sm:$0xf]
  %v6093 = vld [vmem:[%s7 + $0x8] sm:$0xf]
  %v6094 = vld [vmem:[%s7 + $0xc] sm:$0xf]
  %v6095 = vld [vmem:[%s7 + $0x10] sm:$0xf]
  %v6096 = vld [vmem:[%s7 + $0x14] sm:$0xf]
  %v6097 = vld [vmem:[%s7 + $0x18] sm:$0xf]
  %v6098 = vld [vmem:[%s7 + $0x1c] sm:$0xf]
  %v6099 = vld [vmem:[%s7 + $0x20] sm:$0xf]
  %v6100 = vld [vmem:[%s7 + $0x24] sm:$0xf]
  %v6101 = vld [vmem:[%s7 + $0x28] sm:$0xf]
  %v6102 = vld [vmem:[%s7 + $0x2c] sm:$0xf]
  %v6103 = vld [vmem:[%s7 + $0x30] sm:$0xf]
  %v6104 = vld [vmem:[%s7 + $0x34] sm:$0xf]
  %v6105 = vld [vmem:[%s7 + $0x38] sm:$0xf]
  %v6106 = vld [vmem:[%s7 + $0x3c] sm:$0xf]
  %v6107 = vld [vmem:[%s8] sm:$0x1]
  %v6109 = vperm.slane %v6107, 0
  %v6127 = vunpack.c.l.b16 %v6091
  %v6128 = vunpack.c.l.b16 %v6092
  %v6129 = vunpack.c.l.b16 %v6093
  %v6130 = vunpack.c.l.b16 %v6094
  %v6131 = vunpack.c.l.b16 %v6095
  %v6132 = vunpack.c.l.b16 %v6096
  %v6133 = vunpack.c.l.b16 %v6097
  %v6134 = vunpack.c.l.b16 %v6098
  %v6135 = vunpack.c.l.b16 %v6099
  %v6136 = vunpack.c.l.b16 %v6100
  %v6137 = vunpack.c.l.b16 %v6101
  %v6138 = vunpack.c.l.b16 %v6102
  %v6139 = vunpack.c.l.b16 %v6103
  %v6140 = vunpack.c.l.b16 %v6104
  %v6141 = vunpack.c.l.b16 %v6105
  %v6142 = vunpack.c.l.b16 %v6106
  %v6143 = vpack.c.b16 %v6128, %v6127
  %v6144 = vpack.c.b16 %v6130, %v6129
  %v6145 = vpack.c.b16 %v6132, %v6131
  %v6146 = vpack.c.b16 %v6134, %v6133
  %v6147 = vpack.c.b16 %v6136, %v6135
  %v6148 = vpack.c.b16 %v6138, %v6137
  %v6149 = vpack.c.b16 %v6140, %v6139
  %v6150 = vpack.c.b16 %v6142, %v6141
  %6159 = vmatpush.bf16.msra.mxu0 %v6150
  %6160 = vmatpush.bf16.msra.mxu0 %v6149
  %6161 = vmatpush.bf16.msra.mxu0 %v6148
  %6162 = vmatpush.bf16.msra.mxu0 %v6147
  %6163 = vmatpush.bf16.msra.mxu0 %v6146
  %6164 = vmatpush.bf16.msra.mxu0 %v6145
  %6165 = vmatpush.bf16.msra.mxu0 %v6144
  %6166 = vmatpush.bf16.msra.mxu0 %v6143
  %6167 = vmatmul.bf16.gmra.mxu0 %v6090
  %v6168 = vpop.f32.mrf.mxu0
  %v6169 = vadd.f32 %v6109, %v6168
  %v6170 = vpop.f32.mrf.mxu0
  %6171 = vdwg.mxu0
  %v6172 = vtanh.pop %v6169
  %v6173 = vpack.c.bf16 %v6172, %v6172
  %v6174 = vld [vmem:[%s9] sm:$0xf]
  %v6175 = vld [vmem:[%s9 + $0x4] sm:$0xf]
  %v6176 = vld [vmem:[%s9 + $0x8] sm:$0xf]
  %v6177 = vld [vmem:[%s9 + $0xc] sm:$0xf]
  %v6178 = vld [vmem:[%s9 + $0x10] sm:$0xf]
  %v6179 = vld [vmem:[%s9 + $0x14] sm:$0xf]
  %v6180 = vld [vmem:[%s9 + $0x18] sm:$0xf]
  %v6181 = vld [vmem:[%s9 + $0x1c] sm:$0xf]
  %v6182 = vld [vmem:[%s10] sm:$0x1]
  %v6184 = vperm.slane %v6182, 0
  %v6194 = vunpack.c.l.b16 %v6174
  %v6195 = vunpack.c.l.b16 %v6175
  %v6196 = vunpack.c.l.b16 %v6176
  %v6197 = vunpack.c.l.b16 %v6177
  %v6198 = vunpack.c.l.b16 %v6178
  %v6199 = vunpack.c.l.b16 %v6179
  %v6200 = vunpack.c.l.b16 %v6180
  %v6201 = vunpack.c.l.b16 %v6181
  %v6202 = vpack.c.b16 %v6195, %v6194
  %v6203 = vpack.c.b16 %v6197, %v6196
  %v6204 = vpack.c.b16 %v6199, %v6198
  %v6205 = vpack.c.b16 %v6201, %v6200
  %v6211 = vsel %vm6020, %v6173, 0
  %6213 = vmatpush.bf16.msra.mxu0 0
  %6214 = vmatpush.bf16.msra.mxu0 0
  %6215 = vmatpush.bf16.msra.mxu0 0
  %6216 = vmatpush.bf16.msra.mxu0 0
  %6217 = vmatpush.bf16.msra.mxu0 %v6205
  %6218 = vmatpush.bf16.msra.mxu0 %v6204
  %6219 = vmatpush.bf16.msra.mxu0 %v6203
  %6220 = vmatpush.bf16.msra.mxu0 %v6202
  %6221 = vmatmul.bf16.gmra.mxu0 %v6211
  %v6222 = vpop.f32.mrf.mxu0
  %v6223 = vadd.f32 %v6184, %v6222
  %v6224 = vpop.f32.mrf.mxu0
  %6225 = vdwg.mxu0
  %6226 = vst [vmem:[%s11] sm:$0xff] %v6223
  // Predicated region
  $region46: #{cnn_model_forward.1} parent=0 // pred_check
    _
  $region47: #{cnn_model_forward.1} parent=0 // pred_check_branch
    %6228 = sbr.rel (0) target = $region49
  $region48: #{cnn_model_forward.1} parent=0 // pred_region
    _
  $region49: #{cnn_model_forward.1} parent=0 // pred_fallthru
    _
  // Predicated region
  $region50: #{cnn_model_forward.1} parent=0 // pred_check
    _
  $region51: #{cnn_model_forward.1} parent=0 // pred_check_branch
    %6230 = sbr.rel (0) target = $region53
  $region52: #{cnn_model_forward.1} parent=0 // pred_region
    _
  $region53: #{cnn_model_forward.1} parent=0 // pred_fallthru
    _

</llo_original>
